<compile_context>
chip_gen: v7x
topology: tpu7x:2x2x1
jax: 0.10.0
libtpu: 0.0.40
codegen_flags: <defaults>
</compile_context>

<pallas_src>
import functools

import jax
import jax.numpy as jnp
from jax import lax
from jax.experimental import pallas as pl
from jax.experimental.pallas import tpu as pltpu

# ----------------------------- configuration --------------------------------
DIM = 128          # MoCo feature dim (default)
K_QUEUE = 512      # queue length (small stand-in for 4096; K % batch == 0)
M_MOMENTUM = 0.99
T_TEMP = 0.1
NUM_POSITIVE = 6
NUM_CLASSES = 16   # stand-in for the ImageNet class-temperature table
BATCH = 8
C_IN = 8
H = W = 8
DIM_MLP = 128      # encoder feature width ("dim_mlp" of the mlp head)

_VMEM = pl.BlockSpec(memory_space=pltpu.MemorySpace.VMEM)
_SMEM = pl.BlockSpec(memory_space=pltpu.MemorySpace.SMEM)

_PARAM_NAMES = ("wc", "bc", "w1", "b1", "w2", "b2")


# =============================== Pallas kernels ==============================

def _momentum_temp_kernel(ct_ref,
                          qwc, qbc, qw1, qb1, qw2, qb2,
                          kwc, kbc, kw1, kb1, kw2, kb2,
                          ct_out, owc, obc, ow1, ob1, ow2, ob2,
                          *, m):
    """generate_temperature_frequent + _momentum_update_key_encoder, one launch."""
    ct = ct_ref[...]
    # ct <- 0.05 + 0.1*(ct - min)/max   (divides by the ORIGINAL max, exactly as
    # the PyTorch reference does; keepdims reductions keep everything vector-rank).
    ct_min = jnp.min(ct, axis=1, keepdims=True)
    ct_max = jnp.max(ct, axis=1, keepdims=True)
    ct_out[...] = 0.05 + 0.1 * (ct - ct_min) / ct_max
    # k <- m*k + (1-m)*q for every key-encoder parameter (aliased in place).
    for q_r, k_r, o_r in ((qwc, kwc, owc), (qbc, kbc, obc), (qw1, kw1, ow1),
                          (qb1, kb1, ob1), (qw2, kw2, ow2), (qb2, kb2, ob2)):
        o_r[...] = k_r[...] * m + q_r[...] * (1.0 - m)


def _fused_moco_kernel(q_ref, x_ref, unshuf_ref, u_ref,
                       wc_ref, bc_ref, w1_ref, b1_ref, w2_ref, b2_ref,
                       pool_ref, tri_ref, labels_ref, lab_tiled_ref,
                       queue_in_ref, qlab_in_ref, ptr_ref,
                       loss_ref, k_ref, queue_ref, qlab_ref,
                       *, n, temperature, num_positive, k_queue, num_items):
    """One grid step == one im2 item: key encoder + loss + in-place enqueue."""
    f32 = jnp.float32
    item = pl.program_id(0)

    # -- carry the queue across items: copy once, then read/modify in place ----
    @pl.when(item == 0)
    def _init():
        loss_ref[...] = jnp.zeros((1, 1), f32)
        queue_ref[...] = queue_in_ref[...]
        qlab_ref[...] = qlab_in_ref[...]

    # ---------------- key encoder (sample-major, lane-dense) -----------------
    x = x_ref[0]                                                     # (n*hw, Cin)
    h = jnp.dot(x, wc_ref[...], preferred_element_type=f32) + bc_ref[...]
    h = jnp.maximum(h, 0.0)                                          # (n*hw, Cmlp)
    # global average pool == matmul with a constant host-built pooling matrix
    pooled = jnp.dot(pool_ref[...], h, preferred_element_type=f32)   # (n, Cmlp)
    # mlp head: Linear -> ReLU -> Linear
    z = jnp.dot(pooled, w1_ref[...], preferred_element_type=f32) + b1_ref[...]
    z = jnp.maximum(z, 0.0)
    z = jnp.dot(z, w2_ref[...], preferred_element_type=f32) + b2_ref[...]  # (n, dim)
    # F.normalize(dim=1): per-sample L2 norm (rsqrt -> EUP slot)
    ss = jnp.sum(z * z, axis=1, keepdims=True)
    z = z * lax.rsqrt(jnp.maximum(ss, 1e-24))
    # undo the batch shuffle (row-permutation matmul; exact identity: no BN)
    k = jnp.dot(unshuf_ref[0], z, preferred_element_type=f32)        # (n, dim)
    k_ref[0] = k

    # -------------------------------- logits ---------------------------------
    q = q_ref[...]                                                   # (n, dim)
    inv_t = 1.0 / temperature
    l_pos = jnp.sum(q * k, axis=1, keepdims=True) * inv_t            # (n, 1)
    l_neg = lax.dot_general(q, queue_ref[...],
                            dimension_numbers=(((1,), (1,)), ((), ())),
                            preferred_element_type=f32) * inv_t      # (n, K)

    # ---------- positive mask + k-positive sampling (rank select) ------------
    labels = labels_ref[...]                                         # (n, 1) int32
    mask = (labels == qlab_ref[...]).astype(f32)                     # (n, K)
    mask_pos_view = jnp.zeros_like(mask)
    if num_positive > 0:
        # rank[a, c] = (#positives in row a at columns <= c) - 1; computed once
        # with a precomputed triangular matrix, then updated incrementally.
        # (small integers in f32 -> exact equality compares)
        rank = jnp.dot(mask, tri_ref[...], preferred_element_type=f32) - 1.0
        num_pos = jnp.sum(mask, axis=1, keepdims=True)               # (n, 1)
        u = u_ref[0]                                                 # (n, P)
        for i in range(num_positive):
            j = jnp.floor(u[:, i:i + 1] * num_pos)                   # (n, 1)
            sel = mask * (rank == j).astype(f32)                     # <=1 col / row
            mask_pos_view = mask_pos_view + sel
            mask = mask - sel
            num_pos = num_pos - jnp.sum(sel, axis=1, keepdims=True)
            rank = rank - (rank > j).astype(f32)                     # re-pack ranks
    else:
        mask_pos_view = mask

    # --------------------------------- loss ----------------------------------
    # logits = [l_pos | l_neg]; log_prob = log_softmax(row); numerator mask is
    # [1 | mask_pos_view]; the class-column truncation in the reference is a
    # no-op (the mask has exactly K columns).
    mx = jnp.maximum(l_pos, jnp.max(l_neg, axis=1, keepdims=True))
    lse = mx + jnp.log(jnp.exp(l_pos - mx) +
                       jnp.sum(jnp.exp(l_neg - mx), axis=1, keepdims=True))
    num = (l_pos - lse) + jnp.sum(mask_pos_view * (l_neg - lse),
                                  axis=1, keepdims=True)             # (n, 1)
    den = 1.0 + jnp.sum(mask_pos_view, axis=1, keepdims=True)        # (n, 1)
    contrib = -jnp.sum(num / den, axis=0, keepdims=True)             # (1, 1)
    loss_ref[...] = loss_ref[...] + contrib * (1.0 / (n * num_items))

    # -------------- _dequeue_and_enqueue (windowed, in place) ----------------
    # ptr is always a multiple of n and K % n == 0, so the window never wraps
    # inside one item (same assumption as the PyTorch assert).
    ptr = (ptr_ref[0] + item * n) % k_queue
    queue_ref[pl.ds(ptr, n), :] = k                                  # n rows only
    col = lax.broadcasted_iota(jnp.int32, (1, k_queue), 1)
    window = jnp.logical_and(col >= ptr, col < ptr + n)
    # lab_tiled[0, c] == labels[c % n], so a (1, K) select places the right label
    # in every window column without a dynamic lane-offset store.
    qlab_ref[...] = jnp.where(window, lab_tiled_ref[...], qlab_ref[...])


# =============================== Python wrappers =============================

def momentum_and_temperature_update(state, m=M_MOMENTUM):
    """One fused launch: temperature renorm + momentum update of all key params,
    written back in place via input_output_aliases."""
    pq = [state["params_q"][nm] for nm in _PARAM_NAMES]
    pk = [state["params_k"][nm] for nm in _PARAM_NAMES]
    ct = state["class_temperature"]
    outs = pl.pallas_call(
        functools.partial(_momentum_temp_kernel, m=m),
        out_shape=(jax.ShapeDtypeStruct(ct.shape, ct.dtype),)
                  + tuple(jax.ShapeDtypeStruct(p.shape, p.dtype) for p in pk),
        in_specs=[_VMEM] * 13,
        out_specs=(_VMEM,) * 7,
        input_output_aliases={0: 0, 7: 1, 8: 2, 9: 3, 10: 4, 11: 5, 12: 6},
    )(ct, *pq, *pk)
    params_k = dict(zip(_PARAM_NAMES, outs[1:]))
    return dict(state, class_temperature=outs[0], params_k=params_k)


def moco_contrastive_losses(state, q, im2_list, im_labels, rng):
    """All MoCo.contrastive_loss calls of one forward, fused into a single
    gridded pallas_call (one grid step per im2 item)."""
    num_items = len(im2_list)
    n, cin, hh, ww = im2_list[0].shape
    hw = hh * ww
    nhw = n * hw
    assert K_QUEUE % n == 0

    labels = im_labels.reshape(n, 1).astype(jnp.int32)
    targets = im_labels.reshape(-1)
    # gathered but unused downstream, exactly as in the PyTorch reference (DCE'd)
    _ = state["class_temperature"][0, targets]

    xs, unshufs, us = [], [], []
    for item in im2_list:
        rng, r_perm, r_u = jax.random.split(rng, 3)
        idx_shuffle = jax.random.permutation(r_perm, n)
        idx_unshuffle = jnp.argsort(idx_shuffle)
        # k_unshuffled = P @ k_shuffled  with  P = one_hot(idx_unshuffle)
        unshufs.append(jax.nn.one_hot(idx_unshuffle, n, dtype=jnp.float32))
        # NCHW -> (N*H*W, Cin) sample-major view of the shuffled key batch
        xs.append(jnp.transpose(item[idx_shuffle], (0, 2, 3, 1)).reshape(nhw, cin))
        # host-drawn uniforms for the k-positive rank-select sampling
        us.append(jax.random.uniform(r_u, (n, NUM_POSITIVE), jnp.float32))
    x_all = jnp.stack(xs)                                     # (I, n*hw, Cin)
    unshuf_all = jnp.stack(unshufs)                           # (I, n, n)
    u_all = jnp.stack(us)                                     # (I, n, P)

    # constants fetched once (constant block index across the grid)
    pool = jnp.repeat(jnp.eye(n, dtype=jnp.float32), hw, axis=1) / hw   # (n, n*hw)
    tri = jnp.triu(jnp.ones((K_QUEUE, K_QUEUE), jnp.float32))           # j <= c
    lab_tiled = jnp.tile(labels.reshape(1, n), (1, K_QUEUE // n))       # (1, K)

    pk = state["params_k"]
    ptr = state["queue_ptr"]                                  # (1,) int32

    kern = functools.partial(_fused_moco_kernel, n=n, temperature=T_TEMP,
                             num_positive=NUM_POSITIVE, k_queue=K_QUEUE,
                             num_items=num_items)
    per_item = lambda i: (i, 0, 0)

    loss, k_all, queue_new, qlab_new = pl.pallas_call(
        kern,
        grid=(num_items,),  # sequential ("arbitrary") axis: queue carried in place
        out_shape=(jax.ShapeDtypeStruct((1, 1), jnp.float32),
                   jax.ShapeDtypeStruct((num_items, n, DIM), jnp.float32),
                   jax.ShapeDtypeStruct((K_QUEUE, DIM), jnp.float32),
                   jax.ShapeDtypeStruct((1, K_QUEUE), jnp.int32)),
        in_specs=[_VMEM,
                  pl.BlockSpec((1, nhw, cin), per_item),
                  pl.BlockSpec((1, n, n), per_item),
                  pl.BlockSpec((1, n, NUM_POSITIVE), per_item),
                  _VMEM, _VMEM, _VMEM, _VMEM, _VMEM, _VMEM,   # params_k
                  _VMEM, _VMEM,                               # pool, tri
                  _VMEM, _VMEM,                               # labels, lab_tiled
                  _VMEM, _VMEM,                               # queue, queue_labels
                  _SMEM],                                     # queue_ptr
        out_specs=(_VMEM,
                   pl.BlockSpec((1, n, DIM), per_item),
                   _VMEM, _VMEM),
        input_output_aliases={14: 2, 15: 3},  # queue / queue_labels in place
    )(q, x_all, unshuf_all, u_all,
      pk["wc"], pk["bc"], pk["w1"], pk["b1"], pk["w2"], pk["b2"],
      pool, tri, labels, lab_tiled,
      state["queue"], state["queue_labels"], ptr)

    new_state = dict(state, queue=queue_new, queue_labels=qlab_new,
                     queue_ptr=(ptr + num_items * n) % K_QUEUE)
    return new_state, loss[0, 0], k_all


def _moco_forward(state, im1, im2_list, label, epoch, rng):
    """MoCo.forward (symmetric=False): im1 is the query features, im2 a list of
    key-image batches.  Returns (loss, q, all_k, updated buffers)."""
    del epoch  # the epoch % 2 branches of the reference are identical
    # generate_temperature_frequent() + _momentum_update_key_encoder(), one launch
    state = momentum_and_temperature_update(state)

    q = im1
    state, loss, k_all = moco_contrastive_losses(state, q, im2_list, label, rng)
    all_k = [k_all[i] for i in range(len(im2_list))]
    return loss, q, all_k, state


moco_forward = jax.jit(_moco_forward)


# =============================== initialization ==============================

def init_state(key):
    ks = jax.random.split(key, 8)
    scale = 0.05
    # params stored in the sample-major orientation the kernels consume
    # (wc: (Cin, Cmlp) 1x1-conv weight; biases as (1, C) rows).
    params_q = {
        "wc": scale * jax.random.normal(ks[0], (C_IN, DIM_MLP), jnp.float32),
        "bc": jnp.zeros((1, DIM_MLP), jnp.float32),
        "w1": scale * jax.random.normal(ks[1], (DIM_MLP, DIM_MLP), jnp.float32),
        "b1": jnp.zeros((1, DIM_MLP), jnp.float32),
        "w2": scale * jax.random.normal(ks[2], (DIM_MLP, DIM), jnp.float32),
        "b2": jnp.zeros((1, DIM), jnp.float32),
    }
    params_k = {nm: v.copy() for nm, v in params_q.items()}   # param_k <- param_q

    # queue kept sample-major (K, dim); PyTorch's normalize(dim=0) on (dim, K)
    # is a per-key normalization == per-row here.
    queue = jax.random.normal(ks[3], (K_QUEUE, DIM), jnp.float32)
    queue = queue / jnp.linalg.norm(queue, axis=1, keepdims=True)
    queue_labels = -jnp.ones((1, K_QUEUE), jnp.int32)
    # TODO(synk): the reference loads this from 'frequent_temperature_imagenet.pt';
    # a deterministic random vector stands in (no file IO).
    class_temperature = jax.random.uniform(ks[4], (1, NUM_CLASSES), jnp.float32,
                                           minval=1.0, maxval=10.0)
    return {
        "params_q": params_q,
        "params_k": params_k,
        "queue": queue,
        "queue_labels": queue_labels,
        "queue_ptr": jnp.zeros((1,), jnp.int32),
        "class_temperature": class_temperature,
    }


# ==================================== main ===================================

if __name__ == "__main__":
    root = jax.random.PRNGKey(0)
    k_state, k_q, k_im2a, k_im2b, k_lab, k_rng = jax.random.split(root, 6)

    state = init_state(k_state)

    # im1: query features (the reference's non-symmetric path uses im1 directly as q)
    q_raw = jax.random.normal(k_q, (BATCH, DIM), jnp.float32)
    im1 = q_raw / jnp.linalg.norm(q_raw, axis=1, keepdims=True)

    # im2: list of key-image batches, NCHW
    im2 = [jax.random.normal(k_im2a, (BATCH, C_IN, H, W), jnp.float32),
           jax.random.normal(k_im2b, (BATCH, C_IN, H, W), jnp.float32)]

    label = jax.random.randint(k_lab, (BATCH, 1), 0, NUM_CLASSES, dtype=jnp.int32)

    loss, q_out, all_k, state = moco_forward(state, im1, im2, label, 0, k_rng)

    jax.block_until_ready((loss, q_out, all_k, state))
    print("KERNEL_OK")
</pallas_src>

<mosaic_0001>
module attributes {stable_mosaic.version = 11 : i64} {
  func.func @_momentum_temp_kernel(%arg0: memref<1x16xf32, #tpu.memory_space<vmem>>, %arg1: memref<8x128xf32, #tpu.memory_space<vmem>>, %arg2: memref<1x128xf32, #tpu.memory_space<vmem>>, %arg3: memref<128x128xf32, #tpu.memory_space<vmem>>, %arg4: memref<1x128xf32, #tpu.memory_space<vmem>>, %arg5: memref<128x128xf32, #tpu.memory_space<vmem>>, %arg6: memref<1x128xf32, #tpu.memory_space<vmem>>, %arg7: memref<8x128xf32, #tpu.memory_space<vmem>>, %arg8: memref<1x128xf32, #tpu.memory_space<vmem>>, %arg9: memref<128x128xf32, #tpu.memory_space<vmem>>, %arg10: memref<1x128xf32, #tpu.memory_space<vmem>>, %arg11: memref<128x128xf32, #tpu.memory_space<vmem>>, %arg12: memref<1x128xf32, #tpu.memory_space<vmem>>, %arg13: memref<1x16xf32, #tpu.memory_space<vmem>>, %arg14: memref<8x128xf32, #tpu.memory_space<vmem>>, %arg15: memref<1x128xf32, #tpu.memory_space<vmem>>, %arg16: memref<128x128xf32, #tpu.memory_space<vmem>>, %arg17: memref<1x128xf32, #tpu.memory_space<vmem>>, %arg18: memref<128x128xf32, #tpu.memory_space<vmem>>, %arg19: memref<1x128xf32, #tpu.memory_space<vmem>>) attributes {dimension_semantics = [], scalar_prefetch = 0 : i64, scratch_operands = 0 : i64, tpu.core_type = #tpu.core_type<tc>} {
    %c0 = arith.constant 0 : index
    %c0_0 = arith.constant 0 : index
    %0 = vector.load %arg0[%c0, %c0_0] : memref<1x16xf32, #tpu.memory_space<vmem>>, vector<1x16xf32>
    %cst = arith.constant dense<0x7F800000> : vector<1xf32>
    %1 = vector.multi_reduction <minimumf>, %0, %cst [1] : vector<1x16xf32> to vector<1xf32>
    %2 = vector.shape_cast %1 : vector<1xf32> to vector<1x1xf32>
    %cst_1 = arith.constant dense<0xFF800000> : vector<1xf32>
    %3 = vector.multi_reduction <maximumf>, %0, %cst_1 [1] : vector<1x16xf32> to vector<1xf32>
    %4 = vector.shape_cast %3 : vector<1xf32> to vector<1x1xf32>
    %5 = vector.broadcast %2 : vector<1x1xf32> to vector<1x16xf32>
    %6 = arith.subf %0, %5 : vector<1x16xf32>
    %cst_2 = arith.constant 1.000000e-01 : f32
    %7 = vector.broadcast %cst_2 : f32 to vector<1x16xf32>
    %8 = arith.mulf %7, %6 : vector<1x16xf32>
    %9 = vector.broadcast %4 : vector<1x1xf32> to vector<1x16xf32>
    %10 = arith.divf %8, %9 : vector<1x16xf32>
    %cst_3 = arith.constant 5.000000e-02 : f32
    %11 = vector.broadcast %cst_3 : f32 to vector<1x16xf32>
    %12 = arith.addf %11, %10 : vector<1x16xf32>
    %c0_4 = arith.constant 0 : index
    %c0_5 = arith.constant 0 : index
    %13 = vector.load %arg13[%c0_4, %c0_5] : memref<1x16xf32, #tpu.memory_space<vmem>>, vector<1x16xf32>
    tpu.vector_store %arg13[%c0_4, %c0_5], %12 {strides = array<i32>} : memref<1x16xf32, #tpu.memory_space<vmem>>, vector<1x16xf32>,
    %c0_6 = arith.constant 0 : index
    %c0_7 = arith.constant 0 : index
    %14 = vector.load %arg7[%c0_6, %c0_7] : memref<8x128xf32, #tpu.memory_space<vmem>>, vector<8x128xf32>
    %cst_8 = arith.constant 9.900000e-01 : f32
    %15 = vector.broadcast %cst_8 : f32 to vector<8x128xf32>
    %16 = arith.mulf %14, %15 : vector<8x128xf32>
    %c0_9 = arith.constant 0 : index
    %c0_10 = arith.constant 0 : index
    %17 = vector.load %arg1[%c0_9, %c0_10] : memref<8x128xf32, #tpu.memory_space<vmem>>, vector<8x128xf32>
    %cst_11 = arith.constant 0.00999999977 : f32
    %18 = vector.broadcast %cst_11 : f32 to vector<8x128xf32>
    %19 = arith.mulf %17, %18 : vector<8x128xf32>
    %20 = arith.addf %16, %19 : vector<8x128xf32>
    %c0_12 = arith.constant 0 : index
    %c0_13 = arith.constant 0 : index
    %21 = vector.load %arg14[%c0_12, %c0_13] : memref<8x128xf32, #tpu.memory_space<vmem>>, vector<8x128xf32>
    tpu.vector_store %arg14[%c0_12, %c0_13], %20 {strides = array<i32>} : memref<8x128xf32, #tpu.memory_space<vmem>>, vector<8x128xf32>,
    %c0_14 = arith.constant 0 : index
    %c0_15 = arith.constant 0 : index
    %22 = vector.load %arg8[%c0_14, %c0_15] : memref<1x128xf32, #tpu.memory_space<vmem>>, vector<1x128xf32>
    %cst_16 = arith.constant 9.900000e-01 : f32
    %23 = vector.broadcast %cst_16 : f32 to vector<1x128xf32>
    %24 = arith.mulf %22, %23 : vector<1x128xf32>
    %c0_17 = arith.constant 0 : index
    %c0_18 = arith.constant 0 : index
    %25 = vector.load %arg2[%c0_17, %c0_18] : memref<1x128xf32, #tpu.memory_space<vmem>>, vector<1x128xf32>
    %cst_19 = arith.constant 0.00999999977 : f32
    %26 = vector.broadcast %cst_19 : f32 to vector<1x128xf32>
    %27 = arith.mulf %25, %26 : vector<1x128xf32>
    %28 = arith.addf %24, %27 : vector<1x128xf32>
    %c0_20 = arith.constant 0 : index
    %c0_21 = arith.constant 0 : index
    %29 = vector.load %arg15[%c0_20, %c0_21] : memref<1x128xf32, #tpu.memory_space<vmem>>, vector<1x128xf32>
    tpu.vector_store %arg15[%c0_20, %c0_21], %28 {strides = array<i32>} : memref<1x128xf32, #tpu.memory_space<vmem>>, vector<1x128xf32>,
    %c0_22 = arith.constant 0 : index
    %c0_23 = arith.constant 0 : index
    %30 = vector.load %arg9[%c0_22, %c0_23] : memref<128x128xf32, #tpu.memory_space<vmem>>, vector<128x128xf32>
    %cst_24 = arith.constant 9.900000e-01 : f32
    %31 = vector.broadcast %cst_24 : f32 to vector<128x128xf32>
    %32 = arith.mulf %30, %31 : vector<128x128xf32>
    %c0_25 = arith.constant 0 : index
    %c0_26 = arith.constant 0 : index
    %33 = vector.load %arg3[%c0_25, %c0_26] : memref<128x128xf32, #tpu.memory_space<vmem>>, vector<128x128xf32>
    %cst_27 = arith.constant 0.00999999977 : f32
    %34 = vector.broadcast %cst_27 : f32 to vector<128x128xf32>
    %35 = arith.mulf %33, %34 : vector<128x128xf32>
    %36 = arith.addf %32, %35 : vector<128x128xf32>
    %c0_28 = arith.constant 0 : index
    %c0_29 = arith.constant 0 : index
    %37 = vector.load %arg16[%c0_28, %c0_29] : memref<128x128xf32, #tpu.memory_space<vmem>>, vector<128x128xf32>
    tpu.vector_store %arg16[%c0_28, %c0_29], %36 {strides = array<i32>} : memref<128x128xf32, #tpu.memory_space<vmem>>, vector<128x128xf32>,
    %c0_30 = arith.constant 0 : index
    %c0_31 = arith.constant 0 : index
    %38 = vector.load %arg10[%c0_30, %c0_31] : memref<1x128xf32, #tpu.memory_space<vmem>>, vector<1x128xf32>
    %cst_32 = arith.constant 9.900000e-01 : f32
    %39 = vector.broadcast %cst_32 : f32 to vector<1x128xf32>
    %40 = arith.mulf %38, %39 : vector<1x128xf32>
    %c0_33 = arith.constant 0 : index
    %c0_34 = arith.constant 0 : index
    %41 = vector.load %arg4[%c0_33, %c0_34] : memref<1x128xf32, #tpu.memory_space<vmem>>, vector<1x128xf32>
    %cst_35 = arith.constant 0.00999999977 : f32
    %42 = vector.broadcast %cst_35 : f32 to vector<1x128xf32>
    %43 = arith.mulf %41, %42 : vector<1x128xf32>
    %44 = arith.addf %40, %43 : vector<1x128xf32>
    %c0_36 = arith.constant 0 : index
    %c0_37 = arith.constant 0 : index
    %45 = vector.load %arg17[%c0_36, %c0_37] : memref<1x128xf32, #tpu.memory_space<vmem>>, vector<1x128xf32>
    tpu.vector_store %arg17[%c0_36, %c0_37], %44 {strides = array<i32>} : memref<1x128xf32, #tpu.memory_space<vmem>>, vector<1x128xf32>,
    %c0_38 = arith.constant 0 : index
    %c0_39 = arith.constant 0 : index
    %46 = vector.load %arg11[%c0_38, %c0_39] : memref<128x128xf32, #tpu.memory_space<vmem>>, vector<128x128xf32>
    %cst_40 = arith.constant 9.900000e-01 : f32
    %47 = vector.broadcast %cst_40 : f32 to vector<128x128xf32>
    %48 = arith.mulf %46, %47 : vector<128x128xf32>
    %c0_41 = arith.constant 0 : index
    %c0_42 = arith.constant 0 : index
    %49 = vector.load %arg5[%c0_41, %c0_42] : memref<128x128xf32, #tpu.memory_space<vmem>>, vector<128x128xf32>
    %cst_43 = arith.constant 0.00999999977 : f32
    %50 = vector.broadcast %cst_43 : f32 to vector<128x128xf32>
    %51 = arith.mulf %49, %50 : vector<128x128xf32>
    %52 = arith.addf %48, %51 : vector<128x128xf32>
    %c0_44 = arith.constant 0 : index
    %c0_45 = arith.constant 0 : index
    %53 = vector.load %arg18[%c0_44, %c0_45] : memref<128x128xf32, #tpu.memory_space<vmem>>, vector<128x128xf32>
    tpu.vector_store %arg18[%c0_44, %c0_45], %52 {strides = array<i32>} : memref<128x128xf32, #tpu.memory_space<vmem>>, vector<128x128xf32>,
    %c0_46 = arith.constant 0 : index
    %c0_47 = arith.constant 0 : index
    %54 = vector.load %arg12[%c0_46, %c0_47] : memref<1x128xf32, #tpu.memory_space<vmem>>, vector<1x128xf32>
    %cst_48 = arith.constant 9.900000e-01 : f32
    %55 = vector.broadcast %cst_48 : f32 to vector<1x128xf32>
    %56 = arith.mulf %54, %55 : vector<1x128xf32>
    %c0_49 = arith.constant 0 : index
    %c0_50 = arith.constant 0 : index
    %57 = vector.load %arg6[%c0_49, %c0_50] : memref<1x128xf32, #tpu.memory_space<vmem>>, vector<1x128xf32>
    %cst_51 = arith.constant 0.00999999977 : f32
    %58 = vector.broadcast %cst_51 : f32 to vector<1x128xf32>
    %59 = arith.mulf %57, %58 : vector<1x128xf32>
    %60 = arith.addf %56, %59 : vector<1x128xf32>
    %c0_52 = arith.constant 0 : index
    %c0_53 = arith.constant 0 : index
    %61 = vector.load %arg19[%c0_52, %c0_53] : memref<1x128xf32, #tpu.memory_space<vmem>>, vector<1x128xf32>
    tpu.vector_store %arg19[%c0_52, %c0_53], %60 {strides = array<i32>} : memref<1x128xf32, #tpu.memory_space<vmem>>, vector<1x128xf32>,
    return
  }
}

module attributes {stable_mosaic.version = 11 : i64} {
  func.func @_fused_moco_kernel(%arg0: i32, %arg1: memref<8x128xf32, #tpu.memory_space<vmem>>, %arg2: memref<1x512x8xf32, #tpu.memory_space<vmem>>, %arg3: memref<1x8x8xf32, #tpu.memory_space<vmem>>, %arg4: memref<1x8x6xf32, #tpu.memory_space<vmem>>, %arg5: memref<8x128xf32, #tpu.memory_space<vmem>>, %arg6: memref<1x128xf32, #tpu.memory_space<vmem>>, %arg7: memref<128x128xf32, #tpu.memory_space<vmem>>, %arg8: memref<1x128xf32, #tpu.memory_space<vmem>>, %arg9: memref<128x128xf32, #tpu.memory_space<vmem>>, %arg10: memref<1x128xf32, #tpu.memory_space<vmem>>, %arg11: memref<8x512xf32, #tpu.memory_space<vmem>>, %arg12: memref<512x512xf32, #tpu.memory_space<vmem>>, %arg13: memref<8x1xi32, #tpu.memory_space<vmem>>, %arg14: memref<1x512xi32, #tpu.memory_space<vmem>>, %arg15: memref<512x128xf32, #tpu.memory_space<vmem>>, %arg16: memref<1x512xi32, #tpu.memory_space<vmem>>, %arg17: memref<1xi32, #tpu.memory_space<smem>>, %arg18: memref<1x1xf32, #tpu.memory_space<vmem>>, %arg19: memref<1x8x128xf32, #tpu.memory_space<vmem>>, %arg20: memref<512x128xf32, #tpu.memory_space<vmem>>, %arg21: memref<1x512xi32, #tpu.memory_space<vmem>>) attributes {dimension_semantics = [#tpu.dimension_semantics<arbitrary>], iteration_bounds = array<i64: 2>, scalar_prefetch = 0 : i64, scratch_operands = 0 : i64, tpu.core_type = #tpu.core_type<tc>, window_params = [{pipeline_mode = #tpu.pipeline_mode<synchronous>, transform_indices = @transform_0, window_bounds = array<i64: 8, 128>}, {transform_indices = @transform_1, window_bounds = array<i64: 1, 512, 8>}, {transform_indices = @transform_2, window_bounds = array<i64: 1, 8, 8>}, {transform_indices = @transform_3, window_bounds = array<i64: 1, 8, 6>}, {pipeline_mode = #tpu.pipeline_mode<synchronous>, transform_indices = @transform_4, window_bounds = array<i64: 8, 128>}, {pipeline_mode = #tpu.pipeline_mode<synchronous>, transform_indices = @transform_5, window_bounds = array<i64: 1, 128>}, {pipeline_mode = #tpu.pipeline_mode<synchronous>, transform_indices = @transform_6, window_bounds = array<i64: 128, 128>}, {pipeline_mode = #tpu.pipeline_mode<synchronous>, transform_indices = @transform_7, window_bounds = array<i64: 1, 128>}, {pipeline_mode = #tpu.pipeline_mode<synchronous>, transform_indices = @transform_8, window_bounds = array<i64: 128, 128>}, {pipeline_mode = #tpu.pipeline_mode<synchronous>, transform_indices = @transform_9, window_bounds = array<i64: 1, 128>}, {pipeline_mode = #tpu.pipeline_mode<synchronous>, transform_indices = @transform_10, window_bounds = array<i64: 8, 512>}, {pipeline_mode = #tpu.pipeline_mode<synchronous>, transform_indices = @transform_11, window_bounds = array<i64: 512, 512>}, {pipeline_mode = #tpu.pipeline_mode<synchronous>, transform_indices = @transform_12, window_bounds = array<i64: 8, 1>}, {pipeline_mode = #tpu.pipeline_mode<synchronous>, transform_indices = @transform_13, window_bounds = array<i64: 1, 512>}, {pipeline_mode = #tpu.pipeline_mode<synchronous>, transform_indices = @transform_14, window_bounds = array<i64: 512, 128>}, {pipeline_mode = #tpu.pipeline_mode<synchronous>, transform_indices = @transform_15, window_bounds = array<i64: 1, 512>}, {transform_indices = @transform_16, window_bounds = array<i64: 1>}, {pipeline_mode = #tpu.pipeline_mode<synchronous>, transform_indices = @transform_17, window_bounds = array<i64: 1, 1>}, {transform_indices = @transform_18, window_bounds = array<i64: 1, 8, 128>}, {pipeline_mode = #tpu.pipeline_mode<synchronous>, transform_indices = @transform_19, window_bounds = array<i64: 512, 128>}, {pipeline_mode = #tpu.pipeline_mode<synchronous>, transform_indices = @transform_20, window_bounds = array<i64: 1, 512>}]} {
    %c0_i32 = arith.constant 0 : i32
    %0 = arith.cmpi eq, %arg0, %c0_i32 : i32
    %1 = arith.extui %0 : i1 to i32
    %c0_i32_0 = arith.constant 0 : i32
    %2 = arith.cmpi ne, %1, %c0_i32_0 : i32
    scf.if %2 {
      %cst_82 = arith.constant 0.000000e+00 : f32
      %225 = vector.broadcast %cst_82 : f32 to vector<1x1xf32>
      %c0_83 = arith.constant 0 : index
      %c0_84 = arith.constant 0 : index
      %226 = vector.load %arg18[%c0_83, %c0_84] : memref<1x1xf32, #tpu.memory_space<vmem>>, vector<1x1xf32>
      tpu.vector_store %arg18[%c0_83, %c0_84], %225 {strides = array<i32>} : memref<1x1xf32, #tpu.memory_space<vmem>>, vector<1x1xf32>,
      %c0_85 = arith.constant 0 : index
      %c0_86 = arith.constant 0 : index
      %227 = vector.load %arg15[%c0_85, %c0_86] : memref<512x128xf32, #tpu.memory_space<vmem>>, vector<512x128xf32>
      %c0_87 = arith.constant 0 : index
      %c0_88 = arith.constant 0 : index
      %228 = vector.load %arg20[%c0_87, %c0_88] : memref<512x128xf32, #tpu.memory_space<vmem>>, vector<512x128xf32>
      tpu.vector_store %arg20[%c0_87, %c0_88], %227 {strides = array<i32>} : memref<512x128xf32, #tpu.memory_space<vmem>>, vector<512x128xf32>,
      %c0_89 = arith.constant 0 : index
      %c0_90 = arith.constant 0 : index
      %229 = vector.load %arg16[%c0_89, %c0_90] : memref<1x512xi32, #tpu.memory_space<vmem>>, vector<1x512xi32>
      %c0_91 = arith.constant 0 : index
      %c0_92 = arith.constant 0 : index
      %230 = vector.load %arg21[%c0_91, %c0_92] : memref<1x512xi32, #tpu.memory_space<vmem>>, vector<1x512xi32>
      tpu.vector_store %arg21[%c0_91, %c0_92], %229 {strides = array<i32>} : memref<1x512xi32, #tpu.memory_space<vmem>>, vector<1x512xi32>,
    } else {
    }
    %c0 = arith.constant 0 : index
    %c0_1 = arith.constant 0 : index
    %c0_2 = arith.constant 0 : index
    %3 = vector.load %arg2[%c0, %c0_1, %c0_2] : memref<1x512x8xf32, #tpu.memory_space<vmem>>, vector<1x512x8xf32>
    %4 = vector.shape_cast %3 : vector<1x512x8xf32> to vector<512x8xf32>
    %c0_3 = arith.constant 0 : index
    %c0_4 = arith.constant 0 : index
    %5 = vector.load %arg5[%c0_3, %c0_4] : memref<8x128xf32, #tpu.memory_space<vmem>>, vector<8x128xf32>
    %cst = arith.constant dense<0.000000e+00> : vector<512x128xf32>
    %6 = tpu.matmul %4, %5, %cst {dimension_numbers = #tpu.dot_dimension_numbers<[1], [0], [0], [1], [0, 0, 1, 1], [], []>} : vector<512x8xf32>, vector<8x128xf32>, vector<512x128xf32> -> vector<512x128xf32>
    %c0_5 = arith.constant 0 : index
    %c0_6 = arith.constant 0 : index
    %7 = vector.load %arg6[%c0_5, %c0_6] : memref<1x128xf32, #tpu.memory_space<vmem>>, vector<1x128xf32>
    %8 = vector.broadcast %7 : vector<1x128xf32> to vector<512x128xf32>
    %9 = arith.addf %6, %8 : vector<512x128xf32>
    %cst_7 = arith.constant 0.000000e+00 : f32
    %10 = vector.broadcast %cst_7 : f32 to vector<512x128xf32>
    %11 = arith.maximumf %9, %10 : vector<512x128xf32>
    %c0_8 = arith.constant 0 : index
    %c0_9 = arith.constant 0 : index
    %12 = vector.load %arg11[%c0_8, %c0_9] : memref<8x512xf32, #tpu.memory_space<vmem>>, vector<8x512xf32>
    %cst_10 = arith.constant dense<0.000000e+00> : vector<8x128xf32>
    %13 = tpu.matmul %12, %11, %cst_10 {dimension_numbers = #tpu.dot_dimension_numbers<[1], [0], [0], [1], [0, 0, 1, 1], [], []>} : vector<8x512xf32>, vector<512x128xf32>, vector<8x128xf32> -> vector<8x128xf32>
    %c0_11 = arith.constant 0 : index
    %c0_12 = arith.constant 0 : index
    %14 = vector.load %arg7[%c0_11, %c0_12] : memref<128x128xf32, #tpu.memory_space<vmem>>, vector<128x128xf32>
    %cst_13 = arith.constant dense<0.000000e+00> : vector<8x128xf32>
    %15 = tpu.matmul %13, %14, %cst_13 {dimension_numbers = #tpu.dot_dimension_numbers<[1], [0], [0], [1], [0, 0, 1, 1], [], []>} : vector<8x128xf32>, vector<128x128xf32>, vector<8x128xf32> -> vector<8x128xf32>
    %c0_14 = arith.constant 0 : index
    %c0_15 = arith.constant 0 : index
    %16 = vector.load %arg8[%c0_14, %c0_15] : memref<1x128xf32, #tpu.memory_space<vmem>>, vector<1x128xf32>
    %17 = vector.broadcast %16 : vector<1x128xf32> to vector<8x128xf32>
    %18 = arith.addf %15, %17 : vector<8x128xf32>
    %cst_16 = arith.constant 0.000000e+00 : f32
    %19 = vector.broadcast %cst_16 : f32 to vector<8x128xf32>
    %20 = arith.maximumf %18, %19 : vector<8x128xf32>
    %c0_17 = arith.constant 0 : index
    %c0_18 = arith.constant 0 : index
    %21 = vector.load %arg9[%c0_17, %c0_18] : memref<128x128xf32, #tpu.memory_space<vmem>>, vector<128x128xf32>
    %cst_19 = arith.constant dense<0.000000e+00> : vector<8x128xf32>
    %22 = tpu.matmul %20, %21, %cst_19 {dimension_numbers = #tpu.dot_dimension_numbers<[1], [0], [0], [1], [0, 0, 1, 1], [], []>} : vector<8x128xf32>, vector<128x128xf32>, vector<8x128xf32> -> vector<8x128xf32>
    %c0_20 = arith.constant 0 : index
    %c0_21 = arith.constant 0 : index
    %23 = vector.load %arg10[%c0_20, %c0_21] : memref<1x128xf32, #tpu.memory_space<vmem>>, vector<1x128xf32>
    %24 = vector.broadcast %23 : vector<1x128xf32> to vector<8x128xf32>
    %25 = arith.addf %22, %24 : vector<8x128xf32>
    %26 = arith.mulf %25, %25 : vector<8x128xf32>
    %cst_22 = arith.constant dense<0.000000e+00> : vector<8xf32>
    %27 = vector.multi_reduction <add>, %26, %cst_22 [1] : vector<8x128xf32> to vector<8xf32>
    %28 = vector.shape_cast %27 : vector<8xf32> to vector<8x1xf32>
    %cst_23 = arith.constant 1.000000e-24 : f32
    %29 = vector.broadcast %cst_23 : f32 to vector<8x1xf32>
    %30 = arith.maximumf %28, %29 : vector<8x1xf32>
    %31 = math.rsqrt %30 : vector<8x1xf32>
    %32 = vector.broadcast %31 : vector<8x1xf32> to vector<8x128xf32>
    %33 = arith.mulf %25, %32 : vector<8x128xf32>
    %c0_24 = arith.constant 0 : index
    %c0_25 = arith.constant 0 : index
    %c0_26 = arith.constant 0 : index
    %34 = vector.load %arg3[%c0_24, %c0_25, %c0_26] : memref<1x8x8xf32, #tpu.memory_space<vmem>>, vector<1x8x8xf32>
    %35 = vector.shape_cast %34 : vector<1x8x8xf32> to vector<8x8xf32>
    %cst_27 = arith.constant dense<0.000000e+00> : vector<8x128xf32>
    %36 = tpu.matmul %35, %33, %cst_27 {dimension_numbers = #tpu.dot_dimension_numbers<[1], [0], [0], [1], [0, 0, 1, 1], [], []>} : vector<8x8xf32>, vector<8x128xf32>, vector<8x128xf32> -> vector<8x128xf32>
    %c0_28 = arith.constant 0 : index
    %c0_29 = arith.constant 0 : index
    %c0_30 = arith.constant 0 : index
    %37 = vector.load %arg19[%c0_28, %c0_29, %c0_30] : memref<1x8x128xf32, #tpu.memory_space<vmem>>, vector<1x8x128xf32>
    %38 = vector.shape_cast %37 : vector<1x8x128xf32> to vector<8x128xf32>
    %39 = vector.shape_cast %36 : vector<8x128xf32> to vector<1x8x128xf32>
    tpu.vector_store %arg19[%c0_28, %c0_29, %c0_30], %39 {strides = array<i32>} : memref<1x8x128xf32, #tpu.memory_space<vmem>>, vector<1x8x128xf32>,
    %c0_31 = arith.constant 0 : index
    %c0_32 = arith.constant 0 : index
    %40 = vector.load %arg1[%c0_31, %c0_32] : memref<8x128xf32, #tpu.memory_space<vmem>>, vector<8x128xf32>
    %41 = arith.mulf %40, %36 : vector<8x128xf32>
    %cst_33 = arith.constant dense<0.000000e+00> : vector<8xf32>
    %42 = vector.multi_reduction <add>, %41, %cst_33 [1] : vector<8x128xf32> to vector<8xf32>
    %43 = vector.shape_cast %42 : vector<8xf32> to vector<8x1xf32>
    %cst_34 = arith.constant 1.000000e+01 : f32
    %44 = vector.broadcast %cst_34 : f32 to vector<8x1xf32>
    %45 = arith.mulf %43, %44 : vector<8x1xf32>
    %c0_35 = arith.constant 0 : index
    %c0_36 = arith.constant 0 : index
    %46 = vector.load %arg20[%c0_35, %c0_36] : memref<512x128xf32, #tpu.memory_space<vmem>>, vector<512x128xf32>
    %cst_37 = arith.constant dense<0.000000e+00> : vector<8x512xf32>
    %47 = tpu.matmul %40, %46, %cst_37 {dimension_numbers = #tpu.dot_dimension_numbers<[1], [1], [0], [0], [0, 0, 1, 0], [], []>} : vector<8x128xf32>, vector<512x128xf32>, vector<8x512xf32> -> vector<8x512xf32>
    %cst_38 = arith.constant 1.000000e+01 : f32
    %48 = vector.broadcast %cst_38 : f32 to vector<8x512xf32>
    %49 = arith.mulf %47, %48 : vector<8x512xf32>
    %c0_39 = arith.constant 0 : index
    %c0_40 = arith.constant 0 : index
    %50 = vector.load %arg13[%c0_39, %c0_40] : memref<8x1xi32, #tpu.memory_space<vmem>>, vector<8x1xi32>
    %c0_41 = arith.constant 0 : index
    %c0_42 = arith.constant 0 : index
    %51 = vector.load %arg21[%c0_41, %c0_42] : memref<1x512xi32, #tpu.memory_space<vmem>>, vector<1x512xi32>
    %52 = vector.broadcast %50 : vector<8x1xi32> to vector<8x512xi32>
    %53 = vector.broadcast %51 : vector<1x512xi32> to vector<8x512xi32>
    %54 = arith.cmpi eq, %52, %53 : vector<8x512xi32>
    %55 = arith.extui %54 : vector<8x512xi1> to vector<8x512xi32>
    %56 = arith.sitofp %55 : vector<8x512xi32> to vector<8x512xf32>
    %cst_43 = arith.constant 0.000000e+00 : f32
    %57 = vector.broadcast %cst_43 : f32 to vector<8x512xf32>
    %c0_44 = arith.constant 0 : index
    %c0_45 = arith.constant 0 : index
    %58 = vector.load %arg12[%c0_44, %c0_45] : memref<512x512xf32, #tpu.memory_space<vmem>>, vector<512x512xf32>
    %cst_46 = arith.constant dense<0.000000e+00> : vector<8x512xf32>
    %59 = tpu.matmul %56, %58, %cst_46 {dimension_numbers = #tpu.dot_dimension_numbers<[1], [0], [0], [1], [0, 0, 1, 1], [], []>} : vector<8x512xf32>, vector<512x512xf32>, vector<8x512xf32> -> vector<8x512xf32>
    %cst_47 = arith.constant 1.000000e+00 : f32
    %60 = vector.broadcast %cst_47 : f32 to vector<8x512xf32>
    %61 = arith.subf %59, %60 : vector<8x512xf32>
    %cst_48 = arith.constant dense<0.000000e+00> : vector<8xf32>
    %62 = vector.multi_reduction <add>, %56, %cst_48 [1] : vector<8x512xf32> to vector<8xf32>
    %63 = vector.shape_cast %62 : vector<8xf32> to vector<8x1xf32>
    %c0_49 = arith.constant 0 : index
    %c0_50 = arith.constant 0 : index
    %c0_51 = arith.constant 0 : index
    %64 = vector.load %arg4[%c0_49, %c0_50, %c0_51] : memref<1x8x6xf32, #tpu.memory_space<vmem>>, vector<1x8x6xf32>
    %65 = vector.shape_cast %64 : vector<1x8x6xf32> to vector<8x6xf32>
    %66 = vector.extract_strided_slice %65 {offsets = [0, 0], sizes = [8, 1], strides = [1, 1]} : vector<8x6xf32> to vector<8x1xf32>
    %67 = arith.mulf %66, %63 : vector<8x1xf32>
    %68 = math.floor %67 : vector<8x1xf32>
    %69 = vector.broadcast %68 : vector<8x1xf32> to vector<8x512xf32>
    %70 = arith.cmpf oeq, %61, %69 : vector<8x512xf32>
    %71 = arith.extui %70 : vector<8x512xi1> to vector<8x512xi32>
    %72 = arith.sitofp %71 : vector<8x512xi32> to vector<8x512xf32>
    %73 = arith.mulf %56, %72 : vector<8x512xf32>
    %74 = arith.addf %57, %73 : vector<8x512xf32>
    %75 = arith.subf %56, %73 : vector<8x512xf32>
    %cst_52 = arith.constant dense<0.000000e+00> : vector<8xf32>
    %76 = vector.multi_reduction <add>, %73, %cst_52 [1] : vector<8x512xf32> to vector<8xf32>
    %77 = vector.shape_cast %76 : vector<8xf32> to vector<8x1xf32>
    %78 = arith.subf %63, %77 : vector<8x1xf32>
    %79 = vector.broadcast %68 : vector<8x1xf32> to vector<8x512xf32>
    %80 = arith.cmpf ogt, %61, %79 : vector<8x512xf32>
    %81 = arith.extui %80 : vector<8x512xi1> to vector<8x512xi32>
    %82 = arith.sitofp %81 : vector<8x512xi32> to vector<8x512xf32>
    %83 = arith.subf %61, %82 : vector<8x512xf32>
    %84 = vector.extract_strided_slice %65 {offsets = [0, 1], sizes = [8, 1], strides = [1, 1]} : vector<8x6xf32> to vector<8x1xf32>
    %85 = arith.mulf %84, %78 : vector<8x1xf32>
    %86 = math.floor %85 : vector<8x1xf32>
    %87 = vector.broadcast %86 : vector<8x1xf32> to vector<8x512xf32>
    %88 = arith.cmpf oeq, %83, %87 : vector<8x512xf32>
    %89 = arith.extui %88 : vector<8x512xi1> to vector<8x512xi32>
    %90 = arith.sitofp %89 : vector<8x512xi32> to vector<8x512xf32>
    %91 = arith.mulf %75, %90 : vector<8x512xf32>
    %92 = arith.addf %74, %91 : vector<8x512xf32>
    %93 = arith.subf %75, %91 : vector<8x512xf32>
    %cst_53 = arith.constant dense<0.000000e+00> : vector<8xf32>
    %94 = vector.multi_reduction <add>, %91, %cst_53 [1] : vector<8x512xf32> to vector<8xf32>
    %95 = vector.shape_cast %94 : vector<8xf32> to vector<8x1xf32>
    %96 = arith.subf %78, %95 : vector<8x1xf32>
    %97 = vector.broadcast %86 : vector<8x1xf32> to vector<8x512xf32>
    %98 = arith.cmpf ogt, %83, %97 : vector<8x512xf32>
    %99 = arith.extui %98 : vector<8x512xi1> to vector<8x512xi32>
    %100 = arith.sitofp %99 : vector<8x512xi32> to vector<8x512xf32>
    %101 = arith.subf %83, %100 : vector<8x512xf32>
    %102 = vector.extract_strided_slice %65 {offsets = [0, 2], sizes = [8, 1], strides = [1, 1]} : vector<8x6xf32> to vector<8x1xf32>
    %103 = arith.mulf %102, %96 : vector<8x1xf32>
    %104 = math.floor %103 : vector<8x1xf32>
    %105 = vector.broadcast %104 : vector<8x1xf32> to vector<8x512xf32>
    %106 = arith.cmpf oeq, %101, %105 : vector<8x512xf32>
    %107 = arith.extui %106 : vector<8x512xi1> to vector<8x512xi32>
    %108 = arith.sitofp %107 : vector<8x512xi32> to vector<8x512xf32>
    %109 = arith.mulf %93, %108 : vector<8x512xf32>
    %110 = arith.addf %92, %109 : vector<8x512xf32>
    %111 = arith.subf %93, %109 : vector<8x512xf32>
    %cst_54 = arith.constant dense<0.000000e+00> : vector<8xf32>
    %112 = vector.multi_reduction <add>, %109, %cst_54 [1] : vector<8x512xf32> to vector<8xf32>
    %113 = vector.shape_cast %112 : vector<8xf32> to vector<8x1xf32>
    %114 = arith.subf %96, %113 : vector<8x1xf32>
    %115 = vector.broadcast %104 : vector<8x1xf32> to vector<8x512xf32>
    %116 = arith.cmpf ogt, %101, %115 : vector<8x512xf32>
    %117 = arith.extui %116 : vector<8x512xi1> to vector<8x512xi32>
    %118 = arith.sitofp %117 : vector<8x512xi32> to vector<8x512xf32>
    %119 = arith.subf %101, %118 : vector<8x512xf32>
    %120 = vector.extract_strided_slice %65 {offsets = [0, 3], sizes = [8, 1], strides = [1, 1]} : vector<8x6xf32> to vector<8x1xf32>
    %121 = arith.mulf %120, %114 : vector<8x1xf32>
    %122 = math.floor %121 : vector<8x1xf32>
    %123 = vector.broadcast %122 : vector<8x1xf32> to vector<8x512xf32>
    %124 = arith.cmpf oeq, %119, %123 : vector<8x512xf32>
    %125 = arith.extui %124 : vector<8x512xi1> to vector<8x512xi32>
    %126 = arith.sitofp %125 : vector<8x512xi32> to vector<8x512xf32>
    %127 = arith.mulf %111, %126 : vector<8x512xf32>
    %128 = arith.addf %110, %127 : vector<8x512xf32>
    %129 = arith.subf %111, %127 : vector<8x512xf32>
    %cst_55 = arith.constant dense<0.000000e+00> : vector<8xf32>
    %130 = vector.multi_reduction <add>, %127, %cst_55 [1] : vector<8x512xf32> to vector<8xf32>
    %131 = vector.shape_cast %130 : vector<8xf32> to vector<8x1xf32>
    %132 = arith.subf %114, %131 : vector<8x1xf32>
    %133 = vector.broadcast %122 : vector<8x1xf32> to vector<8x512xf32>
    %134 = arith.cmpf ogt, %119, %133 : vector<8x512xf32>
    %135 = arith.extui %134 : vector<8x512xi1> to vector<8x512xi32>
    %136 = arith.sitofp %135 : vector<8x512xi32> to vector<8x512xf32>
    %137 = arith.subf %119, %136 : vector<8x512xf32>
    %138 = vector.extract_strided_slice %65 {offsets = [0, 4], sizes = [8, 1], strides = [1, 1]} : vector<8x6xf32> to vector<8x1xf32>
    %139 = arith.mulf %138, %132 : vector<8x1xf32>
    %140 = math.floor %139 : vector<8x1xf32>
    %141 = vector.broadcast %140 : vector<8x1xf32> to vector<8x512xf32>
    %142 = arith.cmpf oeq, %137, %141 : vector<8x512xf32>
    %143 = arith.extui %142 : vector<8x512xi1> to vector<8x512xi32>
    %144 = arith.sitofp %143 : vector<8x512xi32> to vector<8x512xf32>
    %145 = arith.mulf %129, %144 : vector<8x512xf32>
    %146 = arith.addf %128, %145 : vector<8x512xf32>
    %147 = arith.subf %129, %145 : vector<8x512xf32>
    %cst_56 = arith.constant dense<0.000000e+00> : vector<8xf32>
    %148 = vector.multi_reduction <add>, %145, %cst_56 [1] : vector<8x512xf32> to vector<8xf32>
    %149 = vector.shape_cast %148 : vector<8xf32> to vector<8x1xf32>
    %150 = arith.subf %132, %149 : vector<8x1xf32>
    %151 = vector.broadcast %140 : vector<8x1xf32> to vector<8x512xf32>
    %152 = arith.cmpf ogt, %137, %151 : vector<8x512xf32>
    %153 = arith.extui %152 : vector<8x512xi1> to vector<8x512xi32>
    %154 = arith.sitofp %153 : vector<8x512xi32> to vector<8x512xf32>
    %155 = arith.subf %137, %154 : vector<8x512xf32>
    %156 = vector.extract_strided_slice %65 {offsets = [0, 5], sizes = [8, 1], strides = [1, 1]} : vector<8x6xf32> to vector<8x1xf32>
    %157 = arith.mulf %156, %150 : vector<8x1xf32>
    %158 = math.floor %157 : vector<8x1xf32>
    %159 = vector.broadcast %158 : vector<8x1xf32> to vector<8x512xf32>
    %160 = arith.cmpf oeq, %155, %159 : vector<8x512xf32>
    %161 = arith.extui %160 : vector<8x512xi1> to vector<8x512xi32>
    %162 = arith.sitofp %161 : vector<8x512xi32> to vector<8x512xf32>
    %163 = arith.mulf %147, %162 : vector<8x512xf32>
    %164 = arith.addf %146, %163 : vector<8x512xf32>
    %cst_57 = arith.constant dense<0xFF800000> : vector<8xf32>
    %165 = vector.multi_reduction <maximumf>, %49, %cst_57 [1] : vector<8x512xf32> to vector<8xf32>
    %166 = vector.shape_cast %165 : vector<8xf32> to vector<8x1xf32>
    %167 = arith.maximumf %45, %166 : vector<8x1xf32>
    %168 = arith.subf %45, %167 : vector<8x1xf32>
    %169 = math.exp %168 : vector<8x1xf32>
    %170 = vector.broadcast %167 : vector<8x1xf32> to vector<8x512xf32>
    %171 = arith.subf %49, %170 : vector<8x512xf32>
    %172 = math.exp %171 : vector<8x512xf32>
    %cst_58 = arith.constant dense<0.000000e+00> : vector<8xf32>
    %173 = vector.multi_reduction <add>, %172, %cst_58 [1] : vector<8x512xf32> to vector<8xf32>
    %174 = vector.shape_cast %173 : vector<8xf32> to vector<8x1xf32>
    %175 = arith.addf %169, %174 : vector<8x1xf32>
    %176 = math.log %175 : vector<8x1xf32>
    %177 = arith.addf %167, %176 : vector<8x1xf32>
    %178 = arith.subf %45, %177 : vector<8x1xf32>
    %179 = vector.broadcast %177 : vector<8x1xf32> to vector<8x512xf32>
    %180 = arith.subf %49, %179 : vector<8x512xf32>
    %181 = arith.mulf %164, %180 : vector<8x512xf32>
    %cst_59 = arith.constant dense<0.000000e+00> : vector<8xf32>
    %182 = vector.multi_reduction <add>, %181, %cst_59 [1] : vector<8x512xf32> to vector<8xf32>
    %183 = vector.shape_cast %182 : vector<8xf32> to vector<8x1xf32>
    %184 = arith.addf %178, %183 : vector<8x1xf32>
    %cst_60 = arith.constant dense<0.000000e+00> : vector<8xf32>
    %185 = vector.multi_reduction <add>, %164, %cst_60 [1] : vector<8x512xf32> to vector<8xf32>
    %186 = vector.shape_cast %185 : vector<8xf32> to vector<8x1xf32>
    %cst_61 = arith.constant 1.000000e+00 : f32
    %187 = vector.broadcast %cst_61 : f32 to vector<8x1xf32>
    %188 = arith.addf %187, %186 : vector<8x1xf32>
    %189 = arith.divf %184, %188 : vector<8x1xf32>
    %cst_62 = arith.constant dense<0.000000e+00> : vector<1xf32>
    %190 = vector.multi_reduction <add>, %189, %cst_62 [0] : vector<8x1xf32> to vector<1xf32>
    %191 = vector.shape_cast %190 : vector<1xf32> to vector<1x1xf32>
    %cst_63 = arith.constant 0.000000e+00 : f32
    %192 = vector.broadcast %cst_63 : f32 to vector<1x1xf32>
    %193 = arith.subf %192, %191 : vector<1x1xf32>
    %c0_64 = arith.constant 0 : index
    %c0_65 = arith.constant 0 : index
    %194 = vector.load %arg18[%c0_64, %c0_65] : memref<1x1xf32, #tpu.memory_space<vmem>>, vector<1x1xf32>
    %cst_66 = arith.constant 6.250000e-02 : f32
    %195 = vector.broadcast %cst_66 : f32 to vector<1x1xf32>
    %196 = arith.mulf %193, %195 : vector<1x1xf32>
    %197 = arith.addf %194, %196 : vector<1x1xf32>
    %c0_67 = arith.constant 0 : index
    %c0_68 = arith.constant 0 : index
    %198 = vector.load %arg18[%c0_67, %c0_68] : memref<1x1xf32, #tpu.memory_space<vmem>>, vector<1x1xf32>
    tpu.vector_store %arg18[%c0_67, %c0_68], %197 {strides = array<i32>} : memref<1x1xf32, #tpu.memory_space<vmem>>, vector<1x1xf32>,
    %c0_69 = arith.constant 0 : index
    %199 = memref.load %arg17[%c0_69] : memref<1xi32, #tpu.memory_space<smem>>
    %c8_i32 = arith.constant 8 : i32
    %200 = arith.muli %arg0, %c8_i32 : i32
    %201 = arith.addi %199, %200 : i32
    %c512_i32 = arith.constant 512 : i32
    %c0_i32_70 = arith.constant 0 : i32
    %202 = arith.cmpi eq, %c512_i32, %c0_i32_70 : i32
    %c1_i32 = arith.constant 1 : i32
    %203 = arith.select %202, %c1_i32, %c512_i32 : i32
    %204 = arith.remsi %201, %203 : i32
    %c0_i32_71 = arith.constant 0 : i32
    %205 = arith.cmpi ne, %204, %c0_i32_71 : i32
    %c0_i32_72 = arith.constant 0 : i32
    %206 = arith.cmpi slt, %204, %c0_i32_72 : i32
    %c0_i32_73 = arith.constant 0 : i32
    %207 = arith.cmpi slt, %203, %c0_i32_73 : i32
    %208 = arith.xori %206, %207 : i1
    %209 = arith.andi %208, %205 : i1
    %210 = arith.addi %204, %203 : i32
    %211 = arith.select %209, %210, %204 : i32
    %212 = arith.index_cast %211 : i32 to index
    %c0_74 = arith.constant 0 : index
    %213 = vector.load %arg20[%212, %c0_74] : memref<512x128xf32, #tpu.memory_space<vmem>>, vector<8x128xf32>
    tpu.vector_store %arg20[%212, %c0_74], %36 {strides = array<i32>} : memref<512x128xf32, #tpu.memory_space<vmem>>, vector<8x128xf32>,
    %214 = tpu.iota {dimensions = array<i32: 1>} : vector<1x512xi32>
    %215 = vector.broadcast %211 : i32 to vector<1x512xi32>
    %216 = arith.cmpi sge, %214, %215 : vector<1x512xi32>
    %c8_i32_75 = arith.constant 8 : i32
    %217 = arith.addi %211, %c8_i32_75 : i32
    %218 = vector.broadcast %217 : i32 to vector<1x512xi32>
    %219 = arith.cmpi slt, %214, %218 : vector<1x512xi32>
    %220 = arith.andi %216, %219 : vector<1x512xi1>
    %c0_76 = arith.constant 0 : index
    %c0_77 = arith.constant 0 : index
    %221 = vector.load %arg14[%c0_76, %c0_77] : memref<1x512xi32, #tpu.memory_space<vmem>>, vector<1x512xi32>
    %c0_78 = arith.constant 0 : index
    %c0_79 = arith.constant 0 : index
    %222 = vector.load %arg21[%c0_78, %c0_79] : memref<1x512xi32, #tpu.memory_space<vmem>>, vector<1x512xi32>
    %223 = arith.select %220, %221, %222 : vector<1x512xi1>, vector<1x512xi32>
    %c0_80 = arith.constant 0 : index
    %c0_81 = arith.constant 0 : index
    %224 = vector.load %arg21[%c0_80, %c0_81] : memref<1x512xi32, #tpu.memory_space<vmem>>, vector<1x512xi32>
    tpu.vector_store %arg21[%c0_80, %c0_81], %223 {strides = array<i32>} : memref<1x512xi32, #tpu.memory_space<vmem>>, vector<1x512xi32>,
    return
  }
  func.func @transform_0(%arg0: i32) -> (i32, i32) {
    %c0_i32 = arith.constant 0 : i32
    %c0_i32_0 = arith.constant 0 : i32
    %c0_i32_1 = arith.constant 0 : i32
    return %c0_i32, %c0_i32_0 : i32, i32
  }
  func.func @transform_1(%arg0: i32) -> (i32, i32, i32) {
    %c0_i32 = arith.constant 0 : i32
    %c0_i32_0 = arith.constant 0 : i32
    %c0_i32_1 = arith.constant 0 : i32
    return %arg0, %c0_i32, %c0_i32_0 : i32, i32, i32
  }
  func.func @transform_2(%arg0: i32) -> (i32, i32, i32) {
    %c0_i32 = arith.constant 0 : i32
    %c0_i32_0 = arith.constant 0 : i32
    %c0_i32_1 = arith.constant 0 : i32
    return %arg0, %c0_i32, %c0_i32_0 : i32, i32, i32
  }
  func.func @transform_3(%arg0: i32) -> (i32, i32, i32) {
    %c0_i32 = arith.constant 0 : i32
    %c0_i32_0 = arith.constant 0 : i32
    %c0_i32_1 = arith.constant 0 : i32
    return %arg0, %c0_i32, %c0_i32_0 : i32, i32, i32
  }
  func.func @transform_4(%arg0: i32) -> (i32, i32) {
    %c0_i32 = arith.constant 0 : i32
    %c0_i32_0 = arith.constant 0 : i32
    %c0_i32_1 = arith.constant 0 : i32
    return %c0_i32, %c0_i32_0 : i32, i32
  }
  func.func @transform_5(%arg0: i32) -> (i32, i32) {
    %c0_i32 = arith.constant 0 : i32
    %c0_i32_0 = arith.constant 0 : i32
    %c0_i32_1 = arith.constant 0 : i32
    return %c0_i32, %c0_i32_0 : i32, i32
  }
  func.func @transform_6(%arg0: i32) -> (i32, i32) {
    %c0_i32 = arith.constant 0 : i32
    %c0_i32_0 = arith.constant 0 : i32
    %c0_i32_1 = arith.constant 0 : i32
    return %c0_i32, %c0_i32_0 : i32, i32
  }
  func.func @transform_7(%arg0: i32) -> (i32, i32) {
    %c0_i32 = arith.constant 0 : i32
    %c0_i32_0 = arith.constant 0 : i32
    %c0_i32_1 = arith.constant 0 : i32
    return %c0_i32, %c0_i32_0 : i32, i32
  }
  func.func @transform_8(%arg0: i32) -> (i32, i32) {
    %c0_i32 = arith.constant 0 : i32
    %c0_i32_0 = arith.constant 0 : i32
    %c0_i32_1 = arith.constant 0 : i32
    return %c0_i32, %c0_i32_0 : i32, i32
  }
  func.func @transform_9(%arg0: i32) -> (i32, i32) {
    %c0_i32 = arith.constant 0 : i32
    %c0_i32_0 = arith.constant 0 : i32
    %c0_i32_1 = arith.constant 0 : i32
    return %c0_i32, %c0_i32_0 : i32, i32
  }
  func.func @transform_10(%arg0: i32) -> (i32, i32) {
    %c0_i32 = arith.constant 0 : i32
    %c0_i32_0 = arith.constant 0 : i32
    %c0_i32_1 = arith.constant 0 : i32
    return %c0_i32, %c0_i32_0 : i32, i32
  }
  func.func @transform_11(%arg0: i32) -> (i32, i32) {
    %c0_i32 = arith.constant 0 : i32
    %c0_i32_0 = arith.constant 0 : i32
    %c0_i32_1 = arith.constant 0 : i32
    return %c0_i32, %c0_i32_0 : i32, i32
  }
  func.func @transform_12(%arg0: i32) -> (i32, i32) {
    %c0_i32 = arith.constant 0 : i32
    %c0_i32_0 = arith.constant 0 : i32
    %c0_i32_1 = arith.constant 0 : i32
    return %c0_i32, %c0_i32_0 : i32, i32
  }
  func.func @transform_13(%arg0: i32) -> (i32, i32) {
    %c0_i32 = arith.constant 0 : i32
    %c0_i32_0 = arith.constant 0 : i32
    %c0_i32_1 = arith.constant 0 : i32
    return %c0_i32, %c0_i32_0 : i32, i32
  }
  func.func @transform_14(%arg0: i32) -> (i32, i32) {
    %c0_i32 = arith.constant 0 : i32
    %c0_i32_0 = arith.constant 0 : i32
    %c0_i32_1 = arith.constant 0 : i32
    return %c0_i32, %c0_i32_0 : i32, i32
  }
  func.func @transform_15(%arg0: i32) -> (i32, i32) {
    %c0_i32 = arith.constant 0 : i32
    %c0_i32_0 = arith.constant 0 : i32
    %c0_i32_1 = arith.constant 0 : i32
    return %c0_i32, %c0_i32_0 : i32, i32
  }
  func.func @transform_16(%arg0: i32) -> i32 {
    %c0_i32 = arith.constant 0 : i32
    %c0_i32_0 = arith.constant 0 : i32
    return %c0_i32 : i32
  }
  func.func @transform_17(%arg0: i32) -> (i32, i32) {
    %c0_i32 = arith.constant 0 : i32
    %c0_i32_0 = arith.constant 0 : i32
    %c0_i32_1 = arith.constant 0 : i32
    return %c0_i32, %c0_i32_0 : i32, i32
  }
  func.func @transform_18(%arg0: i32) -> (i32, i32, i32) {
    %c0_i32 = arith.constant 0 : i32
    %c0_i32_0 = arith.constant 0 : i32
    %c0_i32_1 = arith.constant 0 : i32
    return %arg0, %c0_i32, %c0_i32_0 : i32, i32, i32
  }
  func.func @transform_19(%arg0: i32) -> (i32, i32) {
    %c0_i32 = arith.constant 0 : i32
    %c0_i32_0 = arith.constant 0 : i32
    %c0_i32_1 = arith.constant 0 : i32
    return %c0_i32, %c0_i32_0 : i32, i32
  }
  func.func @transform_20(%arg0: i32) -> (i32, i32) {
    %c0_i32 = arith.constant 0 : i32
    %c0_i32_0 = arith.constant 0 : i32
    %c0_i32_1 = arith.constant 0 : i32
    return %c0_i32, %c0_i32_0 : i32, i32
  }
}

</mosaic_0001>

<llo_original>
// kernel: _moco_forward.2
$region0: #{_moco_forward.2}
  #allocation0 [shape = 'u32[]', space=smem, size = 0x4, offset = 0x4, fixed_abs, tag = 'smem constant byte address 0x4 - core index']
  #allocation1 [shape = 'u32[144,128]{1,0:T(1,128)}', space=vmem, size = 0x12000, scoped, tag = 'internal scratch']
  %s0 = inlined_call_operand.vmem [shape: f32[1,16], index: 0, kind: input, shape index: {}, may-alias: {0,13}]
  %s1 = inlined_call_operand.vmem [shape: f32[8,128], index: 1, kind: input, shape index: {}]
  %s2 = inlined_call_operand.vmem [shape: f32[1,128], index: 2, kind: input, shape index: {}]
  %s3 = inlined_call_operand.vmem [shape: f32[128,128], index: 3, kind: input, shape index: {}]
  %s4 = inlined_call_operand.vmem [shape: f32[1,128], index: 4, kind: input, shape index: {}]
  %s5 = inlined_call_operand.vmem [shape: f32[128,128], index: 5, kind: input, shape index: {}]
  %s6 = inlined_call_operand.vmem [shape: f32[1,128], index: 6, kind: input, shape index: {}]
  %s7 = inlined_call_operand.vmem [shape: f32[8,128], index: 7, kind: input, shape index: {}, may-alias: {7,14}]
  %s8 = inlined_call_operand.vmem [shape: f32[1,128], index: 8, kind: input, shape index: {}, may-alias: {8,15}]
  %s9 = inlined_call_operand.vmem [shape: f32[128,128], index: 9, kind: input, shape index: {}, may-alias: {9,16}]
  %s10 = inlined_call_operand.vmem [shape: f32[1,128], index: 10, kind: input, shape index: {}, may-alias: {10,17}]
  %s11 = inlined_call_operand.vmem [shape: f32[128,128], index: 11, kind: input, shape index: {}, may-alias: {11,18}]
  %s12 = inlined_call_operand.vmem [shape: f32[1,128], index: 12, kind: input, shape index: {}, may-alias: {12,19}]
  %s13 = inlined_call_operand.vmem [shape: f32[1,16], index: 13, kind: output, shape index: {0}, may-alias: {0,13}]
  %s14 = inlined_call_operand.vmem [shape: f32[8,128], index: 14, kind: output, shape index: {1}, may-alias: {7,14}]
  %s15 = inlined_call_operand.vmem [shape: f32[1,128], index: 15, kind: output, shape index: {2}, may-alias: {8,15}]
  %s16 = inlined_call_operand.vmem [shape: f32[128,128], index: 16, kind: output, shape index: {3}, may-alias: {9,16}]
  %s17 = inlined_call_operand.vmem [shape: f32[1,128], index: 17, kind: output, shape index: {4}, may-alias: {10,17}]
  %s18 = inlined_call_operand.vmem [shape: f32[128,128], index: 18, kind: output, shape index: {5}, may-alias: {11,18}]
  %s19 = inlined_call_operand.vmem [shape: f32[1,128], index: 19, kind: output, shape index: {6}, may-alias: {12,19}]
  %20 = xla_tuple %s13, %s14, %s15, %s16, %s17, %s18, %s19
  %s21 = sld [smem:[#allocation0]]
  $region110: #{_moco_forward.2} parent=0
    _
  %s23 = ssub.s32 1, %s21
  %s24 = scalar_select 0, %s23, %s21
  // Predicated region
  $region2: #{_moco_forward.2} parent=0 // pred_check
    _
  $region3: #{_moco_forward.2} parent=0 // pred_check_branch
    %26 = sbr.rel (0) target = $region5
  $region4: #{_moco_forward.2} parent=0 // pred_region
    _
  $region5: #{_moco_forward.2} parent=0 // pred_fallthru
    _
  // Predicated region
  $region6: #{_moco_forward.2} parent=0 // pred_check
    _
  $region7: #{_moco_forward.2} parent=0 // pred_check_branch
    %28 = sbr.rel (0) target = $region9
  $region8: #{_moco_forward.2} parent=0 // pred_region
    _
  $region9: #{_moco_forward.2} parent=0 // pred_fallthru
    _
  // Predicated region
  $region10: #{_moco_forward.2} parent=0 // pred_check
    _
  $region11: #{_moco_forward.2} parent=0 // pred_check_branch
    %30 = sbr.rel (0) target = $region13
  $region12: #{_moco_forward.2} parent=0 // pred_region
    _
  $region13: #{_moco_forward.2} parent=0 // pred_fallthru
    _
  // Predicated region
  $region14: #{_moco_forward.2} parent=0 // pred_check
    _
  $region15: #{_moco_forward.2} parent=0 // pred_check_branch
    %32 = sbr.rel (0) target = $region17
  $region16: #{_moco_forward.2} parent=0 // pred_region
    _
  $region17: #{_moco_forward.2} parent=0 // pred_fallthru
    _
  // Predicated region
  $region18: #{_moco_forward.2} parent=0 // pred_check
    _
  $region19: #{_moco_forward.2} parent=0 // pred_check_branch
    %34 = sbr.rel (0) target = $region21
  $region20: #{_moco_forward.2} parent=0 // pred_region
    _
  $region21: #{_moco_forward.2} parent=0 // pred_fallthru
    _
  // Predicated region
  $region22: #{_moco_forward.2} parent=0 // pred_check
    _
  $region23: #{_moco_forward.2} parent=0 // pred_check_branch
    %36 = sbr.rel (0) target = $region25
  $region24: #{_moco_forward.2} parent=0 // pred_region
    _
  $region25: #{_moco_forward.2} parent=0 // pred_fallthru
    _
  // Predicated region
  $region26: #{_moco_forward.2} parent=0 // pred_check
    _
  $region27: #{_moco_forward.2} parent=0 // pred_check_branch
    %38 = sbr.rel (0) target = $region29
  $region28: #{_moco_forward.2} parent=0 // pred_region
    _
  $region29: #{_moco_forward.2} parent=0 // pred_fallthru
    _
  // Predicated region
  $region30: #{_moco_forward.2} parent=0 // pred_check
    _
  $region31: #{_moco_forward.2} parent=0 // pred_check_branch
    %40 = sbr.rel (0) target = $region33
  $region32: #{_moco_forward.2} parent=0 // pred_region
    _
  $region33: #{_moco_forward.2} parent=0 // pred_fallthru
    _
  // Predicated region
  $region34: #{_moco_forward.2} parent=0 // pred_check
    _
  $region35: #{_moco_forward.2} parent=0 // pred_check_branch
    %42 = sbr.rel (0) target = $region37
  $region36: #{_moco_forward.2} parent=0 // pred_region
    _
  $region37: #{_moco_forward.2} parent=0 // pred_fallthru
    _
  // Predicated region
  $region38: #{_moco_forward.2} parent=0 // pred_check
    _
  $region39: #{_moco_forward.2} parent=0 // pred_check_branch
    %44 = sbr.rel (0) target = $region41
  $region40: #{_moco_forward.2} parent=0 // pred_region
    _
  $region41: #{_moco_forward.2} parent=0 // pred_fallthru
    _
  // Predicated region
  $region42: #{_moco_forward.2} parent=0 // pred_check
    _
  $region43: #{_moco_forward.2} parent=0 // pred_check_branch
    %46 = sbr.rel (0) target = $region45
  $region44: #{_moco_forward.2} parent=0 // pred_region
    _
  $region45: #{_moco_forward.2} parent=0 // pred_fallthru
    _
  // Predicated region
  $region46: #{_moco_forward.2} parent=0 // pred_check
    _
  $region47: #{_moco_forward.2} parent=0 // pred_check_branch
    %48 = sbr.rel (0) target = $region49
  $region48: #{_moco_forward.2} parent=0 // pred_region
    _
  $region49: #{_moco_forward.2} parent=0 // pred_fallthru
    _
  // Predicated region
  $region50: #{_moco_forward.2} parent=0 // pred_check
    _
  $region51: #{_moco_forward.2} parent=0 // pred_check_branch
    %50 = sbr.rel (0) target = $region53
  $region52: #{_moco_forward.2} parent=0 // pred_region
    _
  $region53: #{_moco_forward.2} parent=0 // pred_fallthru
    _
  %v51 = vld [vmem:[%s0] sm:$0x1]
  %vm52 = vcmask 122880
  %v53 = vsel %vm52, %v51, inf
  %54 = vmin.xlane.f32.xlu0 %v53
  %v55 = vpop.xlane.xlu0 %54
  %v56 = vsel %vm52, %v51, -inf
  %57 = vmax.xlane.f32.xlu0 %v56
  %v58 = vpop.xlane.xlu0 %57
  %v59 = vsub.f32 %v51, %v55
  %v60 = vmul.f32 %v59, 0.1
  %v61 = vrcp.pop %v58
  %v62 = vmul.f32 %v60, %v61
  %v63 = vadd.f32 %v62, 0.05
  %64 = vst.msk [vmem:[%s13] sm:$0x1] %vm52, %v63
  %v65 = vld [vmem:[%s7] sm:$0xff]
  %v66 = vmul.f32 %v65, 0.99
  %v67 = vld [vmem:[%s1] sm:$0xff]
  %v68 = vmul.f32 %v67, 0.01
  %v69 = vadd.f32 %v66, %v68
  %70 = vst [vmem:[%s14] sm:$0xff] %v69
  %v71 = vld [vmem:[%s8] sm:$0x1]
  %v72 = vmul.f32 %v71, 0.99
  %v73 = vld [vmem:[%s2] sm:$0x1]
  %v74 = vmul.f32 %v73, 0.01
  %v75 = vadd.f32 %v72, %v74
  %76 = vst [vmem:[%s15] sm:$0x1] %v75
  %v77 = vld [vmem:[%s9] sm:$0xff]
  %v78 = vld [vmem:[%s9 + $0x8] sm:$0xff]
  %v79 = vld [vmem:[%s9 + $0x10] sm:$0xff]
  %v80 = vld [vmem:[%s9 + $0x18] sm:$0xff]
  %v81 = vld [vmem:[%s9 + $0x20] sm:$0xff]
  %v82 = vld [vmem:[%s9 + $0x28] sm:$0xff]
  %v83 = vld [vmem:[%s9 + $0x30] sm:$0xff]
  %v84 = vld [vmem:[%s9 + $0x38] sm:$0xff]
  %v85 = vld [vmem:[%s9 + $0x40] sm:$0xff]
  %v86 = vld [vmem:[%s9 + $0x48] sm:$0xff]
  %v87 = vld [vmem:[%s9 + $0x50] sm:$0xff]
  %v88 = vld [vmem:[%s9 + $0x58] sm:$0xff]
  %v89 = vld [vmem:[%s9 + $0x60] sm:$0xff]
  %v90 = vld [vmem:[%s9 + $0x68] sm:$0xff]
  %v91 = vld [vmem:[%s9 + $0x70] sm:$0xff]
  %v92 = vld [vmem:[%s9 + $0x78] sm:$0xff]
  %v93 = vmul.f32 %v77, 0.99
  %v94 = vmul.f32 %v78, 0.99
  %v95 = vmul.f32 %v79, 0.99
  %v96 = vmul.f32 %v80, 0.99
  %v97 = vmul.f32 %v81, 0.99
  %v98 = vmul.f32 %v82, 0.99
  %v99 = vmul.f32 %v83, 0.99
  %v100 = vmul.f32 %v84, 0.99
  %v101 = vmul.f32 %v85, 0.99
  %v102 = vmul.f32 %v86, 0.99
  %v103 = vmul.f32 %v87, 0.99
  %v104 = vmul.f32 %v88, 0.99
  %v105 = vmul.f32 %v89, 0.99
  %v106 = vmul.f32 %v90, 0.99
  %v107 = vmul.f32 %v91, 0.99
  %v108 = vmul.f32 %v92, 0.99
  %v109 = vld [vmem:[%s3] sm:$0xff]
  %v110 = vld [vmem:[%s3 + $0x8] sm:$0xff]
  %v111 = vld [vmem:[%s3 + $0x10] sm:$0xff]
  %v112 = vld [vmem:[%s3 + $0x18] sm:$0xff]
  %v113 = vld [vmem:[%s3 + $0x20] sm:$0xff]
  %v114 = vld [vmem:[%s3 + $0x28] sm:$0xff]
  %v115 = vld [vmem:[%s3 + $0x30] sm:$0xff]
  %v116 = vld [vmem:[%s3 + $0x38] sm:$0xff]
  %v117 = vld [vmem:[%s3 + $0x40] sm:$0xff]
  %v118 = vld [vmem:[%s3 + $0x48] sm:$0xff]
  %v119 = vld [vmem:[%s3 + $0x50] sm:$0xff]
  %v120 = vld [vmem:[%s3 + $0x58] sm:$0xff]
  %v121 = vld [vmem:[%s3 + $0x60] sm:$0xff]
  %v122 = vld [vmem:[%s3 + $0x68] sm:$0xff]
  %v123 = vld [vmem:[%s3 + $0x70] sm:$0xff]
  %v124 = vld [vmem:[%s3 + $0x78] sm:$0xff]
  %v125 = vmul.f32 %v109, 0.01
  %v126 = vmul.f32 %v110, 0.01
  %v127 = vmul.f32 %v111, 0.01
  %v128 = vmul.f32 %v112, 0.01
  %v129 = vmul.f32 %v113, 0.01
  %v130 = vmul.f32 %v114, 0.01
  %v131 = vmul.f32 %v115, 0.01
  %v132 = vmul.f32 %v116, 0.01
  %v133 = vmul.f32 %v117, 0.01
  %v134 = vmul.f32 %v118, 0.01
  %v135 = vmul.f32 %v119, 0.01
  %v136 = vmul.f32 %v120, 0.01
  %v137 = vmul.f32 %v121, 0.01
  %v138 = vmul.f32 %v122, 0.01
  %v139 = vmul.f32 %v123, 0.01
  %v140 = vmul.f32 %v124, 0.01
  %v141 = vadd.f32 %v93, %v125
  %v142 = vadd.f32 %v94, %v126
  %v143 = vadd.f32 %v95, %v127
  %v144 = vadd.f32 %v96, %v128
  %v145 = vadd.f32 %v97, %v129
  %v146 = vadd.f32 %v98, %v130
  %v147 = vadd.f32 %v99, %v131
  %v148 = vadd.f32 %v100, %v132
  %v149 = vadd.f32 %v101, %v133
  %v150 = vadd.f32 %v102, %v134
  %v151 = vadd.f32 %v103, %v135
  %v152 = vadd.f32 %v104, %v136
  %v153 = vadd.f32 %v105, %v137
  %v154 = vadd.f32 %v106, %v138
  %v155 = vadd.f32 %v107, %v139
  %v156 = vadd.f32 %v108, %v140
  %157 = vst [vmem:[%s16] sm:$0xff] %v141
  %158 = vst [vmem:[%s16 + $0x8] sm:$0xff] %v142
  %159 = vst [vmem:[%s16 + $0x10] sm:$0xff] %v143
  %160 = vst [vmem:[%s16 + $0x18] sm:$0xff] %v144
  %161 = vst [vmem:[%s16 + $0x20] sm:$0xff] %v145
  %162 = vst [vmem:[%s16 + $0x28] sm:$0xff] %v146
  %163 = vst [vmem:[%s16 + $0x30] sm:$0xff] %v147
  %164 = vst [vmem:[%s16 + $0x38] sm:$0xff] %v148
  %165 = vst [vmem:[%s16 + $0x40] sm:$0xff] %v149
  %166 = vst [vmem:[%s16 + $0x48] sm:$0xff] %v150
  %167 = vst [vmem:[%s16 + $0x50] sm:$0xff] %v151
  %168 = vst [vmem:[%s16 + $0x58] sm:$0xff] %v152
  %169 = vst [vmem:[%s16 + $0x60] sm:$0xff] %v153
  %170 = vst [vmem:[%s16 + $0x68] sm:$0xff] %v154
  %171 = vst [vmem:[%s16 + $0x70] sm:$0xff] %v155
  %172 = vst [vmem:[%s16 + $0x78] sm:$0xff] %v156
  %v173 = vld [vmem:[%s10] sm:$0x1]
  %v174 = vmul.f32 %v173, 0.99
  %v175 = vld [vmem:[%s4] sm:$0x1]
  %v176 = vmul.f32 %v175, 0.01
  %v177 = vadd.f32 %v174, %v176
  %178 = vst [vmem:[%s17] sm:$0x1] %v177
  %v179 = vld [vmem:[%s11] sm:$0xff]
  %v180 = vld [vmem:[%s11 + $0x8] sm:$0xff]
  %v181 = vld [vmem:[%s11 + $0x10] sm:$0xff]
  %v182 = vld [vmem:[%s11 + $0x18] sm:$0xff]
  %v183 = vld [vmem:[%s11 + $0x20] sm:$0xff]
  %v184 = vld [vmem:[%s11 + $0x28] sm:$0xff]
  %v185 = vld [vmem:[%s11 + $0x30] sm:$0xff]
  %v186 = vld [vmem:[%s11 + $0x38] sm:$0xff]
  %v187 = vld [vmem:[%s11 + $0x40] sm:$0xff]
  %v188 = vld [vmem:[%s11 + $0x48] sm:$0xff]
  %v189 = vld [vmem:[%s11 + $0x50] sm:$0xff]
  %v190 = vld [vmem:[%s11 + $0x58] sm:$0xff]
  %v191 = vld [vmem:[%s11 + $0x60] sm:$0xff]
  %v192 = vld [vmem:[%s11 + $0x68] sm:$0xff]
  %v193 = vld [vmem:[%s11 + $0x70] sm:$0xff]
  %v194 = vld [vmem:[%s11 + $0x78] sm:$0xff]
  %v195 = vmul.f32 %v179, 0.99
  %v196 = vmul.f32 %v180, 0.99
  %v197 = vmul.f32 %v181, 0.99
  %v198 = vmul.f32 %v182, 0.99
  %v199 = vmul.f32 %v183, 0.99
  %v200 = vmul.f32 %v184, 0.99
  %v201 = vmul.f32 %v185, 0.99
  %v202 = vmul.f32 %v186, 0.99
  %v203 = vmul.f32 %v187, 0.99
  %v204 = vmul.f32 %v188, 0.99
  %v205 = vmul.f32 %v189, 0.99
  %v206 = vmul.f32 %v190, 0.99
  %v207 = vmul.f32 %v191, 0.99
  %v208 = vmul.f32 %v192, 0.99
  %v209 = vmul.f32 %v193, 0.99
  %v210 = vmul.f32 %v194, 0.99
  %v211 = vld [vmem:[%s5] sm:$0xff]
  %v212 = vld [vmem:[%s5 + $0x8] sm:$0xff]
  %v213 = vld [vmem:[%s5 + $0x10] sm:$0xff]
  %v214 = vld [vmem:[%s5 + $0x18] sm:$0xff]
  %v215 = vld [vmem:[%s5 + $0x20] sm:$0xff]
  %v216 = vld [vmem:[%s5 + $0x28] sm:$0xff]
  %v217 = vld [vmem:[%s5 + $0x30] sm:$0xff]
  %v218 = vld [vmem:[%s5 + $0x38] sm:$0xff]
  %v219 = vld [vmem:[%s5 + $0x40] sm:$0xff]
  %v220 = vld [vmem:[%s5 + $0x48] sm:$0xff]
  %v221 = vld [vmem:[%s5 + $0x50] sm:$0xff]
  %v222 = vld [vmem:[%s5 + $0x58] sm:$0xff]
  %v223 = vld [vmem:[%s5 + $0x60] sm:$0xff]
  %v224 = vld [vmem:[%s5 + $0x68] sm:$0xff]
  %v225 = vld [vmem:[%s5 + $0x70] sm:$0xff]
  %v226 = vld [vmem:[%s5 + $0x78] sm:$0xff]
  %v227 = vmul.f32 %v211, 0.01
  %v228 = vmul.f32 %v212, 0.01
  %v229 = vmul.f32 %v213, 0.01
  %v230 = vmul.f32 %v214, 0.01
  %v231 = vmul.f32 %v215, 0.01
  %v232 = vmul.f32 %v216, 0.01
  %v233 = vmul.f32 %v217, 0.01
  %v234 = vmul.f32 %v218, 0.01
  %v235 = vmul.f32 %v219, 0.01
  %v236 = vmul.f32 %v220, 0.01
  %v237 = vmul.f32 %v221, 0.01
  %v238 = vmul.f32 %v222, 0.01
  %v239 = vmul.f32 %v223, 0.01
  %v240 = vmul.f32 %v224, 0.01
  %v241 = vmul.f32 %v225, 0.01
  %v242 = vmul.f32 %v226, 0.01
  %v243 = vadd.f32 %v195, %v227
  %v244 = vadd.f32 %v196, %v228
  %v245 = vadd.f32 %v197, %v229
  %v246 = vadd.f32 %v198, %v230
  %v247 = vadd.f32 %v199, %v231
  %v248 = vadd.f32 %v200, %v232
  %v249 = vadd.f32 %v201, %v233
  %v250 = vadd.f32 %v202, %v234
  %v251 = vadd.f32 %v203, %v235
  %v252 = vadd.f32 %v204, %v236
  %v253 = vadd.f32 %v205, %v237
  %v254 = vadd.f32 %v206, %v238
  %v255 = vadd.f32 %v207, %v239
  %v256 = vadd.f32 %v208, %v240
  %v257 = vadd.f32 %v209, %v241
  %v258 = vadd.f32 %v210, %v242
  %259 = vst [vmem:[%s18] sm:$0xff] %v243
  %260 = vst [vmem:[%s18 + $0x8] sm:$0xff] %v244
  %261 = vst [vmem:[%s18 + $0x10] sm:$0xff] %v245
  %262 = vst [vmem:[%s18 + $0x18] sm:$0xff] %v246
  %263 = vst [vmem:[%s18 + $0x20] sm:$0xff] %v247
  %264 = vst [vmem:[%s18 + $0x28] sm:$0xff] %v248
  %265 = vst [vmem:[%s18 + $0x30] sm:$0xff] %v249
  %266 = vst [vmem:[%s18 + $0x38] sm:$0xff] %v250
  %267 = vst [vmem:[%s18 + $0x40] sm:$0xff] %v251
  %268 = vst [vmem:[%s18 + $0x48] sm:$0xff] %v252
  %269 = vst [vmem:[%s18 + $0x50] sm:$0xff] %v253
  %270 = vst [vmem:[%s18 + $0x58] sm:$0xff] %v254
  %271 = vst [vmem:[%s18 + $0x60] sm:$0xff] %v255
  %272 = vst [vmem:[%s18 + $0x68] sm:$0xff] %v256
  %273 = vst [vmem:[%s18 + $0x70] sm:$0xff] %v257
  %274 = vst [vmem:[%s18 + $0x78] sm:$0xff] %v258
  %v275 = vld [vmem:[%s12] sm:$0x1]
  %v276 = vmul.f32 %v275, 0.99
  %v277 = vld [vmem:[%s6] sm:$0x1]
  %v278 = vmul.f32 %v277, 0.01
  %v279 = vadd.f32 %v276, %v278
  %280 = vst [vmem:[%s19] sm:$0x1] %v279
  // Predicated region
  $region54: #{_moco_forward.2} parent=0 // pred_check
    _
  $region55: #{_moco_forward.2} parent=0 // pred_check_branch
    %282 = sbr.rel (0) target = $region57
  $region56: #{_moco_forward.2} parent=0 // pred_region
    _
  $region57: #{_moco_forward.2} parent=0 // pred_fallthru
    _
  // Predicated region
  $region58: #{_moco_forward.2} parent=0 // pred_check
    _
  $region59: #{_moco_forward.2} parent=0 // pred_check_branch
    %284 = sbr.rel (0) target = $region61
  $region60: #{_moco_forward.2} parent=0 // pred_region
    _
  $region61: #{_moco_forward.2} parent=0 // pred_fallthru
    _
  // Predicated region
  $region62: #{_moco_forward.2} parent=0 // pred_check
    _
  $region63: #{_moco_forward.2} parent=0 // pred_check_branch
    %286 = sbr.rel (0) target = $region65
  $region64: #{_moco_forward.2} parent=0 // pred_region
    _
  $region65: #{_moco_forward.2} parent=0 // pred_fallthru
    _
  // Predicated region
  $region66: #{_moco_forward.2} parent=0 // pred_check
    _
  $region67: #{_moco_forward.2} parent=0 // pred_check_branch
    %288 = sbr.rel (0) target = $region69
  $region68: #{_moco_forward.2} parent=0 // pred_region
    _
  $region69: #{_moco_forward.2} parent=0 // pred_fallthru
    _
  // Predicated region
  $region70: #{_moco_forward.2} parent=0 // pred_check
    _
  $region71: #{_moco_forward.2} parent=0 // pred_check_branch
    %290 = sbr.rel (0) target = $region73
  $region72: #{_moco_forward.2} parent=0 // pred_region
    _
  $region73: #{_moco_forward.2} parent=0 // pred_fallthru
    _
  // Predicated region
  $region74: #{_moco_forward.2} parent=0 // pred_check
    _
  $region75: #{_moco_forward.2} parent=0 // pred_check_branch
    %292 = sbr.rel (0) target = $region77
  $region76: #{_moco_forward.2} parent=0 // pred_region
    _
  $region77: #{_moco_forward.2} parent=0 // pred_fallthru
    _
  // Predicated region
  $region78: #{_moco_forward.2} parent=0 // pred_check
    _
  $region79: #{_moco_forward.2} parent=0 // pred_check_branch
    %294 = sbr.rel (0) target = $region81
  $region80: #{_moco_forward.2} parent=0 // pred_region
    _
  $region81: #{_moco_forward.2} parent=0 // pred_fallthru
    _
  // Predicated region
  $region82: #{_moco_forward.2} parent=0 // pred_check
    _
  $region83: #{_moco_forward.2} parent=0 // pred_check_branch
    %296 = sbr.rel (0) target = $region85
  $region84: #{_moco_forward.2} parent=0 // pred_region
    _
  $region85: #{_moco_forward.2} parent=0 // pred_fallthru
    _
  // Predicated region
  $region86: #{_moco_forward.2} parent=0 // pred_check
    _
  $region87: #{_moco_forward.2} parent=0 // pred_check_branch
    %298 = sbr.rel (0) target = $region89
  $region88: #{_moco_forward.2} parent=0 // pred_region
    _
  $region89: #{_moco_forward.2} parent=0 // pred_fallthru
    _
  // Predicated region
  $region90: #{_moco_forward.2} parent=0 // pred_check
    _
  $region91: #{_moco_forward.2} parent=0 // pred_check_branch
    %300 = sbr.rel (0) target = $region93
  $region92: #{_moco_forward.2} parent=0 // pred_region
    _
  $region93: #{_moco_forward.2} parent=0 // pred_fallthru
    _
  // Predicated region
  $region94: #{_moco_forward.2} parent=0 // pred_check
    _
  $region95: #{_moco_forward.2} parent=0 // pred_check_branch
    %302 = sbr.rel (0) target = $region97
  $region96: #{_moco_forward.2} parent=0 // pred_region
    _
  $region97: #{_moco_forward.2} parent=0 // pred_fallthru
    _
  // Predicated region
  $region98: #{_moco_forward.2} parent=0 // pred_check
    _
  $region99: #{_moco_forward.2} parent=0 // pred_check_branch
    %304 = sbr.rel (0) target = $region101
  $region100: #{_moco_forward.2} parent=0 // pred_region
    _
  $region101: #{_moco_forward.2} parent=0 // pred_fallthru
    _
  // Predicated region
  $region102: #{_moco_forward.2} parent=0 // pred_check
    _
  $region103: #{_moco_forward.2} parent=0 // pred_check_branch
    %306 = sbr.rel (0) target = $region105
  $region104: #{_moco_forward.2} parent=0 // pred_region
    _
  $region105: #{_moco_forward.2} parent=0 // pred_fallthru
    _
  // Predicated region
  $region106: #{_moco_forward.2} parent=0 // pred_check
    _
  $region107: #{_moco_forward.2} parent=0 // pred_check_branch
    %308 = sbr.rel (0) target = $region109
  $region108: #{_moco_forward.2} parent=0 // pred_region
    _
  $region109: #{_moco_forward.2} parent=0 // pred_fallthru
    _

// kernel: _moco_forward.3
$region0: #{_moco_forward.3}
  #allocation0 [shape = 'u32[]', space=smem, size = 0x4, offset = 0x4, fixed_abs, tag = 'smem constant byte address 0x4 - core index']
  #allocation1 [shape = 'u32[144,128]{1,0:T(1,128)}', space=vmem, size = 0x12000, scoped, tag = 'internal scratch']
  #allocation2 [shape = 's32[1]{0:T(128)S(6)}', space=smem, size = 0x200, scoped, tag = 'scoped memory for _moco_forward.3']
  %s0 = inlined_call_operand.vmem [shape: f32[8,128], index: 0, kind: input, shape index: {}]
  %s1 = inlined_call_operand.vmem [shape: f32[2,512,8], index: 1, kind: input, shape index: {}]
  %s2 = inlined_call_operand.vmem [shape: f32[2,8,8], index: 2, kind: input, shape index: {}]
  %s3 = inlined_call_operand.vmem [shape: f32[2,8,6], index: 3, kind: input, shape index: {}]
  %s4 = inlined_call_operand.vmem [shape: f32[8,128], index: 4, kind: input, shape index: {}]
  %s5 = inlined_call_operand.vmem [shape: f32[1,128], index: 5, kind: input, shape index: {}]
  %s6 = inlined_call_operand.vmem [shape: f32[128,128], index: 6, kind: input, shape index: {}]
  %s7 = inlined_call_operand.vmem [shape: f32[1,128], index: 7, kind: input, shape index: {}]
  %s8 = inlined_call_operand.vmem [shape: f32[128,128], index: 8, kind: input, shape index: {}]
  %s9 = inlined_call_operand.vmem [shape: f32[1,128], index: 9, kind: input, shape index: {}]
  %s10 = inlined_call_operand.vmem [shape: f32[8,512], index: 10, kind: input, shape index: {}]
  %s11 = inlined_call_operand.vmem [shape: f32[512,512], index: 11, kind: input, shape index: {}]
  %s12 = inlined_call_operand.vmem [shape: s32[8,1], index: 12, kind: input, shape index: {}]
  %s13 = inlined_call_operand.vmem [shape: s32[1,512], index: 13, kind: input, shape index: {}]
  %s14 = inlined_call_operand.vmem [shape: f32[512,128], index: 14, kind: input, shape index: {}, may-alias: {14,19}]
  %s15 = inlined_call_operand.vmem [shape: s32[1,512], index: 15, kind: input, shape index: {}, may-alias: {15,20}]
  %s16 = inlined_call_operand.<no memory space> [shape: s32[1], index: 16, kind: input, shape index: {}]
  %s17 = inlined_call_operand.hbm [shape: f32[1,1], index: 17, kind: output, shape index: {0}]
  %s18 = inlined_call_operand.vmem [shape: f32[2,8,128], index: 18, kind: output, shape index: {1}]
  %s19 = inlined_call_operand.vmem [shape: f32[512,128], index: 19, kind: output, shape index: {2}, may-alias: {14,19}]
  %s20 = inlined_call_operand.vmem [shape: s32[1,512], index: 20, kind: output, shape index: {3}, may-alias: {15,20}]
  %21 = xla_tuple %s17, %s18, %s19, %s20
  %s22 = sld [smem:[#allocation0]]
  $region129: #{_moco_forward.3} parent=0
    _
  %s24 = ssub.s32 1, %s22
  %s25 = scalar_select 0, %s24, %s22
  %26 = sst [smem:[#allocation2]] %s16
  $region1: #{_moco_forward.3} parent=0
    #allocation3 [shape = 'u8[512]{0}', space=vmem, size = 0x400, scoped, tag = 'output window, operand 0, single buffered']
    #allocation4 [shape = 's32[2]{0}', space=sflag, size = 0x8, scoped, tag = 'scoped memory for _moco_forward.3']
    %27 = vsyncpa [#allocation4], 0
    loop: start=0, step=1, limit=4
    $region2: #{_moco_forward.3} parent=1 // loop_pre_header
      _
    $region3: #{_moco_forward.3} parent=1 // loop_header
      %s29 = sphi 0, %s33
      %p30 = scmp.ge.s32.totalorder %s29, 4
      %s37 = sphi 0, %s37
      %s39 = sphi 0, %s37
      %s40 = sphi 0, %s39
      %s54 = sphi 0, %s40
      %s60 = sphi 0, %s62
      %s63 = sphi 0, %s60
      %s64 = sphi 0, %s63
      %s80 = sphi 0, %s64
      %s86 = sphi 0, %s88
      %s89 = sphi 0, %s86
      %s90 = sphi 0, %s89
      %s106 = sphi 0, %s90
      %s112 = sphi 0, %s114
      %s115 = sphi 0, %s112
      %s116 = sphi 0, %s115
      %s132 = sphi 0, %s116
      %s136 = sphi 0, %s136
      %s138 = sphi 0, %s136
      %s139 = sphi 0, %s138
      %s153 = sphi 0, %s139
      %s157 = sphi 0, %s157
      %s159 = sphi 0, %s157
      %s160 = sphi 0, %s159
      %s174 = sphi 0, %s160
      %s178 = sphi 0, %s178
      %s180 = sphi 0, %s178
      %s181 = sphi 0, %s180
      %s195 = sphi 0, %s181
      %s199 = sphi 0, %s199
      %s201 = sphi 0, %s199
      %s202 = sphi 0, %s201
      %s216 = sphi 0, %s202
      %s220 = sphi 0, %s220
      %s222 = sphi 0, %s220
      %s223 = sphi 0, %s222
      %s237 = sphi 0, %s223
      %s241 = sphi 0, %s241
      %s243 = sphi 0, %s241
      %s244 = sphi 0, %s243
      %s258 = sphi 0, %s244
      %s262 = sphi 0, %s262
      %s264 = sphi 0, %s262
      %s265 = sphi 0, %s264
      %s279 = sphi 0, %s265
      %s283 = sphi 0, %s283
      %s285 = sphi 0, %s283
      %s286 = sphi 0, %s285
      %s300 = sphi 0, %s286
      %s304 = sphi 0, %s304
      %s306 = sphi 0, %s304
      %s307 = sphi 0, %s306
      %s321 = sphi 0, %s307
      %s325 = sphi 0, %s325
      %s327 = sphi 0, %s325
      %s328 = sphi 0, %s327
      %s342 = sphi 0, %s328
      %s346 = sphi 0, %s346
      %s348 = sphi 0, %s346
      %s349 = sphi 0, %s348
      %s363 = sphi 0, %s349
      %s367 = sphi 0, %s367
      %s369 = sphi 0, %s367
      %s370 = sphi 0, %s369
      %s384 = sphi 0, %s370
      %s388 = sphi 0, %s388
      %s390 = sphi 0, %s388
      %s391 = sphi 0, %s390
      %s405 = sphi 0, %s391
      %s409 = sphi 0, %s409
      %s411 = sphi 0, %s409
      %s412 = sphi 0, %s411
      %s426 = sphi 0, %s412
      %s432 = sphi 0, %s434
      %s435 = sphi 0, %s432
      %s436 = sphi 0, %s435
      %s452 = sphi 0, %s436
      %s456 = sphi 0, %s456
      %s458 = sphi 0, %s456
      %s459 = sphi 0, %s458
      %s473 = sphi 0, %s459
      %s477 = sphi 0, %s477
      %s479 = sphi 0, %s477
      %s480 = sphi 0, %s479
      %s494 = sphi 0, %s480
    $region4: #{_moco_forward.3} parent=1 // loop_header_branch
      %32 = sbr.rel (%p30) target = $region8
    $region5: #{_moco_forward.3} parent=1 // loop_body
      %s34 = ssub.s32 %s29, 1
      %s35 = ssub.s32 %s29, 2
      %s36 = sadd.s32 %s29, 1
      %s38 = sadd.s32 %s37, 1
      %p41 = scmp.eq.s32.totalorder %s29, 1
      %p42 = scmp.ne.s32.totalorder %s37, %s39
      %p43 = scmp.eq.s32.totalorder %s29, 0
      %p44 = por %p42, %p43
      %p45 = scmp.ne.s32.totalorder %s37, %s39
      %p46 = scmp.eq.s32.totalorder %s34, 1
      %p47 = por %p45, %p46
      %p48 = scmp.ne.s32.totalorder %s39, %s40
      %p49 = scmp.eq.s32.totalorder %s34, 0
      %p50 = por %p48, %p49
      %p51 = scmp.ne.s32.totalorder %s39, %s40
      %p52 = scmp.eq.s32.totalorder %s35, 1
      %p53 = por %p51, %p52
      %p55 = scmp.ne.s32.totalorder %s40, %s54
      %p56 = scmp.eq.s32.totalorder %s35, 0
      %p57 = por %p55, %p56
      %s58 = ssub.s32 %s29, %s36
      %p59 = scmp.eq.s32.totalorder %s58, 0
      %s61 = sadd.s32 %s60, 1
      %s62 = scalar_select %p59, %s60, %s61
      %p65 = pneg %p59
      %p66 = scmp.eq.s32.totalorder %s29, 1
      %p67 = por %p65, %p66
      %p68 = scmp.ne.s32.totalorder %s60, %s63
      %p69 = scmp.eq.s32.totalorder %s29, 0
      %p70 = por %p68, %p69
      %p71 = scmp.ne.s32.totalorder %s60, %s63
      %p72 = scmp.eq.s32.totalorder %s34, 1
      %p73 = por %p71, %p72
      %p74 = scmp.ne.s32.totalorder %s63, %s64
      %p75 = scmp.eq.s32.totalorder %s34, 0
      %p76 = por %p74, %p75
      %p77 = scmp.ne.s32.totalorder %s63, %s64
      %p78 = scmp.eq.s32.totalorder %s35, 1
      %p79 = por %p77, %p78
      %p81 = scmp.ne.s32.totalorder %s64, %s80
      %p82 = scmp.eq.s32.totalorder %s35, 0
      %p83 = por %p81, %p82
      %s84 = ssub.s32 %s29, %s36
      %p85 = scmp.eq.s32.totalorder %s84, 0
      %s87 = sadd.s32 %s86, 1
      %s88 = scalar_select %p85, %s86, %s87
      %p91 = pneg %p85
      %p92 = scmp.eq.s32.totalorder %s29, 1
      %p93 = por %p91, %p92
      %p94 = scmp.ne.s32.totalorder %s86, %s89
      %p95 = scmp.eq.s32.totalorder %s29, 0
      %p96 = por %p94, %p95
      %p97 = scmp.ne.s32.totalorder %s86, %s89
      %p98 = scmp.eq.s32.totalorder %s34, 1
      %p99 = por %p97, %p98
      %p100 = scmp.ne.s32.totalorder %s89, %s90
      %p101 = scmp.eq.s32.totalorder %s34, 0
      %p102 = por %p100, %p101
      %p103 = scmp.ne.s32.totalorder %s89, %s90
      %p104 = scmp.eq.s32.totalorder %s35, 1
      %p105 = por %p103, %p104
      %p107 = scmp.ne.s32.totalorder %s90, %s106
      %p108 = scmp.eq.s32.totalorder %s35, 0
      %p109 = por %p107, %p108
      %s110 = ssub.s32 %s29, %s36
      %p111 = scmp.eq.s32.totalorder %s110, 0
      %s113 = sadd.s32 %s112, 1
      %s114 = scalar_select %p111, %s112, %s113
      %p117 = pneg %p111
      %p118 = scmp.eq.s32.totalorder %s29, 1
      %p119 = por %p117, %p118
      %p120 = scmp.ne.s32.totalorder %s112, %s115
      %p121 = scmp.eq.s32.totalorder %s29, 0
      %p122 = por %p120, %p121
      %p123 = scmp.ne.s32.totalorder %s112, %s115
      %p124 = scmp.eq.s32.totalorder %s34, 1
      %p125 = por %p123, %p124
      %p126 = scmp.ne.s32.totalorder %s115, %s116
      %p127 = scmp.eq.s32.totalorder %s34, 0
      %p128 = por %p126, %p127
      %p129 = scmp.ne.s32.totalorder %s115, %s116
      %p130 = scmp.eq.s32.totalorder %s35, 1
      %p131 = por %p129, %p130
      %p133 = scmp.ne.s32.totalorder %s116, %s132
      %p134 = scmp.eq.s32.totalorder %s35, 0
      %p135 = por %p133, %p134
      %s137 = sadd.s32 %s136, 1
      %p140 = scmp.eq.s32.totalorder %s29, 1
      %p141 = scmp.ne.s32.totalorder %s136, %s138
      %p142 = scmp.eq.s32.totalorder %s29, 0
      %p143 = por %p141, %p142
      %p144 = scmp.ne.s32.totalorder %s136, %s138
      %p145 = scmp.eq.s32.totalorder %s34, 1
      %p146 = por %p144, %p145
      %p147 = scmp.ne.s32.totalorder %s138, %s139
      %p148 = scmp.eq.s32.totalorder %s34, 0
      %p149 = por %p147, %p148
      %p150 = scmp.ne.s32.totalorder %s138, %s139
      %p151 = scmp.eq.s32.totalorder %s35, 1
      %p152 = por %p150, %p151
      %p154 = scmp.ne.s32.totalorder %s139, %s153
      %p155 = scmp.eq.s32.totalorder %s35, 0
      %p156 = por %p154, %p155
      %s158 = sadd.s32 %s157, 1
      %p161 = scmp.eq.s32.totalorder %s29, 1
      %p162 = scmp.ne.s32.totalorder %s157, %s159
      %p163 = scmp.eq.s32.totalorder %s29, 0
      %p164 = por %p162, %p163
      %p165 = scmp.ne.s32.totalorder %s157, %s159
      %p166 = scmp.eq.s32.totalorder %s34, 1
      %p167 = por %p165, %p166
      %p168 = scmp.ne.s32.totalorder %s159, %s160
      %p169 = scmp.eq.s32.totalorder %s34, 0
      %p170 = por %p168, %p169
      %p171 = scmp.ne.s32.totalorder %s159, %s160
      %p172 = scmp.eq.s32.totalorder %s35, 1
      %p173 = por %p171, %p172
      %p175 = scmp.ne.s32.totalorder %s160, %s174
      %p176 = scmp.eq.s32.totalorder %s35, 0
      %p177 = por %p175, %p176
      %s179 = sadd.s32 %s178, 1
      %p182 = scmp.eq.s32.totalorder %s29, 1
      %p183 = scmp.ne.s32.totalorder %s178, %s180
      %p184 = scmp.eq.s32.totalorder %s29, 0
      %p185 = por %p183, %p184
      %p186 = scmp.ne.s32.totalorder %s178, %s180
      %p187 = scmp.eq.s32.totalorder %s34, 1
      %p188 = por %p186, %p187
      %p189 = scmp.ne.s32.totalorder %s180, %s181
      %p190 = scmp.eq.s32.totalorder %s34, 0
      %p191 = por %p189, %p190
      %p192 = scmp.ne.s32.totalorder %s180, %s181
      %p193 = scmp.eq.s32.totalorder %s35, 1
      %p194 = por %p192, %p193
      %p196 = scmp.ne.s32.totalorder %s181, %s195
      %p197 = scmp.eq.s32.totalorder %s35, 0
      %p198 = por %p196, %p197
      %s200 = sadd.s32 %s199, 1
      %p203 = scmp.eq.s32.totalorder %s29, 1
      %p204 = scmp.ne.s32.totalorder %s199, %s201
      %p205 = scmp.eq.s32.totalorder %s29, 0
      %p206 = por %p204, %p205
      %p207 = scmp.ne.s32.totalorder %s199, %s201
      %p208 = scmp.eq.s32.totalorder %s34, 1
      %p209 = por %p207, %p208
      %p210 = scmp.ne.s32.totalorder %s201, %s202
      %p211 = scmp.eq.s32.totalorder %s34, 0
      %p212 = por %p210, %p211
      %p213 = scmp.ne.s32.totalorder %s201, %s202
      %p214 = scmp.eq.s32.totalorder %s35, 1
      %p215 = por %p213, %p214
      %p217 = scmp.ne.s32.totalorder %s202, %s216
      %p218 = scmp.eq.s32.totalorder %s35, 0
      %p219 = por %p217, %p218
      %s221 = sadd.s32 %s220, 1
      %p224 = scmp.eq.s32.totalorder %s29, 1
      %p225 = scmp.ne.s32.totalorder %s220, %s222
      %p226 = scmp.eq.s32.totalorder %s29, 0
      %p227 = por %p225, %p226
      %p228 = scmp.ne.s32.totalorder %s220, %s222
      %p229 = scmp.eq.s32.totalorder %s34, 1
      %p230 = por %p228, %p229
      %p231 = scmp.ne.s32.totalorder %s222, %s223
      %p232 = scmp.eq.s32.totalorder %s34, 0
      %p233 = por %p231, %p232
      %p234 = scmp.ne.s32.totalorder %s222, %s223
      %p235 = scmp.eq.s32.totalorder %s35, 1
      %p236 = por %p234, %p235
      %p238 = scmp.ne.s32.totalorder %s223, %s237
      %p239 = scmp.eq.s32.totalorder %s35, 0
      %p240 = por %p238, %p239
      %s242 = sadd.s32 %s241, 1
      %p245 = scmp.eq.s32.totalorder %s29, 1
      %p246 = scmp.ne.s32.totalorder %s241, %s243
      %p247 = scmp.eq.s32.totalorder %s29, 0
      %p248 = por %p246, %p247
      %p249 = scmp.ne.s32.totalorder %s241, %s243
      %p250 = scmp.eq.s32.totalorder %s34, 1
      %p251 = por %p249, %p250
      %p252 = scmp.ne.s32.totalorder %s243, %s244
      %p253 = scmp.eq.s32.totalorder %s34, 0
      %p254 = por %p252, %p253
      %p255 = scmp.ne.s32.totalorder %s243, %s244
      %p256 = scmp.eq.s32.totalorder %s35, 1
      %p257 = por %p255, %p256
      %p259 = scmp.ne.s32.totalorder %s244, %s258
      %p260 = scmp.eq.s32.totalorder %s35, 0
      %p261 = por %p259, %p260
      %s263 = sadd.s32 %s262, 1
      %p266 = scmp.eq.s32.totalorder %s29, 1
      %p267 = scmp.ne.s32.totalorder %s262, %s264
      %p268 = scmp.eq.s32.totalorder %s29, 0
      %p269 = por %p267, %p268
      %p270 = scmp.ne.s32.totalorder %s262, %s264
      %p271 = scmp.eq.s32.totalorder %s34, 1
      %p272 = por %p270, %p271
      %p273 = scmp.ne.s32.totalorder %s264, %s265
      %p274 = scmp.eq.s32.totalorder %s34, 0
      %p275 = por %p273, %p274
      %p276 = scmp.ne.s32.totalorder %s264, %s265
      %p277 = scmp.eq.s32.totalorder %s35, 1
      %p278 = por %p276, %p277
      %p280 = scmp.ne.s32.totalorder %s265, %s279
      %p281 = scmp.eq.s32.totalorder %s35, 0
      %p282 = por %p280, %p281
      %s284 = sadd.s32 %s283, 1
      %p287 = scmp.eq.s32.totalorder %s29, 1
      %p288 = scmp.ne.s32.totalorder %s283, %s285
      %p289 = scmp.eq.s32.totalorder %s29, 0
      %p290 = por %p288, %p289
      %p291 = scmp.ne.s32.totalorder %s283, %s285
      %p292 = scmp.eq.s32.totalorder %s34, 1
      %p293 = por %p291, %p292
      %p294 = scmp.ne.s32.totalorder %s285, %s286
      %p295 = scmp.eq.s32.totalorder %s34, 0
      %p296 = por %p294, %p295
      %p297 = scmp.ne.s32.totalorder %s285, %s286
      %p298 = scmp.eq.s32.totalorder %s35, 1
      %p299 = por %p297, %p298
      %p301 = scmp.ne.s32.totalorder %s286, %s300
      %p302 = scmp.eq.s32.totalorder %s35, 0
      %p303 = por %p301, %p302
      %s305 = sadd.s32 %s304, 1
      %p308 = scmp.eq.s32.totalorder %s29, 1
      %p309 = scmp.ne.s32.totalorder %s304, %s306
      %p310 = scmp.eq.s32.totalorder %s29, 0
      %p311 = por %p309, %p310
      %p312 = scmp.ne.s32.totalorder %s304, %s306
      %p313 = scmp.eq.s32.totalorder %s34, 1
      %p314 = por %p312, %p313
      %p315 = scmp.ne.s32.totalorder %s306, %s307
      %p316 = scmp.eq.s32.totalorder %s34, 0
      %p317 = por %p315, %p316
      %p318 = scmp.ne.s32.totalorder %s306, %s307
      %p319 = scmp.eq.s32.totalorder %s35, 1
      %p320 = por %p318, %p319
      %p322 = scmp.ne.s32.totalorder %s307, %s321
      %p323 = scmp.eq.s32.totalorder %s35, 0
      %p324 = por %p322, %p323
      %s326 = sadd.s32 %s325, 1
      %p329 = scmp.eq.s32.totalorder %s29, 1
      %p330 = scmp.ne.s32.totalorder %s325, %s327
      %p331 = scmp.eq.s32.totalorder %s29, 0
      %p332 = por %p330, %p331
      %p333 = scmp.ne.s32.totalorder %s325, %s327
      %p334 = scmp.eq.s32.totalorder %s34, 1
      %p335 = por %p333, %p334
      %p336 = scmp.ne.s32.totalorder %s327, %s328
      %p337 = scmp.eq.s32.totalorder %s34, 0
      %p338 = por %p336, %p337
      %p339 = scmp.ne.s32.totalorder %s327, %s328
      %p340 = scmp.eq.s32.totalorder %s35, 1
      %p341 = por %p339, %p340
      %p343 = scmp.ne.s32.totalorder %s328, %s342
      %p344 = scmp.eq.s32.totalorder %s35, 0
      %p345 = por %p343, %p344
      %s347 = sadd.s32 %s346, 1
      %p350 = scmp.eq.s32.totalorder %s29, 1
      %p351 = scmp.ne.s32.totalorder %s346, %s348
      %p352 = scmp.eq.s32.totalorder %s29, 0
      %p353 = por %p351, %p352
      %p354 = scmp.ne.s32.totalorder %s346, %s348
      %p355 = scmp.eq.s32.totalorder %s34, 1
      %p356 = por %p354, %p355
      %p357 = scmp.ne.s32.totalorder %s348, %s349
      %p358 = scmp.eq.s32.totalorder %s34, 0
      %p359 = por %p357, %p358
      %p360 = scmp.ne.s32.totalorder %s348, %s349
      %p361 = scmp.eq.s32.totalorder %s35, 1
      %p362 = por %p360, %p361
      %p364 = scmp.ne.s32.totalorder %s349, %s363
      %p365 = scmp.eq.s32.totalorder %s35, 0
      %p366 = por %p364, %p365
      %s368 = sadd.s32 %s367, 1
      %p371 = scmp.eq.s32.totalorder %s29, 1
      %p372 = scmp.ne.s32.totalorder %s367, %s369
      %p373 = scmp.eq.s32.totalorder %s29, 0
      %p374 = por %p372, %p373
      %p375 = scmp.ne.s32.totalorder %s367, %s369
      %p376 = scmp.eq.s32.totalorder %s34, 1
      %p377 = por %p375, %p376
      %p378 = scmp.ne.s32.totalorder %s369, %s370
      %p379 = scmp.eq.s32.totalorder %s34, 0
      %p380 = por %p378, %p379
      %p381 = scmp.ne.s32.totalorder %s369, %s370
      %p382 = scmp.eq.s32.totalorder %s35, 1
      %p383 = por %p381, %p382
      %p385 = scmp.ne.s32.totalorder %s370, %s384
      %p386 = scmp.eq.s32.totalorder %s35, 0
      %p387 = por %p385, %p386
      %s389 = sadd.s32 %s388, 1
      %p392 = scmp.eq.s32.totalorder %s29, 1
      %p393 = scmp.ne.s32.totalorder %s388, %s390
      %p394 = scmp.eq.s32.totalorder %s29, 0
      %p395 = por %p393, %p394
      %p396 = scmp.ne.s32.totalorder %s388, %s390
      %p397 = scmp.eq.s32.totalorder %s34, 1
      %p398 = por %p396, %p397
      %p399 = scmp.ne.s32.totalorder %s390, %s391
      %p400 = scmp.eq.s32.totalorder %s34, 0
      %p401 = por %p399, %p400
      %p402 = scmp.ne.s32.totalorder %s390, %s391
      %p403 = scmp.eq.s32.totalorder %s35, 1
      %p404 = por %p402, %p403
      %p406 = scmp.ne.s32.totalorder %s391, %s405
      %p407 = scmp.eq.s32.totalorder %s35, 0
      %p408 = por %p406, %p407
      %s410 = sadd.s32 %s409, 1
      %p413 = scmp.eq.s32.totalorder %s29, 1
      %p414 = scmp.ne.s32.totalorder %s409, %s411
      %p415 = scmp.eq.s32.totalorder %s29, 0
      %p416 = por %p414, %p415
      %p417 = scmp.ne.s32.totalorder %s409, %s411
      %p418 = scmp.eq.s32.totalorder %s34, 1
      %p419 = por %p417, %p418
      %p420 = scmp.ne.s32.totalorder %s411, %s412
      %p421 = scmp.eq.s32.totalorder %s34, 0
      %p422 = por %p420, %p421
      %p423 = scmp.ne.s32.totalorder %s411, %s412
      %p424 = scmp.eq.s32.totalorder %s35, 1
      %p425 = por %p423, %p424
      %p427 = scmp.ne.s32.totalorder %s412, %s426
      %p428 = scmp.eq.s32.totalorder %s35, 0
      %p429 = por %p427, %p428
      %s430 = ssub.s32 %s29, %s36
      %p431 = scmp.eq.s32.totalorder %s430, 0
      %s433 = sadd.s32 %s432, 1
      %s434 = scalar_select %p431, %s432, %s433
      %p437 = pneg %p431
      %p438 = scmp.eq.s32.totalorder %s29, 1
      %p439 = por %p437, %p438
      %p440 = scmp.ne.s32.totalorder %s432, %s435
      %p441 = scmp.eq.s32.totalorder %s29, 0
      %p442 = por %p440, %p441
      %p443 = scmp.ne.s32.totalorder %s432, %s435
      %p444 = scmp.eq.s32.totalorder %s34, 1
      %p445 = por %p443, %p444
      %p446 = scmp.ne.s32.totalorder %s435, %s436
      %p447 = scmp.eq.s32.totalorder %s34, 0
      %p448 = por %p446, %p447
      %p449 = scmp.ne.s32.totalorder %s435, %s436
      %p450 = scmp.eq.s32.totalorder %s35, 1
      %p451 = por %p449, %p450
      %p453 = scmp.ne.s32.totalorder %s436, %s452
      %p454 = scmp.eq.s32.totalorder %s35, 0
      %p455 = por %p453, %p454
      %s457 = sadd.s32 %s456, 1
      %p460 = scmp.eq.s32.totalorder %s29, 1
      %p461 = scmp.ne.s32.totalorder %s456, %s458
      %p462 = scmp.eq.s32.totalorder %s29, 0
      %p463 = por %p461, %p462
      %p464 = scmp.ne.s32.totalorder %s456, %s458
      %p465 = scmp.eq.s32.totalorder %s34, 1
      %p466 = por %p464, %p465
      %p467 = scmp.ne.s32.totalorder %s458, %s459
      %p468 = scmp.eq.s32.totalorder %s34, 0
      %p469 = por %p467, %p468
      %p470 = scmp.ne.s32.totalorder %s458, %s459
      %p471 = scmp.eq.s32.totalorder %s35, 1
      %p472 = por %p470, %p471
      %p474 = scmp.ne.s32.totalorder %s459, %s473
      %p475 = scmp.eq.s32.totalorder %s35, 0
      %p476 = por %p474, %p475
      %s478 = sadd.s32 %s477, 1
      %p481 = scmp.eq.s32.totalorder %s29, 1
      %p482 = scmp.ne.s32.totalorder %s477, %s479
      %p483 = scmp.eq.s32.totalorder %s29, 0
      %p484 = por %p482, %p483
      %p485 = scmp.ne.s32.totalorder %s477, %s479
      %p486 = scmp.eq.s32.totalorder %s34, 1
      %p487 = por %p485, %p486
      %p488 = scmp.ne.s32.totalorder %s479, %s480
      %p489 = scmp.eq.s32.totalorder %s34, 0
      %p490 = por %p488, %p489
      %p491 = scmp.ne.s32.totalorder %s479, %s480
      %p492 = scmp.eq.s32.totalorder %s35, 1
      %p493 = por %p491, %p492
      %p495 = scmp.ne.s32.totalorder %s480, %s494
      %p496 = scmp.eq.s32.totalorder %s35, 0
      %p497 = por %p495, %p496
      %p498 = scmp.le.s32.totalorder 1, %s29
      %p499 = scmp.lt.s32.totalorder %s29, 3
      %p500 = pnand %p498, %p499
      %p501 = pneg %p500
      // Predicated region
      $region9: #{_moco_forward.3} parent=5 // pred_check
        _
      $region10: #{_moco_forward.3} parent=5 // pred_check_branch
        %503 = sbr.rel (%p500) target = $region12
      $region11: #{_moco_forward.3} parent=5 // pred_region
        %s504 = ssub.s32 %s29, 1
        // Predicated region
        $region13: #{_moco_forward.3} parent=11 // pred_check
          %p505 = pneg %p50
        $region14: #{_moco_forward.3} parent=11 // pred_check_branch
          %507 = sbr.rel (%p505) target = $region16
        $region15: #{_moco_forward.3} parent=11 // pred_region
          _
        $region16: #{_moco_forward.3} parent=11 // pred_fallthru
          _
        // Predicated region
        $region17: #{_moco_forward.3} parent=11 // pred_check
          %p508 = pneg %p149
        $region18: #{_moco_forward.3} parent=11 // pred_check_branch
          %510 = sbr.rel (%p508) target = $region20
        $region19: #{_moco_forward.3} parent=11 // pred_region
          _
        $region20: #{_moco_forward.3} parent=11 // pred_fallthru
          _
        // Predicated region
        $region21: #{_moco_forward.3} parent=11 // pred_check
          %p511 = pneg %p170
        $region22: #{_moco_forward.3} parent=11 // pred_check_branch
          %513 = sbr.rel (%p511) target = $region24
        $region23: #{_moco_forward.3} parent=11 // pred_region
          _
        $region24: #{_moco_forward.3} parent=11 // pred_fallthru
          _
        // Predicated region
        $region25: #{_moco_forward.3} parent=11 // pred_check
          %p514 = pneg %p191
        $region26: #{_moco_forward.3} parent=11 // pred_check_branch
          %516 = sbr.rel (%p514) target = $region28
        $region27: #{_moco_forward.3} parent=11 // pred_region
          _
        $region28: #{_moco_forward.3} parent=11 // pred_fallthru
          _
        // Predicated region
        $region29: #{_moco_forward.3} parent=11 // pred_check
          %p517 = pneg %p212
        $region30: #{_moco_forward.3} parent=11 // pred_check_branch
          %519 = sbr.rel (%p517) target = $region32
        $region31: #{_moco_forward.3} parent=11 // pred_region
          _
        $region32: #{_moco_forward.3} parent=11 // pred_fallthru
          _
        // Predicated region
        $region33: #{_moco_forward.3} parent=11 // pred_check
          %p520 = pneg %p233
        $region34: #{_moco_forward.3} parent=11 // pred_check_branch
          %522 = sbr.rel (%p520) target = $region36
        $region35: #{_moco_forward.3} parent=11 // pred_region
          _
        $region36: #{_moco_forward.3} parent=11 // pred_fallthru
          _
        // Predicated region
        $region37: #{_moco_forward.3} parent=11 // pred_check
          %p523 = pneg %p254
        $region38: #{_moco_forward.3} parent=11 // pred_check_branch
          %525 = sbr.rel (%p523) target = $region40
        $region39: #{_moco_forward.3} parent=11 // pred_region
          _
        $region40: #{_moco_forward.3} parent=11 // pred_fallthru
          _
        // Predicated region
        $region41: #{_moco_forward.3} parent=11 // pred_check
          %p526 = pneg %p275
        $region42: #{_moco_forward.3} parent=11 // pred_check_branch
          %528 = sbr.rel (%p526) target = $region44
        $region43: #{_moco_forward.3} parent=11 // pred_region
          _
        $region44: #{_moco_forward.3} parent=11 // pred_fallthru
          _
        // Predicated region
        $region45: #{_moco_forward.3} parent=11 // pred_check
          %p529 = pneg %p296
        $region46: #{_moco_forward.3} parent=11 // pred_check_branch
          %531 = sbr.rel (%p529) target = $region48
        $region47: #{_moco_forward.3} parent=11 // pred_region
          _
        $region48: #{_moco_forward.3} parent=11 // pred_fallthru
          _
        // Predicated region
        $region49: #{_moco_forward.3} parent=11 // pred_check
          %p532 = pneg %p317
        $region50: #{_moco_forward.3} parent=11 // pred_check_branch
          %534 = sbr.rel (%p532) target = $region52
        $region51: #{_moco_forward.3} parent=11 // pred_region
          _
        $region52: #{_moco_forward.3} parent=11 // pred_fallthru
          _
        // Predicated region
        $region53: #{_moco_forward.3} parent=11 // pred_check
          %p535 = pneg %p338
        $region54: #{_moco_forward.3} parent=11 // pred_check_branch
          %537 = sbr.rel (%p535) target = $region56
        $region55: #{_moco_forward.3} parent=11 // pred_region
          _
        $region56: #{_moco_forward.3} parent=11 // pred_fallthru
          _
        // Predicated region
        $region57: #{_moco_forward.3} parent=11 // pred_check
          %p538 = pneg %p359
        $region58: #{_moco_forward.3} parent=11 // pred_check_branch
          %540 = sbr.rel (%p538) target = $region60
        $region59: #{_moco_forward.3} parent=11 // pred_region
          _
        $region60: #{_moco_forward.3} parent=11 // pred_fallthru
          _
        // Predicated region
        $region61: #{_moco_forward.3} parent=11 // pred_check
          %p541 = pneg %p380
        $region62: #{_moco_forward.3} parent=11 // pred_check_branch
          %543 = sbr.rel (%p541) target = $region64
        $region63: #{_moco_forward.3} parent=11 // pred_region
          _
        $region64: #{_moco_forward.3} parent=11 // pred_fallthru
          _
        // Predicated region
        $region65: #{_moco_forward.3} parent=11 // pred_check
          %p544 = pneg %p401
        $region66: #{_moco_forward.3} parent=11 // pred_check_branch
          %546 = sbr.rel (%p544) target = $region68
        $region67: #{_moco_forward.3} parent=11 // pred_region
          _
        $region68: #{_moco_forward.3} parent=11 // pred_fallthru
          _
      $region12: #{_moco_forward.3} parent=5 // pred_fallthru
        _
      %p547 = scmp.lt.s32.totalorder %s29, 2
      // Predicated region
      $region69: #{_moco_forward.3} parent=5 // pred_check
        %p548 = pneg %p547
      $region70: #{_moco_forward.3} parent=5 // pred_check_branch
        %550 = sbr.rel (%p548) target = $region72
      $region71: #{_moco_forward.3} parent=5 // pred_region
        // Predicated region
        $region73: #{_moco_forward.3} parent=71 // pred_check
          %p551 = pneg %p70
        $region74: #{_moco_forward.3} parent=71 // pred_check_branch
          %553 = sbr.rel (%p551) target = $region76
        $region75: #{_moco_forward.3} parent=71 // pred_region
          %p554 = scmp.lt.s32.totalorder %s29, 1
          %s555 = scalar_select %p554, %s29, 1
          %s556 = smul.addr %s555, 64
          %s557 = smul.addr %s556, 8
          %s558 = scalar_lea.vmem %s1, %s557
        $region76: #{_moco_forward.3} parent=71 // pred_fallthru
          _
        // Predicated region
        $region77: #{_moco_forward.3} parent=71 // pred_check
          %p559 = pneg %p96
        $region78: #{_moco_forward.3} parent=71 // pred_check_branch
          %561 = sbr.rel (%p559) target = $region80
        $region79: #{_moco_forward.3} parent=71 // pred_region
          %p562 = scmp.lt.s32.totalorder %s29, 1
          %s563 = scalar_select %p562, %s29, 1
          %s564 = smul.addr %s563, 8
          %s565 = scalar_lea.vmem %s2, %s564
        $region80: #{_moco_forward.3} parent=71 // pred_fallthru
          _
        // Predicated region
        $region81: #{_moco_forward.3} parent=71 // pred_check
          %p566 = pneg %p122
        $region82: #{_moco_forward.3} parent=71 // pred_check_branch
          %568 = sbr.rel (%p566) target = $region84
        $region83: #{_moco_forward.3} parent=71 // pred_region
          %p569 = scmp.lt.s32.totalorder %s29, 1
          %s570 = scalar_select %p569, %s29, 1
          %s571 = smul.addr %s570, 8
          %s572 = scalar_lea.vmem %s3, %s571
        $region84: #{_moco_forward.3} parent=71 // pred_fallthru
          _
      $region72: #{_moco_forward.3} parent=5 // pred_fallthru
        _
      %p573 = scmp.le.s32.totalorder 1, %s29
      %p574 = scmp.lt.s32.totalorder %s29, 3
      %p575 = pnand %p573, %p574
      %p576 = pneg %p575
      // Predicated region
      $region85: #{_moco_forward.3} parent=5 // pred_check
        _
      $region86: #{_moco_forward.3} parent=5 // pred_check_branch
        %578 = sbr.rel (%p575) target = $region88
      $region87: #{_moco_forward.3} parent=5 // pred_region
        %s579 = ssub.s32 %s29, 1
        %p580 = pneg %p50
        %p581 = pneg %p47
        %p582 = scmp.lt.s32.totalorder %s34, 1
        %s583 = scalar_select %p582, %s34, 1
        %s584 = smul.addr %s583, 64
        %s585 = smul.addr %s584, 8
        %s586 = scalar_lea.vmem %s1, %s585
        %p587 = pneg %p76
        %p588 = pneg %p73
        %p589 = scmp.lt.s32.totalorder %s34, 1
        %s590 = scalar_select %p589, %s34, 1
        %s591 = smul.addr %s590, 8
        %s592 = scalar_lea.vmem %s2, %s591
        %p593 = pneg %p102
        %p594 = pneg %p99
        %p595 = scmp.lt.s32.totalorder %s34, 1
        %s596 = scalar_select %p595, %s34, 1
        %s597 = smul.addr %s596, 8
        %s598 = scalar_lea.vmem %s3, %s597
        %p599 = pneg %p128
        %p600 = pneg %p125
        %p601 = pneg %p149
        %p602 = pneg %p146
        %p603 = pneg %p170
        %p604 = pneg %p167
        %p605 = pneg %p191
        %p606 = pneg %p188
        %p607 = pneg %p212
        %p608 = pneg %p209
        %p609 = pneg %p233
        %p610 = pneg %p230
        %p611 = pneg %p254
        %p612 = pneg %p251
        %p613 = pneg %p275
        %p614 = pneg %p272
        %p615 = pneg %p296
        %p616 = pneg %p293
        %p617 = pneg %p317
        %p618 = pneg %p314
        %p619 = pneg %p338
        %p620 = pneg %p335
        %p621 = pneg %p359
        %p622 = pneg %p356
        %p623 = pneg %p380
        %p624 = pneg %p377
        %p625 = pneg %p401
        %p626 = pneg %p398
        %p627 = pneg %p422
        %p628 = pneg %p419
        %p629 = pneg %p448
        %p630 = pneg %p445
        %p631 = scmp.lt.s32.totalorder %s34, 1
        %s632 = scalar_select %p631, %s34, 1
        %s633 = smul.addr %s632, 8
        %s634 = scalar_lea.vmem %s18, %s633
        %p635 = pneg %p469
        %p636 = pneg %p466
        %p637 = pneg %p490
        %p638 = pneg %p487
        %p639 = scmp.lt.s32.totalorder %s34, 1
        %s640 = scalar_select %p639, %s34, 1
        %s641 = smul.addr %s640, 64
        %s642 = smul.addr %s641, 8
        %s643 = scalar_lea.vmem %s1, %s642
        %p644 = scmp.lt.s32.totalorder %s34, 1
        %s645 = scalar_select %p644, %s34, 1
        %s646 = smul.addr %s645, 8
        %s647 = scalar_lea.vmem %s2, %s646
        %p648 = scmp.lt.s32.totalorder %s34, 1
        %s649 = scalar_select %p648, %s34, 1
        %s650 = smul.addr %s649, 8
        %s651 = scalar_lea.vmem %s3, %s650
        %p652 = scmp.lt.s32.totalorder %s34, 1
        %s653 = scalar_select %p652, %s34, 1
        %s654 = smul.addr %s653, 8
        %s655 = scalar_lea.vmem %s18, %s654
        %p656 = scmp.eq.s32.totalorder %s34, 0
        // Predicated region
        $region89: #{_moco_forward.3} parent=87 // pred_check
          %p657 = pneg %p656
        $region90: #{_moco_forward.3} parent=87 // pred_check_branch
          %659 = sbr.rel (%p657) target = $region92
        $region91: #{_moco_forward.3} parent=87 // pred_region
          %vm660 = vcmask 0
          %661 = vst.msk [vmem:[#allocation3] sm:$0x1] %vm660, 0.0
          %v662 = vld [vmem:[%s14] sm:$0xff]
          %v663 = vld [vmem:[%s14 + $0x8] sm:$0xff]
          %v664 = vld [vmem:[%s14 + $0x10] sm:$0xff]
          %v665 = vld [vmem:[%s14 + $0x18] sm:$0xff]
          %v666 = vld [vmem:[%s14 + $0x20] sm:$0xff]
          %v667 = vld [vmem:[%s14 + $0x28] sm:$0xff]
          %v668 = vld [vmem:[%s14 + $0x30] sm:$0xff]
          %v669 = vld [vmem:[%s14 + $0x38] sm:$0xff]
          %v670 = vld [vmem:[%s14 + $0x40] sm:$0xff]
          %v671 = vld [vmem:[%s14 + $0x48] sm:$0xff]
          %v672 = vld [vmem:[%s14 + $0x50] sm:$0xff]
          %v673 = vld [vmem:[%s14 + $0x58] sm:$0xff]
          %v674 = vld [vmem:[%s14 + $0x60] sm:$0xff]
          %v675 = vld [vmem:[%s14 + $0x68] sm:$0xff]
          %v676 = vld [vmem:[%s14 + $0x70] sm:$0xff]
          %v677 = vld [vmem:[%s14 + $0x78] sm:$0xff]
          %v678 = vld [vmem:[%s14 + $0x80] sm:$0xff]
          %v679 = vld [vmem:[%s14 + $0x88] sm:$0xff]
          %v680 = vld [vmem:[%s14 + $0x90] sm:$0xff]
          %v681 = vld [vmem:[%s14 + $0x98] sm:$0xff]
          %v682 = vld [vmem:[%s14 + $0xa0] sm:$0xff]
          %v683 = vld [vmem:[%s14 + $0xa8] sm:$0xff]
          %v684 = vld [vmem:[%s14 + $0xb0] sm:$0xff]
          %v685 = vld [vmem:[%s14 + $0xb8] sm:$0xff]
          %v686 = vld [vmem:[%s14 + $0xc0] sm:$0xff]
          %v687 = vld [vmem:[%s14 + $0xc8] sm:$0xff]
          %v688 = vld [vmem:[%s14 + $0xd0] sm:$0xff]
          %v689 = vld [vmem:[%s14 + $0xd8] sm:$0xff]
          %v690 = vld [vmem:[%s14 + $0xe0] sm:$0xff]
          %v691 = vld [vmem:[%s14 + $0xe8] sm:$0xff]
          %v692 = vld [vmem:[%s14 + $0xf0] sm:$0xff]
          %v693 = vld [vmem:[%s14 + $0xf8] sm:$0xff]
          %v694 = vld [vmem:[%s14 + $0x100] sm:$0xff]
          %v695 = vld [vmem:[%s14 + $0x108] sm:$0xff]
          %v696 = vld [vmem:[%s14 + $0x110] sm:$0xff]
          %v697 = vld [vmem:[%s14 + $0x118] sm:$0xff]
          %v698 = vld [vmem:[%s14 + $0x120] sm:$0xff]
          %v699 = vld [vmem:[%s14 + $0x128] sm:$0xff]
          %v700 = vld [vmem:[%s14 + $0x130] sm:$0xff]
          %v701 = vld [vmem:[%s14 + $0x138] sm:$0xff]
          %v702 = vld [vmem:[%s14 + $0x140] sm:$0xff]
          %v703 = vld [vmem:[%s14 + $0x148] sm:$0xff]
          %v704 = vld [vmem:[%s14 + $0x150] sm:$0xff]
          %v705 = vld [vmem:[%s14 + $0x158] sm:$0xff]
          %v706 = vld [vmem:[%s14 + $0x160] sm:$0xff]
          %v707 = vld [vmem:[%s14 + $0x168] sm:$0xff]
          %v708 = vld [vmem:[%s14 + $0x170] sm:$0xff]
          %v709 = vld [vmem:[%s14 + $0x178] sm:$0xff]
          %v710 = vld [vmem:[%s14 + $0x180] sm:$0xff]
          %v711 = vld [vmem:[%s14 + $0x188] sm:$0xff]
          %v712 = vld [vmem:[%s14 + $0x190] sm:$0xff]
          %v713 = vld [vmem:[%s14 + $0x198] sm:$0xff]
          %v714 = vld [vmem:[%s14 + $0x1a0] sm:$0xff]
          %v715 = vld [vmem:[%s14 + $0x1a8] sm:$0xff]
          %v716 = vld [vmem:[%s14 + $0x1b0] sm:$0xff]
          %v717 = vld [vmem:[%s14 + $0x1b8] sm:$0xff]
          %v718 = vld [vmem:[%s14 + $0x1c0] sm:$0xff]
          %v719 = vld [vmem:[%s14 + $0x1c8] sm:$0xff]
          %v720 = vld [vmem:[%s14 + $0x1d0] sm:$0xff]
          %v721 = vld [vmem:[%s14 + $0x1d8] sm:$0xff]
          %v722 = vld [vmem:[%s14 + $0x1e0] sm:$0xff]
          %v723 = vld [vmem:[%s14 + $0x1e8] sm:$0xff]
          %v724 = vld [vmem:[%s14 + $0x1f0] sm:$0xff]
          %v725 = vld [vmem:[%s14 + $0x1f8] sm:$0xff]
          %726 = vst [vmem:[%s19] sm:$0xff] %v662
          %727 = vst [vmem:[%s19 + $0x8] sm:$0xff] %v663
          %728 = vst [vmem:[%s19 + $0x10] sm:$0xff] %v664
          %729 = vst [vmem:[%s19 + $0x18] sm:$0xff] %v665
          %730 = vst [vmem:[%s19 + $0x20] sm:$0xff] %v666
          %731 = vst [vmem:[%s19 + $0x28] sm:$0xff] %v667
          %732 = vst [vmem:[%s19 + $0x30] sm:$0xff] %v668
          %733 = vst [vmem:[%s19 + $0x38] sm:$0xff] %v669
          %734 = vst [vmem:[%s19 + $0x40] sm:$0xff] %v670
          %735 = vst [vmem:[%s19 + $0x48] sm:$0xff] %v671
          %736 = vst [vmem:[%s19 + $0x50] sm:$0xff] %v672
          %737 = vst [vmem:[%s19 + $0x58] sm:$0xff] %v673
          %738 = vst [vmem:[%s19 + $0x60] sm:$0xff] %v674
          %739 = vst [vmem:[%s19 + $0x68] sm:$0xff] %v675
          %740 = vst [vmem:[%s19 + $0x70] sm:$0xff] %v676
          %741 = vst [vmem:[%s19 + $0x78] sm:$0xff] %v677
          %742 = vst [vmem:[%s19 + $0x80] sm:$0xff] %v678
          %743 = vst [vmem:[%s19 + $0x88] sm:$0xff] %v679
          %744 = vst [vmem:[%s19 + $0x90] sm:$0xff] %v680
          %745 = vst [vmem:[%s19 + $0x98] sm:$0xff] %v681
          %746 = vst [vmem:[%s19 + $0xa0] sm:$0xff] %v682
          %747 = vst [vmem:[%s19 + $0xa8] sm:$0xff] %v683
          %748 = vst [vmem:[%s19 + $0xb0] sm:$0xff] %v684
          %749 = vst [vmem:[%s19 + $0xb8] sm:$0xff] %v685
          %750 = vst [vmem:[%s19 + $0xc0] sm:$0xff] %v686
          %751 = vst [vmem:[%s19 + $0xc8] sm:$0xff] %v687
          %752 = vst [vmem:[%s19 + $0xd0] sm:$0xff] %v688
          %753 = vst [vmem:[%s19 + $0xd8] sm:$0xff] %v689
          %754 = vst [vmem:[%s19 + $0xe0] sm:$0xff] %v690
          %755 = vst [vmem:[%s19 + $0xe8] sm:$0xff] %v691
          %756 = vst [vmem:[%s19 + $0xf0] sm:$0xff] %v692
          %757 = vst [vmem:[%s19 + $0xf8] sm:$0xff] %v693
          %758 = vst [vmem:[%s19 + $0x100] sm:$0xff] %v694
          %759 = vst [vmem:[%s19 + $0x108] sm:$0xff] %v695
          %760 = vst [vmem:[%s19 + $0x110] sm:$0xff] %v696
          %761 = vst [vmem:[%s19 + $0x118] sm:$0xff] %v697
          %762 = vst [vmem:[%s19 + $0x120] sm:$0xff] %v698
          %763 = vst [vmem:[%s19 + $0x128] sm:$0xff] %v699
          %764 = vst [vmem:[%s19 + $0x130] sm:$0xff] %v700
          %765 = vst [vmem:[%s19 + $0x138] sm:$0xff] %v701
          %766 = vst [vmem:[%s19 + $0x140] sm:$0xff] %v702
          %767 = vst [vmem:[%s19 + $0x148] sm:$0xff] %v703
          %768 = vst [vmem:[%s19 + $0x150] sm:$0xff] %v704
          %769 = vst [vmem:[%s19 + $0x158] sm:$0xff] %v705
          %770 = vst [vmem:[%s19 + $0x160] sm:$0xff] %v706
          %771 = vst [vmem:[%s19 + $0x168] sm:$0xff] %v707
          %772 = vst [vmem:[%s19 + $0x170] sm:$0xff] %v708
          %773 = vst [vmem:[%s19 + $0x178] sm:$0xff] %v709
          %774 = vst [vmem:[%s19 + $0x180] sm:$0xff] %v710
          %775 = vst [vmem:[%s19 + $0x188] sm:$0xff] %v711
          %776 = vst [vmem:[%s19 + $0x190] sm:$0xff] %v712
          %777 = vst [vmem:[%s19 + $0x198] sm:$0xff] %v713
          %778 = vst [vmem:[%s19 + $0x1a0] sm:$0xff] %v714
          %779 = vst [vmem:[%s19 + $0x1a8] sm:$0xff] %v715
          %780 = vst [vmem:[%s19 + $0x1b0] sm:$0xff] %v716
          %781 = vst [vmem:[%s19 + $0x1b8] sm:$0xff] %v717
          %782 = vst [vmem:[%s19 + $0x1c0] sm:$0xff] %v718
          %783 = vst [vmem:[%s19 + $0x1c8] sm:$0xff] %v719
          %784 = vst [vmem:[%s19 + $0x1d0] sm:$0xff] %v720
          %785 = vst [vmem:[%s19 + $0x1d8] sm:$0xff] %v721
          %786 = vst [vmem:[%s19 + $0x1e0] sm:$0xff] %v722
          %787 = vst [vmem:[%s19 + $0x1e8] sm:$0xff] %v723
          %788 = vst [vmem:[%s19 + $0x1f0] sm:$0xff] %v724
          %789 = vst [vmem:[%s19 + $0x1f8] sm:$0xff] %v725
          %v790 = vld [vmem:[%s15] sm:$0xf]
          %v791 = vlaneseq
          %vm792 = vcmp.ge.s32.totalorder %v791, 0
          %vm793 = vcmp.lt.s32.totalorder %v791, 512
          %vm794 = vmand %vm792, %vm793
          %795 = vst.msk [vmem:[%s20] sm:$0xf] %vm794, %v790
        $region92: #{_moco_forward.3} parent=87 // pred_fallthru
          _
        %v796 = vld [vmem:[%s643] sm:$0xff]
        %v797 = vld [vmem:[%s643 + $0x8] sm:$0xff]
        %v798 = vld [vmem:[%s643 + $0x10] sm:$0xff]
        %v799 = vld [vmem:[%s643 + $0x18] sm:$0xff]
        %v800 = vld [vmem:[%s643 + $0x20] sm:$0xff]
        %v801 = vld [vmem:[%s643 + $0x28] sm:$0xff]
        %v802 = vld [vmem:[%s643 + $0x30] sm:$0xff]
        %v803 = vld [vmem:[%s643 + $0x38] sm:$0xff]
        %v804 = vld [vmem:[%s643 + $0x40] sm:$0xff]
        %v805 = vld [vmem:[%s643 + $0x48] sm:$0xff]
        %v806 = vld [vmem:[%s643 + $0x50] sm:$0xff]
        %v807 = vld [vmem:[%s643 + $0x58] sm:$0xff]
        %v808 = vld [vmem:[%s643 + $0x60] sm:$0xff]
        %v809 = vld [vmem:[%s643 + $0x68] sm:$0xff]
        %v810 = vld [vmem:[%s643 + $0x70] sm:$0xff]
        %v811 = vld [vmem:[%s643 + $0x78] sm:$0xff]
        %v812 = vld [vmem:[%s643 + $0x80] sm:$0xff]
        %v813 = vld [vmem:[%s643 + $0x88] sm:$0xff]
        %v814 = vld [vmem:[%s643 + $0x90] sm:$0xff]
        %v815 = vld [vmem:[%s643 + $0x98] sm:$0xff]
        %v816 = vld [vmem:[%s643 + $0xa0] sm:$0xff]
        %v817 = vld [vmem:[%s643 + $0xa8] sm:$0xff]
        %v818 = vld [vmem:[%s643 + $0xb0] sm:$0xff]
        %v819 = vld [vmem:[%s643 + $0xb8] sm:$0xff]
        %v820 = vld [vmem:[%s643 + $0xc0] sm:$0xff]
        %v821 = vld [vmem:[%s643 + $0xc8] sm:$0xff]
        %v822 = vld [vmem:[%s643 + $0xd0] sm:$0xff]
        %v823 = vld [vmem:[%s643 + $0xd8] sm:$0xff]
        %v824 = vld [vmem:[%s643 + $0xe0] sm:$0xff]
        %v825 = vld [vmem:[%s643 + $0xe8] sm:$0xff]
        %v826 = vld [vmem:[%s643 + $0xf0] sm:$0xff]
        %v827 = vld [vmem:[%s643 + $0xf8] sm:$0xff]
        %v828 = vld [vmem:[%s643 + $0x100] sm:$0xff]
        %v829 = vld [vmem:[%s643 + $0x108] sm:$0xff]
        %v830 = vld [vmem:[%s643 + $0x110] sm:$0xff]
        %v831 = vld [vmem:[%s643 + $0x118] sm:$0xff]
        %v832 = vld [vmem:[%s643 + $0x120] sm:$0xff]
        %v833 = vld [vmem:[%s643 + $0x128] sm:$0xff]
        %v834 = vld [vmem:[%s643 + $0x130] sm:$0xff]
        %v835 = vld [vmem:[%s643 + $0x138] sm:$0xff]
        %v836 = vld [vmem:[%s643 + $0x140] sm:$0xff]
        %v837 = vld [vmem:[%s643 + $0x148] sm:$0xff]
        %v838 = vld [vmem:[%s643 + $0x150] sm:$0xff]
        %v839 = vld [vmem:[%s643 + $0x158] sm:$0xff]
        %v840 = vld [vmem:[%s643 + $0x160] sm:$0xff]
        %v841 = vld [vmem:[%s643 + $0x168] sm:$0xff]
        %v842 = vld [vmem:[%s643 + $0x170] sm:$0xff]
        %v843 = vld [vmem:[%s643 + $0x178] sm:$0xff]
        %v844 = vld [vmem:[%s643 + $0x180] sm:$0xff]
        %v845 = vld [vmem:[%s643 + $0x188] sm:$0xff]
        %v846 = vld [vmem:[%s643 + $0x190] sm:$0xff]
        %v847 = vld [vmem:[%s643 + $0x198] sm:$0xff]
        %v848 = vld [vmem:[%s643 + $0x1a0] sm:$0xff]
        %v849 = vld [vmem:[%s643 + $0x1a8] sm:$0xff]
        %v850 = vld [vmem:[%s643 + $0x1b0] sm:$0xff]
        %v851 = vld [vmem:[%s643 + $0x1b8] sm:$0xff]
        %v852 = vld [vmem:[%s643 + $0x1c0] sm:$0xff]
        %v853 = vld [vmem:[%s643 + $0x1c8] sm:$0xff]
        %v854 = vld [vmem:[%s643 + $0x1d0] sm:$0xff]
        %v855 = vld [vmem:[%s643 + $0x1d8] sm:$0xff]
        %v856 = vld [vmem:[%s643 + $0x1e0] sm:$0xff]
        %v857 = vld [vmem:[%s643 + $0x1e8] sm:$0xff]
        %v858 = vld [vmem:[%s643 + $0x1f0] sm:$0xff]
        %v859 = vld [vmem:[%s643 + $0x1f8] sm:$0xff]
        %v860 = vld [vmem:[%s4] sm:$0xff]
        %v861 = vld [vmem:[%s5] sm:$0x1]
        %v863 = vlaneseq
        %v864 = vshrl.u32 %v863, 7
        %v865 = vsub.s32 0, %v864
        %v866 = vrot.slane %v861, %v865
        %vm868 = vcmask 64512
        %v870 = vsel %vm868, %v796, 0
        %v873 = vsel %vm868, %v797, 0
        %v876 = vsel %vm868, %v798, 0
        %v879 = vsel %vm868, %v799, 0
        %v882 = vsel %vm868, %v800, 0
        %v885 = vsel %vm868, %v801, 0
        %v888 = vsel %vm868, %v802, 0
        %v891 = vsel %vm868, %v803, 0
        %v894 = vsel %vm868, %v804, 0
        %v897 = vsel %vm868, %v805, 0
        %v900 = vsel %vm868, %v806, 0
        %v903 = vsel %vm868, %v807, 0
        %v906 = vsel %vm868, %v808, 0
        %v909 = vsel %vm868, %v809, 0
        %v912 = vsel %vm868, %v810, 0
        %v915 = vsel %vm868, %v811, 0
        %v918 = vsel %vm868, %v812, 0
        %v921 = vsel %vm868, %v813, 0
        %v924 = vsel %vm868, %v814, 0
        %v927 = vsel %vm868, %v815, 0
        %v930 = vsel %vm868, %v816, 0
        %v933 = vsel %vm868, %v817, 0
        %v936 = vsel %vm868, %v818, 0
        %v939 = vsel %vm868, %v819, 0
        %v942 = vsel %vm868, %v820, 0
        %v945 = vsel %vm868, %v821, 0
        %v948 = vsel %vm868, %v822, 0
        %v951 = vsel %vm868, %v823, 0
        %v954 = vsel %vm868, %v824, 0
        %v957 = vsel %vm868, %v825, 0
        %v960 = vsel %vm868, %v826, 0
        %v963 = vsel %vm868, %v827, 0
        %v966 = vsel %vm868, %v828, 0
        %v969 = vsel %vm868, %v829, 0
        %v972 = vsel %vm868, %v830, 0
        %v975 = vsel %vm868, %v831, 0
        %v978 = vsel %vm868, %v832, 0
        %v981 = vsel %vm868, %v833, 0
        %v984 = vsel %vm868, %v834, 0
        %v987 = vsel %vm868, %v835, 0
        %v990 = vsel %vm868, %v836, 0
        %v993 = vsel %vm868, %v837, 0
        %v996 = vsel %vm868, %v838, 0
        %v999 = vsel %vm868, %v839, 0
        %v1002 = vsel %vm868, %v840, 0
        %v1005 = vsel %vm868, %v841, 0
        %v1008 = vsel %vm868, %v842, 0
        %v1011 = vsel %vm868, %v843, 0
        %v1014 = vsel %vm868, %v844, 0
        %v1017 = vsel %vm868, %v845, 0
        %v1020 = vsel %vm868, %v846, 0
        %v1023 = vsel %vm868, %v847, 0
        %v1026 = vsel %vm868, %v848, 0
        %v1029 = vsel %vm868, %v849, 0
        %v1032 = vsel %vm868, %v850, 0
        %v1035 = vsel %vm868, %v851, 0
        %v1038 = vsel %vm868, %v852, 0
        %v1041 = vsel %vm868, %v853, 0
        %v1044 = vsel %vm868, %v854, 0
        %v1047 = vsel %vm868, %v855, 0
        %v1050 = vsel %vm868, %v856, 0
        %v1053 = vsel %vm868, %v857, 0
        %v1056 = vsel %vm868, %v858, 0
        %v1059 = vsel %vm868, %v859, 0
        %1061 = vmatprep.subr.mxu0 0.0
        %1062 = vmatpush1.msra.mxu0 %v860
        %1063 = vmatprep.subr.mxu0 0.0
        %1064 = vmatpush1.msra.mxu0 0.0
        %1065 = vmatprep.subr.mxu0 0.0
        %1066 = vmatpush1.msra.mxu0 0.0
        %1067 = vmatprep.subr.mxu0 0.0
        %1068 = vmatpush1.msra.mxu0 0.0
        %1069 = vmatprep.subr.mxu0 0.0
        %1070 = vmatpush1.msra.mxu0 0.0
        %1071 = vmatprep.subr.mxu0 0.0
        %1072 = vmatpush1.msra.mxu0 0.0
        %1073 = vmatprep.subr.mxu0 0.0
        %1074 = vmatpush1.msra.mxu0 0.0
        %1075 = vmatprep.subr.mxu0 0.0
        %1076 = vmatpush1.msra.mxu0 0.0
        %1077 = vmatprep.subr.mxu0 0.0
        %1078 = vmatpush1.msra.mxu0 0.0
        %1079 = vmatprep.subr.mxu0 0.0
        %1080 = vmatpush1.msra.mxu0 0.0
        %1081 = vmatprep.subr.mxu0 0.0
        %1082 = vmatpush1.msra.mxu0 0.0
        %1083 = vmatprep.subr.mxu0 0.0
        %1084 = vmatpush1.msra.mxu0 0.0
        %1085 = vmatprep.subr.mxu0 0.0
        %1086 = vmatpush1.msra.mxu0 0.0
        %1087 = vmatprep.subr.mxu0 0.0
        %1088 = vmatpush1.msra.mxu0 0.0
        %1089 = vmatprep.subr.mxu0 0.0
        %1090 = vmatpush1.msra.mxu0 0.0
        %1091 = vmatprep.subr.mxu0 0.0
        %1092 = vmatpush1.msra.mxu0 0.0
        %1093 = vmatprep.subr.mxu0 0.0
        %1094 = vmatpush1.msra.mxu0 0.0
        %1095 = vmatprep.subr.mxu0 0.0
        %1096 = vmatpush1.msra.mxu0 0.0
        %1097 = vmatprep.subr.mxu0 0.0
        %1098 = vmatpush1.msra.mxu0 0.0
        %1099 = vmatprep.subr.mxu0 0.0
        %1100 = vmatpush1.msra.mxu0 0.0
        %1101 = vmatprep.subr.mxu0 0.0
        %1102 = vmatpush1.msra.mxu0 0.0
        %1103 = vmatprep.subr.mxu0 0.0
        %1104 = vmatpush1.msra.mxu0 0.0
        %1105 = vmatprep.subr.mxu0 0.0
        %1106 = vmatpush1.msra.mxu0 0.0
        %1107 = vmatprep.subr.mxu0 0.0
        %1108 = vmatpush1.msra.mxu0 0.0
        %1109 = vmatprep.subr.mxu0 0.0
        %1110 = vmatpush1.msra.mxu0 0.0
        %1111 = vmatprep.subr.mxu0 0.0
        %1112 = vmatpush1.msra.mxu0 0.0
        %1113 = vmatprep.subr.mxu0 0.0
        %1114 = vmatpush1.msra.mxu0 0.0
        %1115 = vmatprep.subr.mxu0 0.0
        %1116 = vmatpush1.msra.mxu0 0.0
        %1117 = vmatprep.subr.mxu0 0.0
        %1118 = vmatpush1.msra.mxu0 0.0
        %1119 = vmatprep.subr.mxu0 0.0
        %1120 = vmatpush1.msra.mxu0 0.0
        %1121 = vmatprep.subr.mxu0 0.0
        %1122 = vmatpush1.msra.mxu0 0.0
        %1123 = vmatprep.subr.mxu0 0.0
        %1124 = vmatpush1.msra.mxu0 0.0
        %1125 = vmatprep.mubr.f32.mxu0 0.0
        %1126 = vmatmul.mubr.f32.gmra.mrb[0].mxu0 %v870
        %v1127 = vpop.f32.mrb[0].mxu0
        %v1128 = vadd.f32 %v866, %v1127
        %v1129 = vpop.f32.mrb[0].mxu0
        %1130 = vmatprep.mubr.f32.mxu0 0.0
        %1131 = vmatmul.mubr.f32.gmra.mrb[0].mxu0 %v873
        %v1132 = vpop.f32.mrb[0].mxu0
        %v1133 = vadd.f32 %v866, %v1132
        %v1134 = vpop.f32.mrb[0].mxu0
        %1135 = vmatprep.mubr.f32.mxu0 0.0
        %1136 = vmatmul.mubr.f32.gmra.mrb[0].mxu0 %v876
        %v1137 = vpop.f32.mrb[0].mxu0
        %v1138 = vadd.f32 %v866, %v1137
        %v1139 = vpop.f32.mrb[0].mxu0
        %1140 = vmatprep.mubr.f32.mxu0 0.0
        %1141 = vmatmul.mubr.f32.gmra.mrb[0].mxu0 %v879
        %v1142 = vpop.f32.mrb[0].mxu0
        %v1143 = vadd.f32 %v866, %v1142
        %v1144 = vpop.f32.mrb[0].mxu0
        %1145 = vmatprep.mubr.f32.mxu0 0.0
        %1146 = vmatmul.mubr.f32.gmra.mrb[0].mxu0 %v882
        %v1147 = vpop.f32.mrb[0].mxu0
        %v1148 = vadd.f32 %v866, %v1147
        %v1149 = vpop.f32.mrb[0].mxu0
        %1150 = vmatprep.mubr.f32.mxu0 0.0
        %1151 = vmatmul.mubr.f32.gmra.mrb[0].mxu0 %v885
        %v1152 = vpop.f32.mrb[0].mxu0
        %v1153 = vadd.f32 %v866, %v1152
        %v1154 = vpop.f32.mrb[0].mxu0
        %1155 = vmatprep.mubr.f32.mxu0 0.0
        %1156 = vmatmul.mubr.f32.gmra.mrb[0].mxu0 %v888
        %v1157 = vpop.f32.mrb[0].mxu0
        %v1158 = vadd.f32 %v866, %v1157
        %v1159 = vpop.f32.mrb[0].mxu0
        %1160 = vmatprep.mubr.f32.mxu0 0.0
        %1161 = vmatmul.mubr.f32.gmra.mrb[0].mxu0 %v891
        %v1162 = vpop.f32.mrb[0].mxu0
        %v1163 = vadd.f32 %v866, %v1162
        %v1164 = vpop.f32.mrb[0].mxu0
        %1165 = vmatprep.mubr.f32.mxu0 0.0
        %1166 = vmatmul.mubr.f32.gmra.mrb[0].mxu0 %v894
        %v1167 = vpop.f32.mrb[0].mxu0
        %v1168 = vadd.f32 %v866, %v1167
        %v1169 = vpop.f32.mrb[0].mxu0
        %1170 = vmatprep.mubr.f32.mxu0 0.0
        %1171 = vmatmul.mubr.f32.gmra.mrb[0].mxu0 %v897
        %v1172 = vpop.f32.mrb[0].mxu0
        %v1173 = vadd.f32 %v866, %v1172
        %v1174 = vpop.f32.mrb[0].mxu0
        %1175 = vmatprep.mubr.f32.mxu0 0.0
        %1176 = vmatmul.mubr.f32.gmra.mrb[0].mxu0 %v900
        %v1177 = vpop.f32.mrb[0].mxu0
        %v1178 = vadd.f32 %v866, %v1177
        %v1179 = vpop.f32.mrb[0].mxu0
        %1180 = vmatprep.mubr.f32.mxu0 0.0
        %1181 = vmatmul.mubr.f32.gmra.mrb[0].mxu0 %v903
        %v1182 = vpop.f32.mrb[0].mxu0
        %v1183 = vadd.f32 %v866, %v1182
        %v1184 = vpop.f32.mrb[0].mxu0
        %1185 = vmatprep.mubr.f32.mxu0 0.0
        %1186 = vmatmul.mubr.f32.gmra.mrb[0].mxu0 %v906
        %v1187 = vpop.f32.mrb[0].mxu0
        %v1188 = vadd.f32 %v866, %v1187
        %v1189 = vpop.f32.mrb[0].mxu0
        %1190 = vmatprep.mubr.f32.mxu0 0.0
        %1191 = vmatmul.mubr.f32.gmra.mrb[0].mxu0 %v909
        %v1192 = vpop.f32.mrb[0].mxu0
        %v1193 = vadd.f32 %v866, %v1192
        %v1194 = vpop.f32.mrb[0].mxu0
        %1195 = vmatprep.mubr.f32.mxu0 0.0
        %1196 = vmatmul.mubr.f32.gmra.mrb[0].mxu0 %v912
        %v1197 = vpop.f32.mrb[0].mxu0
        %v1198 = vadd.f32 %v866, %v1197
        %v1199 = vpop.f32.mrb[0].mxu0
        %1200 = vmatprep.mubr.f32.mxu0 0.0
        %1201 = vmatmul.mubr.f32.gmra.mrb[0].mxu0 %v915
        %v1202 = vpop.f32.mrb[0].mxu0
        %v1203 = vadd.f32 %v866, %v1202
        %v1204 = vpop.f32.mrb[0].mxu0
        %1205 = vmatprep.mubr.f32.mxu0 0.0
        %1206 = vmatmul.mubr.f32.gmra.mrb[0].mxu0 %v918
        %v1207 = vpop.f32.mrb[0].mxu0
        %v1208 = vadd.f32 %v866, %v1207
        %v1209 = vpop.f32.mrb[0].mxu0
        %1210 = vmatprep.mubr.f32.mxu0 0.0
        %1211 = vmatmul.mubr.f32.gmra.mrb[0].mxu0 %v921
        %v1212 = vpop.f32.mrb[0].mxu0
        %v1213 = vadd.f32 %v866, %v1212
        %v1214 = vpop.f32.mrb[0].mxu0
        %1215 = vmatprep.mubr.f32.mxu0 0.0
        %1216 = vmatmul.mubr.f32.gmra.mrb[0].mxu0 %v924
        %v1217 = vpop.f32.mrb[0].mxu0
        %v1218 = vadd.f32 %v866, %v1217
        %v1219 = vpop.f32.mrb[0].mxu0
        %1220 = vmatprep.mubr.f32.mxu0 0.0
        %1221 = vmatmul.mubr.f32.gmra.mrb[0].mxu0 %v927
        %v1222 = vpop.f32.mrb[0].mxu0
        %v1223 = vadd.f32 %v866, %v1222
        %v1224 = vpop.f32.mrb[0].mxu0
        %1225 = vmatprep.mubr.f32.mxu0 0.0
        %1226 = vmatmul.mubr.f32.gmra.mrb[0].mxu0 %v930
        %v1227 = vpop.f32.mrb[0].mxu0
        %v1228 = vadd.f32 %v866, %v1227
        %v1229 = vpop.f32.mrb[0].mxu0
        %1230 = vmatprep.mubr.f32.mxu0 0.0
        %1231 = vmatmul.mubr.f32.gmra.mrb[0].mxu0 %v933
        %v1232 = vpop.f32.mrb[0].mxu0
        %v1233 = vadd.f32 %v866, %v1232
        %v1234 = vpop.f32.mrb[0].mxu0
        %1235 = vmatprep.mubr.f32.mxu0 0.0
        %1236 = vmatmul.mubr.f32.gmra.mrb[0].mxu0 %v936
        %v1237 = vpop.f32.mrb[0].mxu0
        %v1238 = vadd.f32 %v866, %v1237
        %v1239 = vpop.f32.mrb[0].mxu0
        %1240 = vmatprep.mubr.f32.mxu0 0.0
        %1241 = vmatmul.mubr.f32.gmra.mrb[0].mxu0 %v939
        %v1242 = vpop.f32.mrb[0].mxu0
        %v1243 = vadd.f32 %v866, %v1242
        %v1244 = vpop.f32.mrb[0].mxu0
        %1245 = vmatprep.mubr.f32.mxu0 0.0
        %1246 = vmatmul.mubr.f32.gmra.mrb[0].mxu0 %v942
        %v1247 = vpop.f32.mrb[0].mxu0
        %v1248 = vadd.f32 %v866, %v1247
        %v1249 = vpop.f32.mrb[0].mxu0
        %1250 = vmatprep.mubr.f32.mxu0 0.0
        %1251 = vmatmul.mubr.f32.gmra.mrb[0].mxu0 %v945
        %v1252 = vpop.f32.mrb[0].mxu0
        %v1253 = vadd.f32 %v866, %v1252
        %v1254 = vpop.f32.mrb[0].mxu0
        %1255 = vmatprep.mubr.f32.mxu0 0.0
        %1256 = vmatmul.mubr.f32.gmra.mrb[0].mxu0 %v948
        %v1257 = vpop.f32.mrb[0].mxu0
        %v1258 = vadd.f32 %v866, %v1257
        %v1259 = vpop.f32.mrb[0].mxu0
        %1260 = vmatprep.mubr.f32.mxu0 0.0
        %1261 = vmatmul.mubr.f32.gmra.mrb[0].mxu0 %v951
        %v1262 = vpop.f32.mrb[0].mxu0
        %v1263 = vadd.f32 %v866, %v1262
        %v1264 = vpop.f32.mrb[0].mxu0
        %1265 = vmatprep.mubr.f32.mxu0 0.0
        %1266 = vmatmul.mubr.f32.gmra.mrb[0].mxu0 %v954
        %v1267 = vpop.f32.mrb[0].mxu0
        %v1268 = vadd.f32 %v866, %v1267
        %v1269 = vpop.f32.mrb[0].mxu0
        %1270 = vmatprep.mubr.f32.mxu0 0.0
        %1271 = vmatmul.mubr.f32.gmra.mrb[0].mxu0 %v957
        %v1272 = vpop.f32.mrb[0].mxu0
        %v1273 = vadd.f32 %v866, %v1272
        %v1274 = vpop.f32.mrb[0].mxu0
        %1275 = vmatprep.mubr.f32.mxu0 0.0
        %1276 = vmatmul.mubr.f32.gmra.mrb[0].mxu0 %v960
        %v1277 = vpop.f32.mrb[0].mxu0
        %v1278 = vadd.f32 %v866, %v1277
        %v1279 = vpop.f32.mrb[0].mxu0
        %1280 = vmatprep.mubr.f32.mxu0 0.0
        %1281 = vmatmul.mubr.f32.gmra.mrb[0].mxu0 %v963
        %v1282 = vpop.f32.mrb[0].mxu0
        %v1283 = vadd.f32 %v866, %v1282
        %v1284 = vpop.f32.mrb[0].mxu0
        %1285 = vmatprep.mubr.f32.mxu0 0.0
        %1286 = vmatmul.mubr.f32.gmra.mrb[0].mxu0 %v966
        %v1287 = vpop.f32.mrb[0].mxu0
        %v1288 = vadd.f32 %v866, %v1287
        %v1289 = vpop.f32.mrb[0].mxu0
        %1290 = vmatprep.mubr.f32.mxu0 0.0
        %1291 = vmatmul.mubr.f32.gmra.mrb[0].mxu0 %v969
        %v1292 = vpop.f32.mrb[0].mxu0
        %v1293 = vadd.f32 %v866, %v1292
        %v1294 = vpop.f32.mrb[0].mxu0
        %1295 = vmatprep.mubr.f32.mxu0 0.0
        %1296 = vmatmul.mubr.f32.gmra.mrb[0].mxu0 %v972
        %v1297 = vpop.f32.mrb[0].mxu0
        %v1298 = vadd.f32 %v866, %v1297
        %v1299 = vpop.f32.mrb[0].mxu0
        %1300 = vmatprep.mubr.f32.mxu0 0.0
        %1301 = vmatmul.mubr.f32.gmra.mrb[0].mxu0 %v975
        %v1302 = vpop.f32.mrb[0].mxu0
        %v1303 = vadd.f32 %v866, %v1302
        %v1304 = vpop.f32.mrb[0].mxu0
        %1305 = vmatprep.mubr.f32.mxu0 0.0
        %1306 = vmatmul.mubr.f32.gmra.mrb[0].mxu0 %v978
        %v1307 = vpop.f32.mrb[0].mxu0
        %v1308 = vadd.f32 %v866, %v1307
        %v1309 = vpop.f32.mrb[0].mxu0
        %1310 = vmatprep.mubr.f32.mxu0 0.0
        %1311 = vmatmul.mubr.f32.gmra.mrb[0].mxu0 %v981
        %v1312 = vpop.f32.mrb[0].mxu0
        %v1313 = vadd.f32 %v866, %v1312
        %v1314 = vpop.f32.mrb[0].mxu0
        %1315 = vmatprep.mubr.f32.mxu0 0.0
        %1316 = vmatmul.mubr.f32.gmra.mrb[0].mxu0 %v984
        %v1317 = vpop.f32.mrb[0].mxu0
        %v1318 = vadd.f32 %v866, %v1317
        %v1319 = vpop.f32.mrb[0].mxu0
        %1320 = vmatprep.mubr.f32.mxu0 0.0
        %1321 = vmatmul.mubr.f32.gmra.mrb[0].mxu0 %v987
        %v1322 = vpop.f32.mrb[0].mxu0
        %v1323 = vadd.f32 %v866, %v1322
        %v1324 = vpop.f32.mrb[0].mxu0
        %1325 = vmatprep.mubr.f32.mxu0 0.0
        %1326 = vmatmul.mubr.f32.gmra.mrb[0].mxu0 %v990
        %v1327 = vpop.f32.mrb[0].mxu0
        %v1328 = vadd.f32 %v866, %v1327
        %v1329 = vpop.f32.mrb[0].mxu0
        %1330 = vmatprep.mubr.f32.mxu0 0.0
        %1331 = vmatmul.mubr.f32.gmra.mrb[0].mxu0 %v993
        %v1332 = vpop.f32.mrb[0].mxu0
        %v1333 = vadd.f32 %v866, %v1332
        %v1334 = vpop.f32.mrb[0].mxu0
        %1335 = vmatprep.mubr.f32.mxu0 0.0
        %1336 = vmatmul.mubr.f32.gmra.mrb[0].mxu0 %v996
        %v1337 = vpop.f32.mrb[0].mxu0
        %v1338 = vadd.f32 %v866, %v1337
        %v1339 = vpop.f32.mrb[0].mxu0
        %1340 = vmatprep.mubr.f32.mxu0 0.0
        %1341 = vmatmul.mubr.f32.gmra.mrb[0].mxu0 %v999
        %v1342 = vpop.f32.mrb[0].mxu0
        %v1343 = vadd.f32 %v866, %v1342
        %v1344 = vpop.f32.mrb[0].mxu0
        %1345 = vmatprep.mubr.f32.mxu0 0.0
        %1346 = vmatmul.mubr.f32.gmra.mrb[0].mxu0 %v1002
        %v1347 = vpop.f32.mrb[0].mxu0
        %v1348 = vadd.f32 %v866, %v1347
        %v1349 = vpop.f32.mrb[0].mxu0
        %1350 = vmatprep.mubr.f32.mxu0 0.0
        %1351 = vmatmul.mubr.f32.gmra.mrb[0].mxu0 %v1005
        %v1352 = vpop.f32.mrb[0].mxu0
        %v1353 = vadd.f32 %v866, %v1352
        %v1354 = vpop.f32.mrb[0].mxu0
        %1355 = vmatprep.mubr.f32.mxu0 0.0
        %1356 = vmatmul.mubr.f32.gmra.mrb[0].mxu0 %v1008
        %v1357 = vpop.f32.mrb[0].mxu0
        %v1358 = vadd.f32 %v866, %v1357
        %v1359 = vpop.f32.mrb[0].mxu0
        %1360 = vmatprep.mubr.f32.mxu0 0.0
        %1361 = vmatmul.mubr.f32.gmra.mrb[0].mxu0 %v1011
        %v1362 = vpop.f32.mrb[0].mxu0
        %v1363 = vadd.f32 %v866, %v1362
        %v1364 = vpop.f32.mrb[0].mxu0
        %1365 = vmatprep.mubr.f32.mxu0 0.0
        %1366 = vmatmul.mubr.f32.gmra.mrb[0].mxu0 %v1014
        %v1367 = vpop.f32.mrb[0].mxu0
        %v1368 = vadd.f32 %v866, %v1367
        %v1369 = vpop.f32.mrb[0].mxu0
        %1370 = vmatprep.mubr.f32.mxu0 0.0
        %1371 = vmatmul.mubr.f32.gmra.mrb[0].mxu0 %v1017
        %v1372 = vpop.f32.mrb[0].mxu0
        %v1373 = vadd.f32 %v866, %v1372
        %v1374 = vpop.f32.mrb[0].mxu0
        %1375 = vmatprep.mubr.f32.mxu0 0.0
        %1376 = vmatmul.mubr.f32.gmra.mrb[0].mxu0 %v1020
        %v1377 = vpop.f32.mrb[0].mxu0
        %v1378 = vadd.f32 %v866, %v1377
        %v1379 = vpop.f32.mrb[0].mxu0
        %1380 = vmatprep.mubr.f32.mxu0 0.0
        %1381 = vmatmul.mubr.f32.gmra.mrb[0].mxu0 %v1023
        %v1382 = vpop.f32.mrb[0].mxu0
        %v1383 = vadd.f32 %v866, %v1382
        %v1384 = vpop.f32.mrb[0].mxu0
        %1385 = vmatprep.mubr.f32.mxu0 0.0
        %1386 = vmatmul.mubr.f32.gmra.mrb[0].mxu0 %v1026
        %v1387 = vpop.f32.mrb[0].mxu0
        %v1388 = vadd.f32 %v866, %v1387
        %v1389 = vpop.f32.mrb[0].mxu0
        %1390 = vmatprep.mubr.f32.mxu0 0.0
        %1391 = vmatmul.mubr.f32.gmra.mrb[0].mxu0 %v1029
        %v1392 = vpop.f32.mrb[0].mxu0
        %v1393 = vadd.f32 %v866, %v1392
        %v1394 = vpop.f32.mrb[0].mxu0
        %1395 = vmatprep.mubr.f32.mxu0 0.0
        %1396 = vmatmul.mubr.f32.gmra.mrb[0].mxu0 %v1032
        %v1397 = vpop.f32.mrb[0].mxu0
        %v1398 = vadd.f32 %v866, %v1397
        %v1399 = vpop.f32.mrb[0].mxu0
        %1400 = vmatprep.mubr.f32.mxu0 0.0
        %1401 = vmatmul.mubr.f32.gmra.mrb[0].mxu0 %v1035
        %v1402 = vpop.f32.mrb[0].mxu0
        %v1403 = vadd.f32 %v866, %v1402
        %v1404 = vpop.f32.mrb[0].mxu0
        %1405 = vmatprep.mubr.f32.mxu0 0.0
        %1406 = vmatmul.mubr.f32.gmra.mrb[0].mxu0 %v1038
        %v1407 = vpop.f32.mrb[0].mxu0
        %v1408 = vadd.f32 %v866, %v1407
        %v1409 = vpop.f32.mrb[0].mxu0
        %1410 = vmatprep.mubr.f32.mxu0 0.0
        %1411 = vmatmul.mubr.f32.gmra.mrb[0].mxu0 %v1041
        %v1412 = vpop.f32.mrb[0].mxu0
        %v1413 = vadd.f32 %v866, %v1412
        %v1414 = vpop.f32.mrb[0].mxu0
        %1415 = vmatprep.mubr.f32.mxu0 0.0
        %1416 = vmatmul.mubr.f32.gmra.mrb[0].mxu0 %v1044
        %v1417 = vpop.f32.mrb[0].mxu0
        %v1418 = vadd.f32 %v866, %v1417
        %v1419 = vpop.f32.mrb[0].mxu0
        %1420 = vmatprep.mubr.f32.mxu0 0.0
        %1421 = vmatmul.mubr.f32.gmra.mrb[0].mxu0 %v1047
        %v1422 = vpop.f32.mrb[0].mxu0
        %v1423 = vadd.f32 %v866, %v1422
        %v1424 = vpop.f32.mrb[0].mxu0
        %1425 = vmatprep.mubr.f32.mxu0 0.0
        %1426 = vmatmul.mubr.f32.gmra.mrb[0].mxu0 %v1050
        %v1427 = vpop.f32.mrb[0].mxu0
        %v1428 = vadd.f32 %v866, %v1427
        %v1429 = vpop.f32.mrb[0].mxu0
        %1430 = vmatprep.mubr.f32.mxu0 0.0
        %1431 = vmatmul.mubr.f32.gmra.mrb[0].mxu0 %v1053
        %v1432 = vpop.f32.mrb[0].mxu0
        %v1433 = vadd.f32 %v866, %v1432
        %v1434 = vpop.f32.mrb[0].mxu0
        %1435 = vmatprep.mubr.f32.mxu0 0.0
        %1436 = vmatmul.mubr.f32.gmra.mrb[0].mxu0 %v1056
        %v1437 = vpop.f32.mrb[0].mxu0
        %v1438 = vadd.f32 %v866, %v1437
        %v1439 = vpop.f32.mrb[0].mxu0
        %1440 = vmatprep.mubr.f32.mxu0 0.0
        %1441 = vmatmul.mubr.f32.gmra.mrb[0].mxu0 %v1059
        %v1442 = vpop.f32.mrb[0].mxu0
        %v1443 = vadd.f32 %v866, %v1442
        %v1444 = vpop.f32.mrb[0].mxu0
        %1445 = vdwg.mxu0
        %v1446 = vmax.f32 %v1128, 0.0
        %v1447 = vmax.f32 %v1133, 0.0
        %v1448 = vmax.f32 %v1138, 0.0
        %v1449 = vmax.f32 %v1143, 0.0
        %v1450 = vmax.f32 %v1148, 0.0
        %v1451 = vmax.f32 %v1153, 0.0
        %v1452 = vmax.f32 %v1158, 0.0
        %v1453 = vmax.f32 %v1163, 0.0
        %v1454 = vmax.f32 %v1168, 0.0
        %v1455 = vmax.f32 %v1173, 0.0
        %v1456 = vmax.f32 %v1178, 0.0
        %v1457 = vmax.f32 %v1183, 0.0
        %v1458 = vmax.f32 %v1188, 0.0
        %v1459 = vmax.f32 %v1193, 0.0
        %v1460 = vmax.f32 %v1198, 0.0
        %v1461 = vmax.f32 %v1203, 0.0
        %v1462 = vmax.f32 %v1208, 0.0
        %v1463 = vmax.f32 %v1213, 0.0
        %v1464 = vmax.f32 %v1218, 0.0
        %v1465 = vmax.f32 %v1223, 0.0
        %v1466 = vmax.f32 %v1228, 0.0
        %v1467 = vmax.f32 %v1233, 0.0
        %v1468 = vmax.f32 %v1238, 0.0
        %v1469 = vmax.f32 %v1243, 0.0
        %v1470 = vmax.f32 %v1248, 0.0
        %v1471 = vmax.f32 %v1253, 0.0
        %v1472 = vmax.f32 %v1258, 0.0
        %v1473 = vmax.f32 %v1263, 0.0
        %v1474 = vmax.f32 %v1268, 0.0
        %v1475 = vmax.f32 %v1273, 0.0
        %v1476 = vmax.f32 %v1278, 0.0
        %v1477 = vmax.f32 %v1283, 0.0
        %v1478 = vmax.f32 %v1288, 0.0
        %v1479 = vmax.f32 %v1293, 0.0
        %v1480 = vmax.f32 %v1298, 0.0
        %v1481 = vmax.f32 %v1303, 0.0
        %v1482 = vmax.f32 %v1308, 0.0
        %v1483 = vmax.f32 %v1313, 0.0
        %v1484 = vmax.f32 %v1318, 0.0
        %v1485 = vmax.f32 %v1323, 0.0
        %v1486 = vmax.f32 %v1328, 0.0
        %v1487 = vmax.f32 %v1333, 0.0
        %v1488 = vmax.f32 %v1338, 0.0
        %v1489 = vmax.f32 %v1343, 0.0
        %v1490 = vmax.f32 %v1348, 0.0
        %v1491 = vmax.f32 %v1353, 0.0
        %v1492 = vmax.f32 %v1358, 0.0
        %v1493 = vmax.f32 %v1363, 0.0
        %v1494 = vmax.f32 %v1368, 0.0
        %v1495 = vmax.f32 %v1373, 0.0
        %v1496 = vmax.f32 %v1378, 0.0
        %v1497 = vmax.f32 %v1383, 0.0
        %v1498 = vmax.f32 %v1388, 0.0
        %v1499 = vmax.f32 %v1393, 0.0
        %v1500 = vmax.f32 %v1398, 0.0
        %v1501 = vmax.f32 %v1403, 0.0
        %v1502 = vmax.f32 %v1408, 0.0
        %v1503 = vmax.f32 %v1413, 0.0
        %v1504 = vmax.f32 %v1418, 0.0
        %v1505 = vmax.f32 %v1423, 0.0
        %v1506 = vmax.f32 %v1428, 0.0
        %v1507 = vmax.f32 %v1433, 0.0
        %v1508 = vmax.f32 %v1438, 0.0
        %v1509 = vmax.f32 %v1443, 0.0
        %v1510 = vld [vmem:[%s10] sm:$0xff]
        %v1511 = vld [vmem:[%s10 + $0x8] sm:$0xff]
        %v1512 = vld [vmem:[%s10 + $0x10] sm:$0xff]
        %v1513 = vld [vmem:[%s10 + $0x18] sm:$0xff]
        %1514 = vmatprep.subr.mxu0 0.0
        %1515 = vmatpush1.msra.mxu0 %v1446
        %1516 = vmatprep.subr.mxu0 0.0
        %1517 = vmatpush1.msra.mxu0 %v1447
        %1518 = vmatprep.subr.mxu0 0.0
        %1519 = vmatpush1.msra.mxu0 %v1448
        %1520 = vmatprep.subr.mxu0 0.0
        %1521 = vmatpush1.msra.mxu0 %v1449
        %1522 = vmatprep.subr.mxu0 0.0
        %1523 = vmatpush1.msra.mxu0 %v1450
        %1524 = vmatprep.subr.mxu0 0.0
        %1525 = vmatpush1.msra.mxu0 %v1451
        %1526 = vmatprep.subr.mxu0 0.0
        %1527 = vmatpush1.msra.mxu0 %v1452
        %1528 = vmatprep.subr.mxu0 0.0
        %1529 = vmatpush1.msra.mxu0 %v1453
        %1530 = vmatprep.subr.mxu0 0.0
        %1531 = vmatpush1.msra.mxu0 %v1454
        %1532 = vmatprep.subr.mxu0 0.0
        %1533 = vmatpush1.msra.mxu0 %v1455
        %1534 = vmatprep.subr.mxu0 0.0
        %1535 = vmatpush1.msra.mxu0 %v1456
        %1536 = vmatprep.subr.mxu0 0.0
        %1537 = vmatpush1.msra.mxu0 %v1457
        %1538 = vmatprep.subr.mxu0 0.0
        %1539 = vmatpush1.msra.mxu0 %v1458
        %1540 = vmatprep.subr.mxu0 0.0
        %1541 = vmatpush1.msra.mxu0 %v1459
        %1542 = vmatprep.subr.mxu0 0.0
        %1543 = vmatpush1.msra.mxu0 %v1460
        %1544 = vmatprep.subr.mxu0 0.0
        %1545 = vmatpush1.msra.mxu0 %v1461
        %1546 = vmatprep.subr.mxu0 0.0
        %1547 = vmatpush1.msra.mxu0 %v1462
        %1548 = vmatprep.subr.mxu0 0.0
        %1549 = vmatpush1.msra.mxu0 %v1463
        %1550 = vmatprep.subr.mxu0 0.0
        %1551 = vmatpush1.msra.mxu0 %v1464
        %1552 = vmatprep.subr.mxu0 0.0
        %1553 = vmatpush1.msra.mxu0 %v1465
        %1554 = vmatprep.subr.mxu0 0.0
        %1555 = vmatpush1.msra.mxu0 %v1466
        %1556 = vmatprep.subr.mxu0 0.0
        %1557 = vmatpush1.msra.mxu0 %v1467
        %1558 = vmatprep.subr.mxu0 0.0
        %1559 = vmatpush1.msra.mxu0 %v1468
        %1560 = vmatprep.subr.mxu0 0.0
        %1561 = vmatpush1.msra.mxu0 %v1469
        %1562 = vmatprep.subr.mxu0 0.0
        %1563 = vmatpush1.msra.mxu0 %v1470
        %1564 = vmatprep.subr.mxu0 0.0
        %1565 = vmatpush1.msra.mxu0 %v1471
        %1566 = vmatprep.subr.mxu0 0.0
        %1567 = vmatpush1.msra.mxu0 %v1472
        %1568 = vmatprep.subr.mxu0 0.0
        %1569 = vmatpush1.msra.mxu0 %v1473
        %1570 = vmatprep.subr.mxu0 0.0
        %1571 = vmatpush1.msra.mxu0 %v1474
        %1572 = vmatprep.subr.mxu0 0.0
        %1573 = vmatpush1.msra.mxu0 %v1475
        %1574 = vmatprep.subr.mxu0 0.0
        %1575 = vmatpush1.msra.mxu0 %v1476
        %1576 = vmatprep.subr.mxu0 0.0
        %1577 = vmatpush1.msra.mxu0 %v1477
        %1578 = vmatprep.mubr.f32.mxu0 %v1511
        %1579 = vmatmul.mubr.f32.gmra.mrb[0].mxu0 %v1510
        %v1580 = vpop.f32.mrb[0].mxu0
        %v1581 = vadd.f32 0.0, %v1580
        %v1582 = vpop.f32.mrb[0].mxu0
        %1583 = vdwg.mxu0
        %1584 = vmatprep.subr.mxu0 0.0
        %1585 = vmatpush1.msra.mxu0 %v1478
        %1586 = vmatprep.subr.mxu0 0.0
        %1587 = vmatpush1.msra.mxu0 %v1479
        %1588 = vmatprep.subr.mxu0 0.0
        %1589 = vmatpush1.msra.mxu0 %v1480
        %1590 = vmatprep.subr.mxu0 0.0
        %1591 = vmatpush1.msra.mxu0 %v1481
        %1592 = vmatprep.subr.mxu0 0.0
        %1593 = vmatpush1.msra.mxu0 %v1482
        %1594 = vmatprep.subr.mxu0 0.0
        %1595 = vmatpush1.msra.mxu0 %v1483
        %1596 = vmatprep.subr.mxu0 0.0
        %1597 = vmatpush1.msra.mxu0 %v1484
        %1598 = vmatprep.subr.mxu0 0.0
        %1599 = vmatpush1.msra.mxu0 %v1485
        %1600 = vmatprep.subr.mxu0 0.0
        %1601 = vmatpush1.msra.mxu0 %v1486
        %1602 = vmatprep.subr.mxu0 0.0
        %1603 = vmatpush1.msra.mxu0 %v1487
        %1604 = vmatprep.subr.mxu0 0.0
        %1605 = vmatpush1.msra.mxu0 %v1488
        %1606 = vmatprep.subr.mxu0 0.0
        %1607 = vmatpush1.msra.mxu0 %v1489
        %1608 = vmatprep.subr.mxu0 0.0
        %1609 = vmatpush1.msra.mxu0 %v1490
        %1610 = vmatprep.subr.mxu0 0.0
        %1611 = vmatpush1.msra.mxu0 %v1491
        %1612 = vmatprep.subr.mxu0 0.0
        %1613 = vmatpush1.msra.mxu0 %v1492
        %1614 = vmatprep.subr.mxu0 0.0
        %1615 = vmatpush1.msra.mxu0 %v1493
        %1616 = vmatprep.subr.mxu0 0.0
        %1617 = vmatpush1.msra.mxu0 %v1494
        %1618 = vmatprep.subr.mxu0 0.0
        %1619 = vmatpush1.msra.mxu0 %v1495
        %1620 = vmatprep.subr.mxu0 0.0
        %1621 = vmatpush1.msra.mxu0 %v1496
        %1622 = vmatprep.subr.mxu0 0.0
        %1623 = vmatpush1.msra.mxu0 %v1497
        %1624 = vmatprep.subr.mxu0 0.0
        %1625 = vmatpush1.msra.mxu0 %v1498
        %1626 = vmatprep.subr.mxu0 0.0
        %1627 = vmatpush1.msra.mxu0 %v1499
        %1628 = vmatprep.subr.mxu0 0.0
        %1629 = vmatpush1.msra.mxu0 %v1500
        %1630 = vmatprep.subr.mxu0 0.0
        %1631 = vmatpush1.msra.mxu0 %v1501
        %1632 = vmatprep.subr.mxu0 0.0
        %1633 = vmatpush1.msra.mxu0 %v1502
        %1634 = vmatprep.subr.mxu0 0.0
        %1635 = vmatpush1.msra.mxu0 %v1503
        %1636 = vmatprep.subr.mxu0 0.0
        %1637 = vmatpush1.msra.mxu0 %v1504
        %1638 = vmatprep.subr.mxu0 0.0
        %1639 = vmatpush1.msra.mxu0 %v1505
        %1640 = vmatprep.subr.mxu0 0.0
        %1641 = vmatpush1.msra.mxu0 %v1506
        %1642 = vmatprep.subr.mxu0 0.0
        %1643 = vmatpush1.msra.mxu0 %v1507
        %1644 = vmatprep.subr.mxu0 0.0
        %1645 = vmatpush1.msra.mxu0 %v1508
        %1646 = vmatprep.subr.mxu0 0.0
        %1647 = vmatpush1.msra.mxu0 %v1509
        %1648 = vmatprep.mubr.f32.mxu0 %v1513
        %1649 = vmatmul.mubr.f32.gmra.mrb[0].mxu0 %v1512
        %v1650 = vpop.f32.mrb[0].mxu0
        %v1651 = vadd.f32 %v1581, %v1650
        %v1652 = vpop.f32.mrb[0].mxu0
        %1653 = vdwg.mxu0
        %v1654 = vld [vmem:[%s6] sm:$0xff]
        %v1655 = vld [vmem:[%s6 + $0x8] sm:$0xff]
        %v1656 = vld [vmem:[%s6 + $0x10] sm:$0xff]
        %v1657 = vld [vmem:[%s6 + $0x18] sm:$0xff]
        %v1658 = vld [vmem:[%s6 + $0x20] sm:$0xff]
        %v1659 = vld [vmem:[%s6 + $0x28] sm:$0xff]
        %v1660 = vld [vmem:[%s6 + $0x30] sm:$0xff]
        %v1661 = vld [vmem:[%s6 + $0x38] sm:$0xff]
        %v1662 = vld [vmem:[%s6 + $0x40] sm:$0xff]
        %v1663 = vld [vmem:[%s6 + $0x48] sm:$0xff]
        %v1664 = vld [vmem:[%s6 + $0x50] sm:$0xff]
        %v1665 = vld [vmem:[%s6 + $0x58] sm:$0xff]
        %v1666 = vld [vmem:[%s6 + $0x60] sm:$0xff]
        %v1667 = vld [vmem:[%s6 + $0x68] sm:$0xff]
        %v1668 = vld [vmem:[%s6 + $0x70] sm:$0xff]
        %v1669 = vld [vmem:[%s6 + $0x78] sm:$0xff]
        %v1670 = vld [vmem:[%s7] sm:$0x1]
        %v1672 = vlaneseq
        %v1673 = vshrl.u32 %v1672, 7
        %v1674 = vsub.s32 0, %v1673
        %v1675 = vrot.slane %v1670, %v1674
        %1677 = vmatprep.subr.mxu0 0.0
        %1678 = vmatpush1.msra.mxu0 %v1654
        %1679 = vmatprep.subr.mxu0 0.0
        %1680 = vmatpush1.msra.mxu0 %v1655
        %1681 = vmatprep.subr.mxu0 0.0
        %1682 = vmatpush1.msra.mxu0 %v1656
        %1683 = vmatprep.subr.mxu0 0.0
        %1684 = vmatpush1.msra.mxu0 %v1657
        %1685 = vmatprep.subr.mxu0 0.0
        %1686 = vmatpush1.msra.mxu0 %v1658
        %1687 = vmatprep.subr.mxu0 0.0
        %1688 = vmatpush1.msra.mxu0 %v1659
        %1689 = vmatprep.subr.mxu0 0.0
        %1690 = vmatpush1.msra.mxu0 %v1660
        %1691 = vmatprep.subr.mxu0 0.0
        %1692 = vmatpush1.msra.mxu0 %v1661
        %1693 = vmatprep.subr.mxu0 0.0
        %1694 = vmatpush1.msra.mxu0 %v1662
        %1695 = vmatprep.subr.mxu0 0.0
        %1696 = vmatpush1.msra.mxu0 %v1663
        %1697 = vmatprep.subr.mxu0 0.0
        %1698 = vmatpush1.msra.mxu0 %v1664
        %1699 = vmatprep.subr.mxu0 0.0
        %1700 = vmatpush1.msra.mxu0 %v1665
        %1701 = vmatprep.subr.mxu0 0.0
        %1702 = vmatpush1.msra.mxu0 %v1666
        %1703 = vmatprep.subr.mxu0 0.0
        %1704 = vmatpush1.msra.mxu0 %v1667
        %1705 = vmatprep.subr.mxu0 0.0
        %1706 = vmatpush1.msra.mxu0 %v1668
        %1707 = vmatprep.subr.mxu0 0.0
        %1708 = vmatpush1.msra.mxu0 %v1669
        %1709 = vmatprep.subr.mxu0 0.0
        %1710 = vmatpush1.msra.mxu0 0.0
        %1711 = vmatprep.subr.mxu0 0.0
        %1712 = vmatpush1.msra.mxu0 0.0
        %1713 = vmatprep.subr.mxu0 0.0
        %1714 = vmatpush1.msra.mxu0 0.0
        %1715 = vmatprep.subr.mxu0 0.0
        %1716 = vmatpush1.msra.mxu0 0.0
        %1717 = vmatprep.subr.mxu0 0.0
        %1718 = vmatpush1.msra.mxu0 0.0
        %1719 = vmatprep.subr.mxu0 0.0
        %1720 = vmatpush1.msra.mxu0 0.0
        %1721 = vmatprep.subr.mxu0 0.0
        %1722 = vmatpush1.msra.mxu0 0.0
        %1723 = vmatprep.subr.mxu0 0.0
        %1724 = vmatpush1.msra.mxu0 0.0
        %1725 = vmatprep.subr.mxu0 0.0
        %1726 = vmatpush1.msra.mxu0 0.0
        %1727 = vmatprep.subr.mxu0 0.0
        %1728 = vmatpush1.msra.mxu0 0.0
        %1729 = vmatprep.subr.mxu0 0.0
        %1730 = vmatpush1.msra.mxu0 0.0
        %1731 = vmatprep.subr.mxu0 0.0
        %1732 = vmatpush1.msra.mxu0 0.0
        %1733 = vmatprep.subr.mxu0 0.0
        %1734 = vmatpush1.msra.mxu0 0.0
        %1735 = vmatprep.subr.mxu0 0.0
        %1736 = vmatpush1.msra.mxu0 0.0
        %1737 = vmatprep.subr.mxu0 0.0
        %1738 = vmatpush1.msra.mxu0 0.0
        %1739 = vmatprep.subr.mxu0 0.0
        %1740 = vmatpush1.msra.mxu0 0.0
        %1741 = vmatprep.mubr.f32.mxu0 0.0
        %1742 = vmatmul.mubr.f32.gmra.mrb[0].mxu0 %v1651
        %v1743 = vpop.f32.mrb[0].mxu0
        %v1744 = vadd.f32 %v1675, %v1743
        %v1745 = vpop.f32.mrb[0].mxu0
        %1746 = vdwg.mxu0
        %v1747 = vmax.f32 %v1744, 0.0
        %v1748 = vld [vmem:[%s8] sm:$0xff]
        %v1749 = vld [vmem:[%s8 + $0x8] sm:$0xff]
        %v1750 = vld [vmem:[%s8 + $0x10] sm:$0xff]
        %v1751 = vld [vmem:[%s8 + $0x18] sm:$0xff]
        %v1752 = vld [vmem:[%s8 + $0x20] sm:$0xff]
        %v1753 = vld [vmem:[%s8 + $0x28] sm:$0xff]
        %v1754 = vld [vmem:[%s8 + $0x30] sm:$0xff]
        %v1755 = vld [vmem:[%s8 + $0x38] sm:$0xff]
        %v1756 = vld [vmem:[%s8 + $0x40] sm:$0xff]
        %v1757 = vld [vmem:[%s8 + $0x48] sm:$0xff]
        %v1758 = vld [vmem:[%s8 + $0x50] sm:$0xff]
        %v1759 = vld [vmem:[%s8 + $0x58] sm:$0xff]
        %v1760 = vld [vmem:[%s8 + $0x60] sm:$0xff]
        %v1761 = vld [vmem:[%s8 + $0x68] sm:$0xff]
        %v1762 = vld [vmem:[%s8 + $0x70] sm:$0xff]
        %v1763 = vld [vmem:[%s8 + $0x78] sm:$0xff]
        %v1764 = vld [vmem:[%s9] sm:$0x1]
        %v1766 = vlaneseq
        %v1767 = vshrl.u32 %v1766, 7
        %v1768 = vsub.s32 0, %v1767
        %v1769 = vrot.slane %v1764, %v1768
        %1771 = vmatprep.subr.mxu0 0.0
        %1772 = vmatpush1.msra.mxu0 %v1748
        %1773 = vmatprep.subr.mxu0 0.0
        %1774 = vmatpush1.msra.mxu0 %v1749
        %1775 = vmatprep.subr.mxu0 0.0
        %1776 = vmatpush1.msra.mxu0 %v1750
        %1777 = vmatprep.subr.mxu0 0.0
        %1778 = vmatpush1.msra.mxu0 %v1751
        %1779 = vmatprep.subr.mxu0 0.0
        %1780 = vmatpush1.msra.mxu0 %v1752
        %1781 = vmatprep.subr.mxu0 0.0
        %1782 = vmatpush1.msra.mxu0 %v1753
        %1783 = vmatprep.subr.mxu0 0.0
        %1784 = vmatpush1.msra.mxu0 %v1754
        %1785 = vmatprep.subr.mxu0 0.0
        %1786 = vmatpush1.msra.mxu0 %v1755
        %1787 = vmatprep.subr.mxu0 0.0
        %1788 = vmatpush1.msra.mxu0 %v1756
        %1789 = vmatprep.subr.mxu0 0.0
        %1790 = vmatpush1.msra.mxu0 %v1757
        %1791 = vmatprep.subr.mxu0 0.0
        %1792 = vmatpush1.msra.mxu0 %v1758
        %1793 = vmatprep.subr.mxu0 0.0
        %1794 = vmatpush1.msra.mxu0 %v1759
        %1795 = vmatprep.subr.mxu0 0.0
        %1796 = vmatpush1.msra.mxu0 %v1760
        %1797 = vmatprep.subr.mxu0 0.0
        %1798 = vmatpush1.msra.mxu0 %v1761
        %1799 = vmatprep.subr.mxu0 0.0
        %1800 = vmatpush1.msra.mxu0 %v1762
        %1801 = vmatprep.subr.mxu0 0.0
        %1802 = vmatpush1.msra.mxu0 %v1763
        %1803 = vmatprep.subr.mxu0 0.0
        %1804 = vmatpush1.msra.mxu0 0.0
        %1805 = vmatprep.subr.mxu0 0.0
        %1806 = vmatpush1.msra.mxu0 0.0
        %1807 = vmatprep.subr.mxu0 0.0
        %1808 = vmatpush1.msra.mxu0 0.0
        %1809 = vmatprep.subr.mxu0 0.0
        %1810 = vmatpush1.msra.mxu0 0.0
        %1811 = vmatprep.subr.mxu0 0.0
        %1812 = vmatpush1.msra.mxu0 0.0
        %1813 = vmatprep.subr.mxu0 0.0
        %1814 = vmatpush1.msra.mxu0 0.0
        %1815 = vmatprep.subr.mxu0 0.0
        %1816 = vmatpush1.msra.mxu0 0.0
        %1817 = vmatprep.subr.mxu0 0.0
        %1818 = vmatpush1.msra.mxu0 0.0
        %1819 = vmatprep.subr.mxu0 0.0
        %1820 = vmatpush1.msra.mxu0 0.0
        %1821 = vmatprep.subr.mxu0 0.0
        %1822 = vmatpush1.msra.mxu0 0.0
        %1823 = vmatprep.subr.mxu0 0.0
        %1824 = vmatpush1.msra.mxu0 0.0
        %1825 = vmatprep.subr.mxu0 0.0
        %1826 = vmatpush1.msra.mxu0 0.0
        %1827 = vmatprep.subr.mxu0 0.0
        %1828 = vmatpush1.msra.mxu0 0.0
        %1829 = vmatprep.subr.mxu0 0.0
        %1830 = vmatpush1.msra.mxu0 0.0
        %1831 = vmatprep.subr.mxu0 0.0
        %1832 = vmatpush1.msra.mxu0 0.0
        %1833 = vmatprep.subr.mxu0 0.0
        %1834 = vmatpush1.msra.mxu0 0.0
        %1835 = vmatprep.mubr.f32.mxu0 0.0
        %1836 = vmatmul.mubr.f32.gmra.mrb[0].mxu0 %v1747
        %v1837 = vpop.f32.mrb[0].mxu0
        %v1838 = vadd.f32 %v1769, %v1837
        %v1839 = vpop.f32.mrb[0].mxu0
        %1840 = vdwg.mxu0
        %v1841 = vmul.f32 %v1838, %v1838
        %1842 = vadd.xlane.f32.xlu0 %v1841
        %v1843 = vpop.xlane.xlu0 %1842
        %v1844 = vmax.f32 %v1843, 1e-24
        %v1845 = vrsqrt.pop %v1844
        %v1846 = vmul.f32 %v1838, %v1845
        %v1847 = vld [vmem:[%s647] sm:$0xff]
        %v1849 = vsel %vm868, %v1847, 0
        %1851 = vmatprep.subr.mxu0 0.0
        %1852 = vmatpush1.msra.mxu0 %v1846
        %1853 = vmatprep.subr.mxu0 0.0
        %1854 = vmatpush1.msra.mxu0 0.0
        %1855 = vmatprep.subr.mxu0 0.0
        %1856 = vmatpush1.msra.mxu0 0.0
        %1857 = vmatprep.subr.mxu0 0.0
        %1858 = vmatpush1.msra.mxu0 0.0
        %1859 = vmatprep.subr.mxu0 0.0
        %1860 = vmatpush1.msra.mxu0 0.0
        %1861 = vmatprep.subr.mxu0 0.0
        %1862 = vmatpush1.msra.mxu0 0.0
        %1863 = vmatprep.subr.mxu0 0.0
        %1864 = vmatpush1.msra.mxu0 0.0
        %1865 = vmatprep.subr.mxu0 0.0
        %1866 = vmatpush1.msra.mxu0 0.0
        %1867 = vmatprep.subr.mxu0 0.0
        %1868 = vmatpush1.msra.mxu0 0.0
        %1869 = vmatprep.subr.mxu0 0.0
        %1870 = vmatpush1.msra.mxu0 0.0
        %1871 = vmatprep.subr.mxu0 0.0
        %1872 = vmatpush1.msra.mxu0 0.0
        %1873 = vmatprep.subr.mxu0 0.0
        %1874 = vmatpush1.msra.mxu0 0.0
        %1875 = vmatprep.subr.mxu0 0.0
        %1876 = vmatpush1.msra.mxu0 0.0
        %1877 = vmatprep.subr.mxu0 0.0
        %1878 = vmatpush1.msra.mxu0 0.0
        %1879 = vmatprep.subr.mxu0 0.0
        %1880 = vmatpush1.msra.mxu0 0.0
        %1881 = vmatprep.subr.mxu0 0.0
        %1882 = vmatpush1.msra.mxu0 0.0
        %1883 = vmatprep.subr.mxu0 0.0
        %1884 = vmatpush1.msra.mxu0 0.0
        %1885 = vmatprep.subr.mxu0 0.0
        %1886 = vmatpush1.msra.mxu0 0.0
        %1887 = vmatprep.subr.mxu0 0.0
        %1888 = vmatpush1.msra.mxu0 0.0
        %1889 = vmatprep.subr.mxu0 0.0
        %1890 = vmatpush1.msra.mxu0 0.0
        %1891 = vmatprep.subr.mxu0 0.0
        %1892 = vmatpush1.msra.mxu0 0.0
        %1893 = vmatprep.subr.mxu0 0.0
        %1894 = vmatpush1.msra.mxu0 0.0
        %1895 = vmatprep.subr.mxu0 0.0
        %1896 = vmatpush1.msra.mxu0 0.0
        %1897 = vmatprep.subr.mxu0 0.0
        %1898 = vmatpush1.msra.mxu0 0.0
        %1899 = vmatprep.subr.mxu0 0.0
        %1900 = vmatpush1.msra.mxu0 0.0
        %1901 = vmatprep.subr.mxu0 0.0
        %1902 = vmatpush1.msra.mxu0 0.0
        %1903 = vmatprep.subr.mxu0 0.0
        %1904 = vmatpush1.msra.mxu0 0.0
        %1905 = vmatprep.subr.mxu0 0.0
        %1906 = vmatpush1.msra.mxu0 0.0
        %1907 = vmatprep.subr.mxu0 0.0
        %1908 = vmatpush1.msra.mxu0 0.0
        %1909 = vmatprep.subr.mxu0 0.0
        %1910 = vmatpush1.msra.mxu0 0.0
        %1911 = vmatprep.subr.mxu0 0.0
        %1912 = vmatpush1.msra.mxu0 0.0
        %1913 = vmatprep.subr.mxu0 0.0
        %1914 = vmatpush1.msra.mxu0 0.0
        %1915 = vmatprep.mubr.f32.mxu0 0.0
        %1916 = vmatmul.mubr.f32.gmra.mrb[0].mxu0 %v1849
        %v1917 = vpop.f32.mrb[0].mxu0
        %v1918 = vadd.f32 0.0, %v1917
        %v1919 = vpop.f32.mrb[0].mxu0
        %1920 = vdwg.mxu0
        %1921 = vst [vmem:[%s655] sm:$0xff] %v1918
        %v1922 = vld [vmem:[%s0] sm:$0xff]
        %v1923 = vmul.f32 %v1922, %v1918
        %1924 = vadd.xlane.f32.xlu0 %v1923
        %v1925 = vpop.xlane.xlu0 %1924
        %v1926 = vmul.f32 %v1925, 10.0
        %v1927 = vld [vmem:[%s19] sm:$0xff]
        %v1928 = vld [vmem:[%s19 + $0x8] sm:$0xff]
        %v1929 = vld [vmem:[%s19 + $0x10] sm:$0xff]
        %v1930 = vld [vmem:[%s19 + $0x18] sm:$0xff]
        %v1931 = vld [vmem:[%s19 + $0x20] sm:$0xff]
        %v1932 = vld [vmem:[%s19 + $0x28] sm:$0xff]
        %v1933 = vld [vmem:[%s19 + $0x30] sm:$0xff]
        %v1934 = vld [vmem:[%s19 + $0x38] sm:$0xff]
        %v1935 = vld [vmem:[%s19 + $0x40] sm:$0xff]
        %v1936 = vld [vmem:[%s19 + $0x48] sm:$0xff]
        %v1937 = vld [vmem:[%s19 + $0x50] sm:$0xff]
        %v1938 = vld [vmem:[%s19 + $0x58] sm:$0xff]
        %v1939 = vld [vmem:[%s19 + $0x60] sm:$0xff]
        %v1940 = vld [vmem:[%s19 + $0x68] sm:$0xff]
        %v1941 = vld [vmem:[%s19 + $0x70] sm:$0xff]
        %v1942 = vld [vmem:[%s19 + $0x78] sm:$0xff]
        %v1943 = vld [vmem:[%s19 + $0x80] sm:$0xff]
        %v1944 = vld [vmem:[%s19 + $0x88] sm:$0xff]
        %v1945 = vld [vmem:[%s19 + $0x90] sm:$0xff]
        %v1946 = vld [vmem:[%s19 + $0x98] sm:$0xff]
        %v1947 = vld [vmem:[%s19 + $0xa0] sm:$0xff]
        %v1948 = vld [vmem:[%s19 + $0xa8] sm:$0xff]
        %v1949 = vld [vmem:[%s19 + $0xb0] sm:$0xff]
        %v1950 = vld [vmem:[%s19 + $0xb8] sm:$0xff]
        %v1951 = vld [vmem:[%s19 + $0xc0] sm:$0xff]
        %v1952 = vld [vmem:[%s19 + $0xc8] sm:$0xff]
        %v1953 = vld [vmem:[%s19 + $0xd0] sm:$0xff]
        %v1954 = vld [vmem:[%s19 + $0xd8] sm:$0xff]
        %v1955 = vld [vmem:[%s19 + $0xe0] sm:$0xff]
        %v1956 = vld [vmem:[%s19 + $0xe8] sm:$0xff]
        %v1957 = vld [vmem:[%s19 + $0xf0] sm:$0xff]
        %v1958 = vld [vmem:[%s19 + $0xf8] sm:$0xff]
        %v1959 = vld [vmem:[%s19 + $0x100] sm:$0xff]
        %v1960 = vld [vmem:[%s19 + $0x108] sm:$0xff]
        %v1961 = vld [vmem:[%s19 + $0x110] sm:$0xff]
        %v1962 = vld [vmem:[%s19 + $0x118] sm:$0xff]
        %v1963 = vld [vmem:[%s19 + $0x120] sm:$0xff]
        %v1964 = vld [vmem:[%s19 + $0x128] sm:$0xff]
        %v1965 = vld [vmem:[%s19 + $0x130] sm:$0xff]
        %v1966 = vld [vmem:[%s19 + $0x138] sm:$0xff]
        %v1967 = vld [vmem:[%s19 + $0x140] sm:$0xff]
        %v1968 = vld [vmem:[%s19 + $0x148] sm:$0xff]
        %v1969 = vld [vmem:[%s19 + $0x150] sm:$0xff]
        %v1970 = vld [vmem:[%s19 + $0x158] sm:$0xff]
        %v1971 = vld [vmem:[%s19 + $0x160] sm:$0xff]
        %v1972 = vld [vmem:[%s19 + $0x168] sm:$0xff]
        %v1973 = vld [vmem:[%s19 + $0x170] sm:$0xff]
        %v1974 = vld [vmem:[%s19 + $0x178] sm:$0xff]
        %v1975 = vld [vmem:[%s19 + $0x180] sm:$0xff]
        %v1976 = vld [vmem:[%s19 + $0x188] sm:$0xff]
        %v1977 = vld [vmem:[%s19 + $0x190] sm:$0xff]
        %v1978 = vld [vmem:[%s19 + $0x198] sm:$0xff]
        %v1979 = vld [vmem:[%s19 + $0x1a0] sm:$0xff]
        %v1980 = vld [vmem:[%s19 + $0x1a8] sm:$0xff]
        %v1981 = vld [vmem:[%s19 + $0x1b0] sm:$0xff]
        %v1982 = vld [vmem:[%s19 + $0x1b8] sm:$0xff]
        %v1983 = vld [vmem:[%s19 + $0x1c0] sm:$0xff]
        %v1984 = vld [vmem:[%s19 + $0x1c8] sm:$0xff]
        %v1985 = vld [vmem:[%s19 + $0x1d0] sm:$0xff]
        %v1986 = vld [vmem:[%s19 + $0x1d8] sm:$0xff]
        %v1987 = vld [vmem:[%s19 + $0x1e0] sm:$0xff]
        %v1988 = vld [vmem:[%s19 + $0x1e8] sm:$0xff]
        %v1989 = vld [vmem:[%s19 + $0x1f0] sm:$0xff]
        %v1990 = vld [vmem:[%s19 + $0x1f8] sm:$0xff]
        %1991 = vmatprep.subr.mxu0 0.0
        %1992 = vmatpush1.xpose.msra.mxu0 %v1927
        %1993 = vmatprep.subr.mxu0 0.0
        %1994 = vmatpush1.xpose.msra.mxu0 %v1928
        %1995 = vmatprep.subr.mxu0 0.0
        %1996 = vmatpush1.xpose.msra.mxu0 %v1929
        %1997 = vmatprep.subr.mxu0 0.0
        %1998 = vmatpush1.xpose.msra.mxu0 %v1930
        %1999 = vmatprep.subr.mxu0 0.0
        %2000 = vmatpush1.xpose.msra.mxu0 %v1931
        %2001 = vmatprep.subr.mxu0 0.0
        %2002 = vmatpush1.xpose.msra.mxu0 %v1932
        %2003 = vmatprep.subr.mxu0 0.0
        %2004 = vmatpush1.xpose.msra.mxu0 %v1933
        %2005 = vmatprep.subr.mxu0 0.0
        %2006 = vmatpush1.xpose.msra.mxu0 %v1934
        %2007 = vmatprep.subr.mxu0 0.0
        %2008 = vmatpush1.xpose.msra.mxu0 %v1935
        %2009 = vmatprep.subr.mxu0 0.0
        %2010 = vmatpush1.xpose.msra.mxu0 %v1936
        %2011 = vmatprep.subr.mxu0 0.0
        %2012 = vmatpush1.xpose.msra.mxu0 %v1937
        %2013 = vmatprep.subr.mxu0 0.0
        %2014 = vmatpush1.xpose.msra.mxu0 %v1938
        %2015 = vmatprep.subr.mxu0 0.0
        %2016 = vmatpush1.xpose.msra.mxu0 %v1939
        %2017 = vmatprep.subr.mxu0 0.0
        %2018 = vmatpush1.xpose.msra.mxu0 %v1940
        %2019 = vmatprep.subr.mxu0 0.0
        %2020 = vmatpush1.xpose.msra.mxu0 %v1941
        %2021 = vmatprep.subr.mxu0 0.0
        %2022 = vmatpush1.xpose.msra.mxu0 %v1942
        %2023 = vmatprep.subr.mxu0 0.0
        %2024 = vmatpush1.xpose.msra.mxu0 %v1943
        %2025 = vmatprep.subr.mxu0 0.0
        %2026 = vmatpush1.xpose.msra.mxu0 %v1944
        %2027 = vmatprep.subr.mxu0 0.0
        %2028 = vmatpush1.xpose.msra.mxu0 %v1945
        %2029 = vmatprep.subr.mxu0 0.0
        %2030 = vmatpush1.xpose.msra.mxu0 %v1946
        %2031 = vmatprep.subr.mxu0 0.0
        %2032 = vmatpush1.xpose.msra.mxu0 %v1947
        %2033 = vmatprep.subr.mxu0 0.0
        %2034 = vmatpush1.xpose.msra.mxu0 %v1948
        %2035 = vmatprep.subr.mxu0 0.0
        %2036 = vmatpush1.xpose.msra.mxu0 %v1949
        %2037 = vmatprep.subr.mxu0 0.0
        %2038 = vmatpush1.xpose.msra.mxu0 %v1950
        %2039 = vmatprep.subr.mxu0 0.0
        %2040 = vmatpush1.xpose.msra.mxu0 %v1951
        %2041 = vmatprep.subr.mxu0 0.0
        %2042 = vmatpush1.xpose.msra.mxu0 %v1952
        %2043 = vmatprep.subr.mxu0 0.0
        %2044 = vmatpush1.xpose.msra.mxu0 %v1953
        %2045 = vmatprep.subr.mxu0 0.0
        %2046 = vmatpush1.xpose.msra.mxu0 %v1954
        %2047 = vmatprep.subr.mxu0 0.0
        %2048 = vmatpush1.xpose.msra.mxu0 %v1955
        %2049 = vmatprep.subr.mxu0 0.0
        %2050 = vmatpush1.xpose.msra.mxu0 %v1956
        %2051 = vmatprep.subr.mxu0 0.0
        %2052 = vmatpush1.xpose.msra.mxu0 %v1957
        %2053 = vmatprep.subr.mxu0 0.0
        %2054 = vmatpush1.xpose.msra.mxu0 %v1958
        %2055 = vmatprep.mubr.f32.mxu0 0.0
        %2056 = vmatmul.mubr.f32.gmra.mrb[0].mxu0 %v1922
        %v2057 = vpop.f32.mrb[0].mxu0
        %v2058 = vadd.f32 0.0, %v2057
        %v2059 = vpop.f32.mrb[0].mxu0
        %v2060 = vadd.f32 0.0, %v2059
        %2061 = vdwg.mxu0
        %2062 = vmatprep.subr.mxu0 0.0
        %2063 = vmatpush1.xpose.msra.mxu0 %v1959
        %2064 = vmatprep.subr.mxu0 0.0
        %2065 = vmatpush1.xpose.msra.mxu0 %v1960
        %2066 = vmatprep.subr.mxu0 0.0
        %2067 = vmatpush1.xpose.msra.mxu0 %v1961
        %2068 = vmatprep.subr.mxu0 0.0
        %2069 = vmatpush1.xpose.msra.mxu0 %v1962
        %2070 = vmatprep.subr.mxu0 0.0
        %2071 = vmatpush1.xpose.msra.mxu0 %v1963
        %2072 = vmatprep.subr.mxu0 0.0
        %2073 = vmatpush1.xpose.msra.mxu0 %v1964
        %2074 = vmatprep.subr.mxu0 0.0
        %2075 = vmatpush1.xpose.msra.mxu0 %v1965
        %2076 = vmatprep.subr.mxu0 0.0
        %2077 = vmatpush1.xpose.msra.mxu0 %v1966
        %2078 = vmatprep.subr.mxu0 0.0
        %2079 = vmatpush1.xpose.msra.mxu0 %v1967
        %2080 = vmatprep.subr.mxu0 0.0
        %2081 = vmatpush1.xpose.msra.mxu0 %v1968
        %2082 = vmatprep.subr.mxu0 0.0
        %2083 = vmatpush1.xpose.msra.mxu0 %v1969
        %2084 = vmatprep.subr.mxu0 0.0
        %2085 = vmatpush1.xpose.msra.mxu0 %v1970
        %2086 = vmatprep.subr.mxu0 0.0
        %2087 = vmatpush1.xpose.msra.mxu0 %v1971
        %2088 = vmatprep.subr.mxu0 0.0
        %2089 = vmatpush1.xpose.msra.mxu0 %v1972
        %2090 = vmatprep.subr.mxu0 0.0
        %2091 = vmatpush1.xpose.msra.mxu0 %v1973
        %2092 = vmatprep.subr.mxu0 0.0
        %2093 = vmatpush1.xpose.msra.mxu0 %v1974
        %2094 = vmatprep.subr.mxu0 0.0
        %2095 = vmatpush1.xpose.msra.mxu0 %v1975
        %2096 = vmatprep.subr.mxu0 0.0
        %2097 = vmatpush1.xpose.msra.mxu0 %v1976
        %2098 = vmatprep.subr.mxu0 0.0
        %2099 = vmatpush1.xpose.msra.mxu0 %v1977
        %2100 = vmatprep.subr.mxu0 0.0
        %2101 = vmatpush1.xpose.msra.mxu0 %v1978
        %2102 = vmatprep.subr.mxu0 0.0
        %2103 = vmatpush1.xpose.msra.mxu0 %v1979
        %2104 = vmatprep.subr.mxu0 0.0
        %2105 = vmatpush1.xpose.msra.mxu0 %v1980
        %2106 = vmatprep.subr.mxu0 0.0
        %2107 = vmatpush1.xpose.msra.mxu0 %v1981
        %2108 = vmatprep.subr.mxu0 0.0
        %2109 = vmatpush1.xpose.msra.mxu0 %v1982
        %2110 = vmatprep.subr.mxu0 0.0
        %2111 = vmatpush1.xpose.msra.mxu0 %v1983
        %2112 = vmatprep.subr.mxu0 0.0
        %2113 = vmatpush1.xpose.msra.mxu0 %v1984
        %2114 = vmatprep.subr.mxu0 0.0
        %2115 = vmatpush1.xpose.msra.mxu0 %v1985
        %2116 = vmatprep.subr.mxu0 0.0
        %2117 = vmatpush1.xpose.msra.mxu0 %v1986
        %2118 = vmatprep.subr.mxu0 0.0
        %2119 = vmatpush1.xpose.msra.mxu0 %v1987
        %2120 = vmatprep.subr.mxu0 0.0
        %2121 = vmatpush1.xpose.msra.mxu0 %v1988
        %2122 = vmatprep.subr.mxu0 0.0
        %2123 = vmatpush1.xpose.msra.mxu0 %v1989
        %2124 = vmatprep.subr.mxu0 0.0
        %2125 = vmatpush1.xpose.msra.mxu0 %v1990
        %2126 = vmatprep.mubr.f32.mxu0 0.0
        %2127 = vmatmul.mubr.f32.gmra.mrb[0].mxu0 %v1922
        %v2128 = vpop.f32.mrb[0].mxu0
        %v2129 = vadd.f32 0.0, %v2128
        %v2130 = vpop.f32.mrb[0].mxu0
        %v2131 = vadd.f32 0.0, %v2130
        %2132 = vdwg.mxu0
        %v2133 = vmul.f32 %v2058, 10.0
        %v2134 = vmul.f32 %v2060, 10.0
        %v2135 = vmul.f32 %v2129, 10.0
        %v2136 = vmul.f32 %v2131, 10.0
        %v2137 = vld [vmem:[%s12] sm:$0xff]
        %v2138 = vld [vmem:[%s20] sm:$0xf]
        %2139 = vset.pattern.permute.xlu0 0
        %2140 = vperm.xlu0 %2139, %v2137
        %v2141 = vpop.permute.xlu0 %2140
        %v2142 = vlaneseq
        %v2143 = vshrl.u32 %v2142, 7
        %v2144 = vsub.s32 0, %v2143
        %v2145 = vrot.slane %v2138, %v2144
        %v2146 = vlaneseq
        %v2147 = vshrl.u32 %v2146, 7
        %v2148 = vsub.s32 1, %v2147
        %v2149 = vrot.slane %v2138, %v2148
        %v2150 = vlaneseq
        %v2151 = vshrl.u32 %v2150, 7
        %v2152 = vsub.s32 2, %v2151
        %v2153 = vrot.slane %v2138, %v2152
        %v2154 = vlaneseq
        %v2155 = vshrl.u32 %v2154, 7
        %v2156 = vsub.s32 3, %v2155
        %v2157 = vrot.slane %v2138, %v2156
        %vm2158 = vcmp.eq.s32.totalorder %v2141, %v2145
        %vm2159 = vcmp.eq.s32.totalorder %v2141, %v2149
        %vm2160 = vcmp.eq.s32.totalorder %v2141, %v2153
        %vm2161 = vcmp.eq.s32.totalorder %v2141, %v2157
        %v2162 = vsel %vm2158, 1, 0
        %v2163 = vsel %vm2159, 1, 0
        %v2164 = vsel %vm2160, 1, 0
        %v2165 = vsel %vm2161, 1, 0
        %v2166 = vcvt.s32.f32 %v2162
        %v2167 = vcvt.s32.f32 %v2163
        %v2168 = vcvt.s32.f32 %v2164
        %v2169 = vcvt.s32.f32 %v2165
        %v2170 = vld [vmem:[%s11] sm:$0xff]
        %v2171 = vld [vmem:[%s11 + $0x8] sm:$0xff]
        %v2172 = vld [vmem:[%s11 + $0x10] sm:$0xff]
        %v2173 = vld [vmem:[%s11 + $0x18] sm:$0xff]
        %v2174 = vld [vmem:[%s11 + $0x20] sm:$0xff]
        %v2175 = vld [vmem:[%s11 + $0x28] sm:$0xff]
        %v2176 = vld [vmem:[%s11 + $0x30] sm:$0xff]
        %v2177 = vld [vmem:[%s11 + $0x38] sm:$0xff]
        %v2178 = vld [vmem:[%s11 + $0x40] sm:$0xff]
        %v2179 = vld [vmem:[%s11 + $0x48] sm:$0xff]
        %v2180 = vld [vmem:[%s11 + $0x50] sm:$0xff]
        %v2181 = vld [vmem:[%s11 + $0x58] sm:$0xff]
        %v2182 = vld [vmem:[%s11 + $0x60] sm:$0xff]
        %v2183 = vld [vmem:[%s11 + $0x68] sm:$0xff]
        %v2184 = vld [vmem:[%s11 + $0x70] sm:$0xff]
        %v2185 = vld [vmem:[%s11 + $0x78] sm:$0xff]
        %v2186 = vld [vmem:[%s11 + $0x80] sm:$0xff]
        %v2187 = vld [vmem:[%s11 + $0x88] sm:$0xff]
        %v2188 = vld [vmem:[%s11 + $0x90] sm:$0xff]
        %v2189 = vld [vmem:[%s11 + $0x98] sm:$0xff]
        %v2190 = vld [vmem:[%s11 + $0xa0] sm:$0xff]
        %v2191 = vld [vmem:[%s11 + $0xa8] sm:$0xff]
        %v2192 = vld [vmem:[%s11 + $0xb0] sm:$0xff]
        %v2193 = vld [vmem:[%s11 + $0xb8] sm:$0xff]
        %v2194 = vld [vmem:[%s11 + $0xc0] sm:$0xff]
        %v2195 = vld [vmem:[%s11 + $0xc8] sm:$0xff]
        %v2196 = vld [vmem:[%s11 + $0xd0] sm:$0xff]
        %v2197 = vld [vmem:[%s11 + $0xd8] sm:$0xff]
        %v2198 = vld [vmem:[%s11 + $0xe0] sm:$0xff]
        %v2199 = vld [vmem:[%s11 + $0xe8] sm:$0xff]
        %v2200 = vld [vmem:[%s11 + $0xf0] sm:$0xff]
        %v2201 = vld [vmem:[%s11 + $0xf8] sm:$0xff]
        %v2202 = vld [vmem:[%s11 + $0x100] sm:$0xff]
        %v2203 = vld [vmem:[%s11 + $0x108] sm:$0xff]
        %v2204 = vld [vmem:[%s11 + $0x110] sm:$0xff]
        %v2205 = vld [vmem:[%s11 + $0x118] sm:$0xff]
        %v2206 = vld [vmem:[%s11 + $0x120] sm:$0xff]
        %v2207 = vld [vmem:[%s11 + $0x128] sm:$0xff]
        %v2208 = vld [vmem:[%s11 + $0x130] sm:$0xff]
        %v2209 = vld [vmem:[%s11 + $0x138] sm:$0xff]
        %v2210 = vld [vmem:[%s11 + $0x140] sm:$0xff]
        %v2211 = vld [vmem:[%s11 + $0x148] sm:$0xff]
        %v2212 = vld [vmem:[%s11 + $0x150] sm:$0xff]
        %v2213 = vld [vmem:[%s11 + $0x158] sm:$0xff]
        %v2214 = vld [vmem:[%s11 + $0x160] sm:$0xff]
        %v2215 = vld [vmem:[%s11 + $0x168] sm:$0xff]
        %v2216 = vld [vmem:[%s11 + $0x170] sm:$0xff]
        %v2217 = vld [vmem:[%s11 + $0x178] sm:$0xff]
        %v2218 = vld [vmem:[%s11 + $0x180] sm:$0xff]
        %v2219 = vld [vmem:[%s11 + $0x188] sm:$0xff]
        %v2220 = vld [vmem:[%s11 + $0x190] sm:$0xff]
        %v2221 = vld [vmem:[%s11 + $0x198] sm:$0xff]
        %v2222 = vld [vmem:[%s11 + $0x1a0] sm:$0xff]
        %v2223 = vld [vmem:[%s11 + $0x1a8] sm:$0xff]
        %v2224 = vld [vmem:[%s11 + $0x1b0] sm:$0xff]
        %v2225 = vld [vmem:[%s11 + $0x1b8] sm:$0xff]
        %v2226 = vld [vmem:[%s11 + $0x1c0] sm:$0xff]
        %v2227 = vld [vmem:[%s11 + $0x1c8] sm:$0xff]
        %v2228 = vld [vmem:[%s11 + $0x1d0] sm:$0xff]
        %v2229 = vld [vmem:[%s11 + $0x1d8] sm:$0xff]
        %v2230 = vld [vmem:[%s11 + $0x1e0] sm:$0xff]
        %v2231 = vld [vmem:[%s11 + $0x1e8] sm:$0xff]
        %v2232 = vld [vmem:[%s11 + $0x1f0] sm:$0xff]
        %v2233 = vld [vmem:[%s11 + $0x1f8] sm:$0xff]
        %v2234 = vld [vmem:[%s11 + $0x200] sm:$0xff]
        %v2235 = vld [vmem:[%s11 + $0x208] sm:$0xff]
        %v2236 = vld [vmem:[%s11 + $0x210] sm:$0xff]
        %v2237 = vld [vmem:[%s11 + $0x218] sm:$0xff]
        %v2238 = vld [vmem:[%s11 + $0x220] sm:$0xff]
        %v2239 = vld [vmem:[%s11 + $0x228] sm:$0xff]
        %v2240 = vld [vmem:[%s11 + $0x230] sm:$0xff]
        %v2241 = vld [vmem:[%s11 + $0x238] sm:$0xff]
        %v2242 = vld [vmem:[%s11 + $0x240] sm:$0xff]
        %v2243 = vld [vmem:[%s11 + $0x248] sm:$0xff]
        %v2244 = vld [vmem:[%s11 + $0x250] sm:$0xff]
        %v2245 = vld [vmem:[%s11 + $0x258] sm:$0xff]
        %v2246 = vld [vmem:[%s11 + $0x260] sm:$0xff]
        %v2247 = vld [vmem:[%s11 + $0x268] sm:$0xff]
        %v2248 = vld [vmem:[%s11 + $0x270] sm:$0xff]
        %v2249 = vld [vmem:[%s11 + $0x278] sm:$0xff]
        %v2250 = vld [vmem:[%s11 + $0x280] sm:$0xff]
        %v2251 = vld [vmem:[%s11 + $0x288] sm:$0xff]
        %v2252 = vld [vmem:[%s11 + $0x290] sm:$0xff]
        %v2253 = vld [vmem:[%s11 + $0x298] sm:$0xff]
        %v2254 = vld [vmem:[%s11 + $0x2a0] sm:$0xff]
        %v2255 = vld [vmem:[%s11 + $0x2a8] sm:$0xff]
        %v2256 = vld [vmem:[%s11 + $0x2b0] sm:$0xff]
        %v2257 = vld [vmem:[%s11 + $0x2b8] sm:$0xff]
        %v2258 = vld [vmem:[%s11 + $0x2c0] sm:$0xff]
        %v2259 = vld [vmem:[%s11 + $0x2c8] sm:$0xff]
        %v2260 = vld [vmem:[%s11 + $0x2d0] sm:$0xff]
        %v2261 = vld [vmem:[%s11 + $0x2d8] sm:$0xff]
        %v2262 = vld [vmem:[%s11 + $0x2e0] sm:$0xff]
        %v2263 = vld [vmem:[%s11 + $0x2e8] sm:$0xff]
        %v2264 = vld [vmem:[%s11 + $0x2f0] sm:$0xff]
        %v2265 = vld [vmem:[%s11 + $0x2f8] sm:$0xff]
        %v2266 = vld [vmem:[%s11 + $0x300] sm:$0xff]
        %v2267 = vld [vmem:[%s11 + $0x308] sm:$0xff]
        %v2268 = vld [vmem:[%s11 + $0x310] sm:$0xff]
        %v2269 = vld [vmem:[%s11 + $0x318] sm:$0xff]
        %v2270 = vld [vmem:[%s11 + $0x320] sm:$0xff]
        %v2271 = vld [vmem:[%s11 + $0x328] sm:$0xff]
        %v2272 = vld [vmem:[%s11 + $0x330] sm:$0xff]
        %v2273 = vld [vmem:[%s11 + $0x338] sm:$0xff]
        %v2274 = vld [vmem:[%s11 + $0x340] sm:$0xff]
        %v2275 = vld [vmem:[%s11 + $0x348] sm:$0xff]
        %v2276 = vld [vmem:[%s11 + $0x350] sm:$0xff]
        %v2277 = vld [vmem:[%s11 + $0x358] sm:$0xff]
        %v2278 = vld [vmem:[%s11 + $0x360] sm:$0xff]
        %v2279 = vld [vmem:[%s11 + $0x368] sm:$0xff]
        %v2280 = vld [vmem:[%s11 + $0x370] sm:$0xff]
        %v2281 = vld [vmem:[%s11 + $0x378] sm:$0xff]
        %v2282 = vld [vmem:[%s11 + $0x380] sm:$0xff]
        %v2283 = vld [vmem:[%s11 + $0x388] sm:$0xff]
        %v2284 = vld [vmem:[%s11 + $0x390] sm:$0xff]
        %v2285 = vld [vmem:[%s11 + $0x398] sm:$0xff]
        %v2286 = vld [vmem:[%s11 + $0x3a0] sm:$0xff]
        %v2287 = vld [vmem:[%s11 + $0x3a8] sm:$0xff]
        %v2288 = vld [vmem:[%s11 + $0x3b0] sm:$0xff]
        %v2289 = vld [vmem:[%s11 + $0x3b8] sm:$0xff]
        %v2290 = vld [vmem:[%s11 + $0x3c0] sm:$0xff]
        %v2291 = vld [vmem:[%s11 + $0x3c8] sm:$0xff]
        %v2292 = vld [vmem:[%s11 + $0x3d0] sm:$0xff]
        %v2293 = vld [vmem:[%s11 + $0x3d8] sm:$0xff]
        %v2294 = vld [vmem:[%s11 + $0x3e0] sm:$0xff]
        %v2295 = vld [vmem:[%s11 + $0x3e8] sm:$0xff]
        %v2296 = vld [vmem:[%s11 + $0x3f0] sm:$0xff]
        %v2297 = vld [vmem:[%s11 + $0x3f8] sm:$0xff]
        %v2298 = vld [vmem:[%s11 + $0x400] sm:$0xff]
        %v2299 = vld [vmem:[%s11 + $0x408] sm:$0xff]
        %v2300 = vld [vmem:[%s11 + $0x410] sm:$0xff]
        %v2301 = vld [vmem:[%s11 + $0x418] sm:$0xff]
        %v2302 = vld [vmem:[%s11 + $0x420] sm:$0xff]
        %v2303 = vld [vmem:[%s11 + $0x428] sm:$0xff]
        %v2304 = vld [vmem:[%s11 + $0x430] sm:$0xff]
        %v2305 = vld [vmem:[%s11 + $0x438] sm:$0xff]
        %v2306 = vld [vmem:[%s11 + $0x440] sm:$0xff]
        %v2307 = vld [vmem:[%s11 + $0x448] sm:$0xff]
        %v2308 = vld [vmem:[%s11 + $0x450] sm:$0xff]
        %v2309 = vld [vmem:[%s11 + $0x458] sm:$0xff]
        %v2310 = vld [vmem:[%s11 + $0x460] sm:$0xff]
        %v2311 = vld [vmem:[%s11 + $0x468] sm:$0xff]
        %v2312 = vld [vmem:[%s11 + $0x470] sm:$0xff]
        %v2313 = vld [vmem:[%s11 + $0x478] sm:$0xff]
        %v2314 = vld [vmem:[%s11 + $0x480] sm:$0xff]
        %v2315 = vld [vmem:[%s11 + $0x488] sm:$0xff]
        %v2316 = vld [vmem:[%s11 + $0x490] sm:$0xff]
        %v2317 = vld [vmem:[%s11 + $0x498] sm:$0xff]
        %v2318 = vld [vmem:[%s11 + $0x4a0] sm:$0xff]
        %v2319 = vld [vmem:[%s11 + $0x4a8] sm:$0xff]
        %v2320 = vld [vmem:[%s11 + $0x4b0] sm:$0xff]
        %v2321 = vld [vmem:[%s11 + $0x4b8] sm:$0xff]
        %v2322 = vld [vmem:[%s11 + $0x4c0] sm:$0xff]
        %v2323 = vld [vmem:[%s11 + $0x4c8] sm:$0xff]
        %v2324 = vld [vmem:[%s11 + $0x4d0] sm:$0xff]
        %v2325 = vld [vmem:[%s11 + $0x4d8] sm:$0xff]
        %v2326 = vld [vmem:[%s11 + $0x4e0] sm:$0xff]
        %v2327 = vld [vmem:[%s11 + $0x4e8] sm:$0xff]
        %v2328 = vld [vmem:[%s11 + $0x4f0] sm:$0xff]
        %v2329 = vld [vmem:[%s11 + $0x4f8] sm:$0xff]
        %v2330 = vld [vmem:[%s11 + $0x500] sm:$0xff]
        %v2331 = vld [vmem:[%s11 + $0x508] sm:$0xff]
        %v2332 = vld [vmem:[%s11 + $0x510] sm:$0xff]
        %v2333 = vld [vmem:[%s11 + $0x518] sm:$0xff]
        %v2334 = vld [vmem:[%s11 + $0x520] sm:$0xff]
        %v2335 = vld [vmem:[%s11 + $0x528] sm:$0xff]
        %v2336 = vld [vmem:[%s11 + $0x530] sm:$0xff]
        %v2337 = vld [vmem:[%s11 + $0x538] sm:$0xff]
        %v2338 = vld [vmem:[%s11 + $0x540] sm:$0xff]
        %v2339 = vld [vmem:[%s11 + $0x548] sm:$0xff]
        %v2340 = vld [vmem:[%s11 + $0x550] sm:$0xff]
        %v2341 = vld [vmem:[%s11 + $0x558] sm:$0xff]
        %v2342 = vld [vmem:[%s11 + $0x560] sm:$0xff]
        %v2343 = vld [vmem:[%s11 + $0x568] sm:$0xff]
        %v2344 = vld [vmem:[%s11 + $0x570] sm:$0xff]
        %v2345 = vld [vmem:[%s11 + $0x578] sm:$0xff]
        %v2346 = vld [vmem:[%s11 + $0x580] sm:$0xff]
        %v2347 = vld [vmem:[%s11 + $0x588] sm:$0xff]
        %v2348 = vld [vmem:[%s11 + $0x590] sm:$0xff]
        %v2349 = vld [vmem:[%s11 + $0x598] sm:$0xff]
        %v2350 = vld [vmem:[%s11 + $0x5a0] sm:$0xff]
        %v2351 = vld [vmem:[%s11 + $0x5a8] sm:$0xff]
        %v2352 = vld [vmem:[%s11 + $0x5b0] sm:$0xff]
        %v2353 = vld [vmem:[%s11 + $0x5b8] sm:$0xff]
        %v2354 = vld [vmem:[%s11 + $0x5c0] sm:$0xff]
        %v2355 = vld [vmem:[%s11 + $0x5c8] sm:$0xff]
        %v2356 = vld [vmem:[%s11 + $0x5d0] sm:$0xff]
        %v2357 = vld [vmem:[%s11 + $0x5d8] sm:$0xff]
        %v2358 = vld [vmem:[%s11 + $0x5e0] sm:$0xff]
        %v2359 = vld [vmem:[%s11 + $0x5e8] sm:$0xff]
        %v2360 = vld [vmem:[%s11 + $0x5f0] sm:$0xff]
        %v2361 = vld [vmem:[%s11 + $0x5f8] sm:$0xff]
        %v2362 = vld [vmem:[%s11 + $0x600] sm:$0xff]
        %v2363 = vld [vmem:[%s11 + $0x608] sm:$0xff]
        %v2364 = vld [vmem:[%s11 + $0x610] sm:$0xff]
        %v2365 = vld [vmem:[%s11 + $0x618] sm:$0xff]
        %v2366 = vld [vmem:[%s11 + $0x620] sm:$0xff]
        %v2367 = vld [vmem:[%s11 + $0x628] sm:$0xff]
        %v2368 = vld [vmem:[%s11 + $0x630] sm:$0xff]
        %v2369 = vld [vmem:[%s11 + $0x638] sm:$0xff]
        %v2370 = vld [vmem:[%s11 + $0x640] sm:$0xff]
        %v2371 = vld [vmem:[%s11 + $0x648] sm:$0xff]
        %v2372 = vld [vmem:[%s11 + $0x650] sm:$0xff]
        %v2373 = vld [vmem:[%s11 + $0x658] sm:$0xff]
        %v2374 = vld [vmem:[%s11 + $0x660] sm:$0xff]
        %v2375 = vld [vmem:[%s11 + $0x668] sm:$0xff]
        %v2376 = vld [vmem:[%s11 + $0x670] sm:$0xff]
        %v2377 = vld [vmem:[%s11 + $0x678] sm:$0xff]
        %v2378 = vld [vmem:[%s11 + $0x680] sm:$0xff]
        %v2379 = vld [vmem:[%s11 + $0x688] sm:$0xff]
        %v2380 = vld [vmem:[%s11 + $0x690] sm:$0xff]
        %v2381 = vld [vmem:[%s11 + $0x698] sm:$0xff]
        %v2382 = vld [vmem:[%s11 + $0x6a0] sm:$0xff]
        %v2383 = vld [vmem:[%s11 + $0x6a8] sm:$0xff]
        %v2384 = vld [vmem:[%s11 + $0x6b0] sm:$0xff]
        %v2385 = vld [vmem:[%s11 + $0x6b8] sm:$0xff]
        %v2386 = vld [vmem:[%s11 + $0x6c0] sm:$0xff]
        %v2387 = vld [vmem:[%s11 + $0x6c8] sm:$0xff]
        %v2388 = vld [vmem:[%s11 + $0x6d0] sm:$0xff]
        %v2389 = vld [vmem:[%s11 + $0x6d8] sm:$0xff]
        %v2390 = vld [vmem:[%s11 + $0x6e0] sm:$0xff]
        %v2391 = vld [vmem:[%s11 + $0x6e8] sm:$0xff]
        %v2392 = vld [vmem:[%s11 + $0x6f0] sm:$0xff]
        %v2393 = vld [vmem:[%s11 + $0x6f8] sm:$0xff]
        %v2394 = vld [vmem:[%s11 + $0x700] sm:$0xff]
        %v2395 = vld [vmem:[%s11 + $0x708] sm:$0xff]
        %v2396 = vld [vmem:[%s11 + $0x710] sm:$0xff]
        %v2397 = vld [vmem:[%s11 + $0x718] sm:$0xff]
        %v2398 = vld [vmem:[%s11 + $0x720] sm:$0xff]
        %v2399 = vld [vmem:[%s11 + $0x728] sm:$0xff]
        %v2400 = vld [vmem:[%s11 + $0x730] sm:$0xff]
        %v2401 = vld [vmem:[%s11 + $0x738] sm:$0xff]
        %v2402 = vld [vmem:[%s11 + $0x740] sm:$0xff]
        %v2403 = vld [vmem:[%s11 + $0x748] sm:$0xff]
        %v2404 = vld [vmem:[%s11 + $0x750] sm:$0xff]
        %v2405 = vld [vmem:[%s11 + $0x758] sm:$0xff]
        %v2406 = vld [vmem:[%s11 + $0x760] sm:$0xff]
        %v2407 = vld [vmem:[%s11 + $0x768] sm:$0xff]
        %v2408 = vld [vmem:[%s11 + $0x770] sm:$0xff]
        %v2409 = vld [vmem:[%s11 + $0x778] sm:$0xff]
        %v2410 = vld [vmem:[%s11 + $0x780] sm:$0xff]
        %v2411 = vld [vmem:[%s11 + $0x788] sm:$0xff]
        %v2412 = vld [vmem:[%s11 + $0x790] sm:$0xff]
        %v2413 = vld [vmem:[%s11 + $0x798] sm:$0xff]
        %v2414 = vld [vmem:[%s11 + $0x7a0] sm:$0xff]
        %v2415 = vld [vmem:[%s11 + $0x7a8] sm:$0xff]
        %v2416 = vld [vmem:[%s11 + $0x7b0] sm:$0xff]
        %v2417 = vld [vmem:[%s11 + $0x7b8] sm:$0xff]
        %v2418 = vld [vmem:[%s11 + $0x7c0] sm:$0xff]
        %v2419 = vld [vmem:[%s11 + $0x7c8] sm:$0xff]
        %v2420 = vld [vmem:[%s11 + $0x7d0] sm:$0xff]
        %v2421 = vld [vmem:[%s11 + $0x7d8] sm:$0xff]
        %v2422 = vld [vmem:[%s11 + $0x7e0] sm:$0xff]
        %v2423 = vld [vmem:[%s11 + $0x7e8] sm:$0xff]
        %v2424 = vld [vmem:[%s11 + $0x7f0] sm:$0xff]
        %v2425 = vld [vmem:[%s11 + $0x7f8] sm:$0xff]
        %2426 = vmatprep.subr.mxu0 %v2171
        %2427 = vmatpush1.msra.mxu0 %v2170
        %2428 = vmatprep.subr.mxu0 %v2175
        %2429 = vmatpush1.msra.mxu0 %v2174
        %2430 = vmatprep.subr.mxu0 %v2179
        %2431 = vmatpush1.msra.mxu0 %v2178
        %2432 = vmatprep.subr.mxu0 %v2183
        %2433 = vmatpush1.msra.mxu0 %v2182
        %2434 = vmatprep.subr.mxu0 %v2187
        %2435 = vmatpush1.msra.mxu0 %v2186
        %2436 = vmatprep.subr.mxu0 %v2191
        %2437 = vmatpush1.msra.mxu0 %v2190
        %2438 = vmatprep.subr.mxu0 %v2195
        %2439 = vmatpush1.msra.mxu0 %v2194
        %2440 = vmatprep.subr.mxu0 %v2199
        %2441 = vmatpush1.msra.mxu0 %v2198
        %2442 = vmatprep.subr.mxu0 %v2203
        %2443 = vmatpush1.msra.mxu0 %v2202
        %2444 = vmatprep.subr.mxu0 %v2207
        %2445 = vmatpush1.msra.mxu0 %v2206
        %2446 = vmatprep.subr.mxu0 %v2211
        %2447 = vmatpush1.msra.mxu0 %v2210
        %2448 = vmatprep.subr.mxu0 %v2215
        %2449 = vmatpush1.msra.mxu0 %v2214
        %2450 = vmatprep.subr.mxu0 %v2219
        %2451 = vmatpush1.msra.mxu0 %v2218
        %2452 = vmatprep.subr.mxu0 %v2223
        %2453 = vmatpush1.msra.mxu0 %v2222
        %2454 = vmatprep.subr.mxu0 %v2227
        %2455 = vmatpush1.msra.mxu0 %v2226
        %2456 = vmatprep.subr.mxu0 %v2231
        %2457 = vmatpush1.msra.mxu0 %v2230
        %2458 = vmatprep.subr.mxu0 %v2235
        %2459 = vmatpush1.msra.mxu0 %v2234
        %2460 = vmatprep.subr.mxu0 %v2239
        %2461 = vmatpush1.msra.mxu0 %v2238
        %2462 = vmatprep.subr.mxu0 %v2243
        %2463 = vmatpush1.msra.mxu0 %v2242
        %2464 = vmatprep.subr.mxu0 %v2247
        %2465 = vmatpush1.msra.mxu0 %v2246
        %2466 = vmatprep.subr.mxu0 %v2251
        %2467 = vmatpush1.msra.mxu0 %v2250
        %2468 = vmatprep.subr.mxu0 %v2255
        %2469 = vmatpush1.msra.mxu0 %v2254
        %2470 = vmatprep.subr.mxu0 %v2259
        %2471 = vmatpush1.msra.mxu0 %v2258
        %2472 = vmatprep.subr.mxu0 %v2263
        %2473 = vmatpush1.msra.mxu0 %v2262
        %2474 = vmatprep.subr.mxu0 %v2267
        %2475 = vmatpush1.msra.mxu0 %v2266
        %2476 = vmatprep.subr.mxu0 %v2271
        %2477 = vmatpush1.msra.mxu0 %v2270
        %2478 = vmatprep.subr.mxu0 %v2275
        %2479 = vmatpush1.msra.mxu0 %v2274
        %2480 = vmatprep.subr.mxu0 %v2279
        %2481 = vmatpush1.msra.mxu0 %v2278
        %2482 = vmatprep.subr.mxu0 %v2283
        %2483 = vmatpush1.msra.mxu0 %v2282
        %2484 = vmatprep.subr.mxu0 %v2287
        %2485 = vmatpush1.msra.mxu0 %v2286
        %2486 = vmatprep.subr.mxu0 %v2291
        %2487 = vmatpush1.msra.mxu0 %v2290
        %2488 = vmatprep.subr.mxu0 %v2295
        %2489 = vmatpush1.msra.mxu0 %v2294
        %2490 = vmatprep.mubr.f32.mxu0 %v2167
        %2491 = vmatmul.mubr.f32.gmra.mrb[0].mxu0 %v2166
        %v2492 = vpop.f32.mrb[0].mxu0
        %v2493 = vadd.f32 0.0, %v2492
        %v2494 = vpop.f32.mrb[0].mxu0
        %v2495 = vadd.f32 0.0, %v2494
        %2496 = vdwg.mxu0
        %2497 = vmatprep.subr.mxu0 %v2299
        %2498 = vmatpush1.msra.mxu0 %v2298
        %2499 = vmatprep.subr.mxu0 %v2303
        %2500 = vmatpush1.msra.mxu0 %v2302
        %2501 = vmatprep.subr.mxu0 %v2307
        %2502 = vmatpush1.msra.mxu0 %v2306
        %2503 = vmatprep.subr.mxu0 %v2311
        %2504 = vmatpush1.msra.mxu0 %v2310
        %2505 = vmatprep.subr.mxu0 %v2315
        %2506 = vmatpush1.msra.mxu0 %v2314
        %2507 = vmatprep.subr.mxu0 %v2319
        %2508 = vmatpush1.msra.mxu0 %v2318
        %2509 = vmatprep.subr.mxu0 %v2323
        %2510 = vmatpush1.msra.mxu0 %v2322
        %2511 = vmatprep.subr.mxu0 %v2327
        %2512 = vmatpush1.msra.mxu0 %v2326
        %2513 = vmatprep.subr.mxu0 %v2331
        %2514 = vmatpush1.msra.mxu0 %v2330
        %2515 = vmatprep.subr.mxu0 %v2335
        %2516 = vmatpush1.msra.mxu0 %v2334
        %2517 = vmatprep.subr.mxu0 %v2339
        %2518 = vmatpush1.msra.mxu0 %v2338
        %2519 = vmatprep.subr.mxu0 %v2343
        %2520 = vmatpush1.msra.mxu0 %v2342
        %2521 = vmatprep.subr.mxu0 %v2347
        %2522 = vmatpush1.msra.mxu0 %v2346
        %2523 = vmatprep.subr.mxu0 %v2351
        %2524 = vmatpush1.msra.mxu0 %v2350
        %2525 = vmatprep.subr.mxu0 %v2355
        %2526 = vmatpush1.msra.mxu0 %v2354
        %2527 = vmatprep.subr.mxu0 %v2359
        %2528 = vmatpush1.msra.mxu0 %v2358
        %2529 = vmatprep.subr.mxu0 %v2363
        %2530 = vmatpush1.msra.mxu0 %v2362
        %2531 = vmatprep.subr.mxu0 %v2367
        %2532 = vmatpush1.msra.mxu0 %v2366
        %2533 = vmatprep.subr.mxu0 %v2371
        %2534 = vmatpush1.msra.mxu0 %v2370
        %2535 = vmatprep.subr.mxu0 %v2375
        %2536 = vmatpush1.msra.mxu0 %v2374
        %2537 = vmatprep.subr.mxu0 %v2379
        %2538 = vmatpush1.msra.mxu0 %v2378
        %2539 = vmatprep.subr.mxu0 %v2383
        %2540 = vmatpush1.msra.mxu0 %v2382
        %2541 = vmatprep.subr.mxu0 %v2387
        %2542 = vmatpush1.msra.mxu0 %v2386
        %2543 = vmatprep.subr.mxu0 %v2391
        %2544 = vmatpush1.msra.mxu0 %v2390
        %2545 = vmatprep.subr.mxu0 %v2395
        %2546 = vmatpush1.msra.mxu0 %v2394
        %2547 = vmatprep.subr.mxu0 %v2399
        %2548 = vmatpush1.msra.mxu0 %v2398
        %2549 = vmatprep.subr.mxu0 %v2403
        %2550 = vmatpush1.msra.mxu0 %v2402
        %2551 = vmatprep.subr.mxu0 %v2407
        %2552 = vmatpush1.msra.mxu0 %v2406
        %2553 = vmatprep.subr.mxu0 %v2411
        %2554 = vmatpush1.msra.mxu0 %v2410
        %2555 = vmatprep.subr.mxu0 %v2415
        %2556 = vmatpush1.msra.mxu0 %v2414
        %2557 = vmatprep.subr.mxu0 %v2419
        %2558 = vmatpush1.msra.mxu0 %v2418
        %2559 = vmatprep.subr.mxu0 %v2423
        %2560 = vmatpush1.msra.mxu0 %v2422
        %2561 = vmatprep.mubr.f32.mxu0 %v2169
        %2562 = vmatmul.mubr.f32.gmra.mrb[0].mxu0 %v2168
        %v2563 = vpop.f32.mrb[0].mxu0
        %v2564 = vadd.f32 %v2493, %v2563
        %v2565 = vpop.f32.mrb[0].mxu0
        %v2566 = vadd.f32 %v2495, %v2565
        %2567 = vdwg.mxu0
        %2568 = vmatprep.subr.mxu0 %v2173
        %2569 = vmatpush1.msra.mxu0 %v2172
        %2570 = vmatprep.subr.mxu0 %v2177
        %2571 = vmatpush1.msra.mxu0 %v2176
        %2572 = vmatprep.subr.mxu0 %v2181
        %2573 = vmatpush1.msra.mxu0 %v2180
        %2574 = vmatprep.subr.mxu0 %v2185
        %2575 = vmatpush1.msra.mxu0 %v2184
        %2576 = vmatprep.subr.mxu0 %v2189
        %2577 = vmatpush1.msra.mxu0 %v2188
        %2578 = vmatprep.subr.mxu0 %v2193
        %2579 = vmatpush1.msra.mxu0 %v2192
        %2580 = vmatprep.subr.mxu0 %v2197
        %2581 = vmatpush1.msra.mxu0 %v2196
        %2582 = vmatprep.subr.mxu0 %v2201
        %2583 = vmatpush1.msra.mxu0 %v2200
        %2584 = vmatprep.subr.mxu0 %v2205
        %2585 = vmatpush1.msra.mxu0 %v2204
        %2586 = vmatprep.subr.mxu0 %v2209
        %2587 = vmatpush1.msra.mxu0 %v2208
        %2588 = vmatprep.subr.mxu0 %v2213
        %2589 = vmatpush1.msra.mxu0 %v2212
        %2590 = vmatprep.subr.mxu0 %v2217
        %2591 = vmatpush1.msra.mxu0 %v2216
        %2592 = vmatprep.subr.mxu0 %v2221
        %2593 = vmatpush1.msra.mxu0 %v2220
        %2594 = vmatprep.subr.mxu0 %v2225
        %2595 = vmatpush1.msra.mxu0 %v2224
        %2596 = vmatprep.subr.mxu0 %v2229
        %2597 = vmatpush1.msra.mxu0 %v2228
        %2598 = vmatprep.subr.mxu0 %v2233
        %2599 = vmatpush1.msra.mxu0 %v2232
        %2600 = vmatprep.subr.mxu0 %v2237
        %2601 = vmatpush1.msra.mxu0 %v2236
        %2602 = vmatprep.subr.mxu0 %v2241
        %2603 = vmatpush1.msra.mxu0 %v2240
        %2604 = vmatprep.subr.mxu0 %v2245
        %2605 = vmatpush1.msra.mxu0 %v2244
        %2606 = vmatprep.subr.mxu0 %v2249
        %2607 = vmatpush1.msra.mxu0 %v2248
        %2608 = vmatprep.subr.mxu0 %v2253
        %2609 = vmatpush1.msra.mxu0 %v2252
        %2610 = vmatprep.subr.mxu0 %v2257
        %2611 = vmatpush1.msra.mxu0 %v2256
        %2612 = vmatprep.subr.mxu0 %v2261
        %2613 = vmatpush1.msra.mxu0 %v2260
        %2614 = vmatprep.subr.mxu0 %v2265
        %2615 = vmatpush1.msra.mxu0 %v2264
        %2616 = vmatprep.subr.mxu0 %v2269
        %2617 = vmatpush1.msra.mxu0 %v2268
        %2618 = vmatprep.subr.mxu0 %v2273
        %2619 = vmatpush1.msra.mxu0 %v2272
        %2620 = vmatprep.subr.mxu0 %v2277
        %2621 = vmatpush1.msra.mxu0 %v2276
        %2622 = vmatprep.subr.mxu0 %v2281
        %2623 = vmatpush1.msra.mxu0 %v2280
        %2624 = vmatprep.subr.mxu0 %v2285
        %2625 = vmatpush1.msra.mxu0 %v2284
        %2626 = vmatprep.subr.mxu0 %v2289
        %2627 = vmatpush1.msra.mxu0 %v2288
        %2628 = vmatprep.subr.mxu0 %v2293
        %2629 = vmatpush1.msra.mxu0 %v2292
        %2630 = vmatprep.subr.mxu0 %v2297
        %2631 = vmatpush1.msra.mxu0 %v2296
        %2632 = vmatprep.mubr.f32.mxu0 %v2167
        %2633 = vmatmul.mubr.f32.gmra.mrb[0].mxu0 %v2166
        %v2634 = vpop.f32.mrb[0].mxu0
        %v2635 = vadd.f32 0.0, %v2634
        %v2636 = vpop.f32.mrb[0].mxu0
        %v2637 = vadd.f32 0.0, %v2636
        %2638 = vdwg.mxu0
        %2639 = vmatprep.subr.mxu0 %v2301
        %2640 = vmatpush1.msra.mxu0 %v2300
        %2641 = vmatprep.subr.mxu0 %v2305
        %2642 = vmatpush1.msra.mxu0 %v2304
        %2643 = vmatprep.subr.mxu0 %v2309
        %2644 = vmatpush1.msra.mxu0 %v2308
        %2645 = vmatprep.subr.mxu0 %v2313
        %2646 = vmatpush1.msra.mxu0 %v2312
        %2647 = vmatprep.subr.mxu0 %v2317
        %2648 = vmatpush1.msra.mxu0 %v2316
        %2649 = vmatprep.subr.mxu0 %v2321
        %2650 = vmatpush1.msra.mxu0 %v2320
        %2651 = vmatprep.subr.mxu0 %v2325
        %2652 = vmatpush1.msra.mxu0 %v2324
        %2653 = vmatprep.subr.mxu0 %v2329
        %2654 = vmatpush1.msra.mxu0 %v2328
        %2655 = vmatprep.subr.mxu0 %v2333
        %2656 = vmatpush1.msra.mxu0 %v2332
        %2657 = vmatprep.subr.mxu0 %v2337
        %2658 = vmatpush1.msra.mxu0 %v2336
        %2659 = vmatprep.subr.mxu0 %v2341
        %2660 = vmatpush1.msra.mxu0 %v2340
        %2661 = vmatprep.subr.mxu0 %v2345
        %2662 = vmatpush1.msra.mxu0 %v2344
        %2663 = vmatprep.subr.mxu0 %v2349
        %2664 = vmatpush1.msra.mxu0 %v2348
        %2665 = vmatprep.subr.mxu0 %v2353
        %2666 = vmatpush1.msra.mxu0 %v2352
        %2667 = vmatprep.subr.mxu0 %v2357
        %2668 = vmatpush1.msra.mxu0 %v2356
        %2669 = vmatprep.subr.mxu0 %v2361
        %2670 = vmatpush1.msra.mxu0 %v2360
        %2671 = vmatprep.subr.mxu0 %v2365
        %2672 = vmatpush1.msra.mxu0 %v2364
        %2673 = vmatprep.subr.mxu0 %v2369
        %2674 = vmatpush1.msra.mxu0 %v2368
        %2675 = vmatprep.subr.mxu0 %v2373
        %2676 = vmatpush1.msra.mxu0 %v2372
        %2677 = vmatprep.subr.mxu0 %v2377
        %2678 = vmatpush1.msra.mxu0 %v2376
        %2679 = vmatprep.subr.mxu0 %v2381
        %2680 = vmatpush1.msra.mxu0 %v2380
        %2681 = vmatprep.subr.mxu0 %v2385
        %2682 = vmatpush1.msra.mxu0 %v2384
        %2683 = vmatprep.subr.mxu0 %v2389
        %2684 = vmatpush1.msra.mxu0 %v2388
        %2685 = vmatprep.subr.mxu0 %v2393
        %2686 = vmatpush1.msra.mxu0 %v2392
        %2687 = vmatprep.subr.mxu0 %v2397
        %2688 = vmatpush1.msra.mxu0 %v2396
        %2689 = vmatprep.subr.mxu0 %v2401
        %2690 = vmatpush1.msra.mxu0 %v2400
        %2691 = vmatprep.subr.mxu0 %v2405
        %2692 = vmatpush1.msra.mxu0 %v2404
        %2693 = vmatprep.subr.mxu0 %v2409
        %2694 = vmatpush1.msra.mxu0 %v2408
        %2695 = vmatprep.subr.mxu0 %v2413
        %2696 = vmatpush1.msra.mxu0 %v2412
        %2697 = vmatprep.subr.mxu0 %v2417
        %2698 = vmatpush1.msra.mxu0 %v2416
        %2699 = vmatprep.subr.mxu0 %v2421
        %2700 = vmatpush1.msra.mxu0 %v2420
        %2701 = vmatprep.subr.mxu0 %v2425
        %2702 = vmatpush1.msra.mxu0 %v2424
        %2703 = vmatprep.mubr.f32.mxu0 %v2169
        %2704 = vmatmul.mubr.f32.gmra.mrb[0].mxu0 %v2168
        %v2705 = vpop.f32.mrb[0].mxu0
        %v2706 = vadd.f32 %v2635, %v2705
        %v2707 = vpop.f32.mrb[0].mxu0
        %v2708 = vadd.f32 %v2637, %v2707
        %2709 = vdwg.mxu0
        %v2710 = vsub.f32 %v2564, 1.0
        %v2711 = vsub.f32 %v2566, 1.0
        %v2712 = vsub.f32 %v2706, 1.0
        %v2713 = vsub.f32 %v2708, 1.0
        %v2714 = vadd.f32 %v2166, %v2167
        %v2715 = vadd.f32 %v2714, %v2168
        %v2716 = vadd.f32 %v2715, %v2169
        %2717 = vadd.xlane.f32.xlu0 %v2716
        %v2718 = vpop.xlane.xlu0 %2717
        %v2719 = vld [vmem:[%s651] sm:$0xff]
        %v2720 = vmul.f32 %v2719, %v2718
        %v2721 = vfloor.f32 %v2720
        %2723 = vset.pattern.permute.xlu0 0
        %2724 = vperm.xlu0 %2723, %v2721
        %v2725 = vpop.permute.xlu0 %2724
        %vm2727 = vcmp.eq.f32.partialorder %v2710, %v2725
        %vm2728 = vcmp.eq.f32.partialorder %v2711, %v2725
        %vm2729 = vcmp.eq.f32.partialorder %v2712, %v2725
        %vm2730 = vcmp.eq.f32.partialorder %v2713, %v2725
        %v2731 = vsel %vm2727, 1, 0
        %v2732 = vsel %vm2728, 1, 0
        %v2733 = vsel %vm2729, 1, 0
        %v2734 = vsel %vm2730, 1, 0
        %v2735 = vcvt.s32.f32 %v2731
        %v2736 = vcvt.s32.f32 %v2732
        %v2737 = vcvt.s32.f32 %v2733
        %v2738 = vcvt.s32.f32 %v2734
        %v2739 = vmul.f32 %v2166, %v2735
        %v2740 = vmul.f32 %v2167, %v2736
        %v2741 = vmul.f32 %v2168, %v2737
        %v2742 = vmul.f32 %v2169, %v2738
        %v2743 = vadd.f32 %v2739, 0.0
        %v2744 = vadd.f32 %v2740, 0.0
        %v2745 = vadd.f32 %v2741, 0.0
        %v2746 = vadd.f32 %v2742, 0.0
        %v2747 = vsub.f32 %v2166, %v2739
        %v2748 = vsub.f32 %v2167, %v2740
        %v2749 = vsub.f32 %v2168, %v2741
        %v2750 = vsub.f32 %v2169, %v2742
        %v2751 = vadd.f32 %v2739, %v2740
        %v2752 = vadd.f32 %v2751, %v2741
        %v2753 = vadd.f32 %v2752, %v2742
        %2754 = vadd.xlane.f32.xlu0 %v2753
        %v2755 = vpop.xlane.xlu0 %2754
        %v2756 = vsub.f32 %v2718, %v2755
        %vm2757 = vcmp.gt.f32.partialorder %v2710, %v2725
        %vm2758 = vcmp.gt.f32.partialorder %v2711, %v2725
        %vm2759 = vcmp.gt.f32.partialorder %v2712, %v2725
        %vm2760 = vcmp.gt.f32.partialorder %v2713, %v2725
        %v2761 = vsel %vm2757, 1, 0
        %v2762 = vsel %vm2758, 1, 0
        %v2763 = vsel %vm2759, 1, 0
        %v2764 = vsel %vm2760, 1, 0
        %v2765 = vcvt.s32.f32 %v2761
        %v2766 = vcvt.s32.f32 %v2762
        %v2767 = vcvt.s32.f32 %v2763
        %v2768 = vcvt.s32.f32 %v2764
        %v2769 = vsub.f32 %v2710, %v2765
        %v2770 = vsub.f32 %v2711, %v2766
        %v2771 = vsub.f32 %v2712, %v2767
        %v2772 = vsub.f32 %v2713, %v2768
        %v2773 = vmul.f32 %v2719, %v2756
        %v2774 = vfloor.f32 %v2773
        %2776 = vset.pattern.permute.xlu0 1
        %2777 = vperm.xlu0 %2776, %v2774
        %v2778 = vpop.permute.xlu0 %2777
        %vm2780 = vcmp.eq.f32.partialorder %v2769, %v2778
        %vm2781 = vcmp.eq.f32.partialorder %v2770, %v2778
        %vm2782 = vcmp.eq.f32.partialorder %v2771, %v2778
        %vm2783 = vcmp.eq.f32.partialorder %v2772, %v2778
        %v2784 = vsel %vm2780, 1, 0
        %v2785 = vsel %vm2781, 1, 0
        %v2786 = vsel %vm2782, 1, 0
        %v2787 = vsel %vm2783, 1, 0
        %v2788 = vcvt.s32.f32 %v2784
        %v2789 = vcvt.s32.f32 %v2785
        %v2790 = vcvt.s32.f32 %v2786
        %v2791 = vcvt.s32.f32 %v2787
        %v2792 = vmul.f32 %v2747, %v2788
        %v2793 = vmul.f32 %v2748, %v2789
        %v2794 = vmul.f32 %v2749, %v2790
        %v2795 = vmul.f32 %v2750, %v2791
        %v2796 = vadd.f32 %v2743, %v2792
        %v2797 = vadd.f32 %v2744, %v2793
        %v2798 = vadd.f32 %v2745, %v2794
        %v2799 = vadd.f32 %v2746, %v2795
        %v2800 = vsub.f32 %v2747, %v2792
        %v2801 = vsub.f32 %v2748, %v2793
        %v2802 = vsub.f32 %v2749, %v2794
        %v2803 = vsub.f32 %v2750, %v2795
        %v2804 = vadd.f32 %v2792, %v2793
        %v2805 = vadd.f32 %v2804, %v2794
        %v2806 = vadd.f32 %v2805, %v2795
        %2807 = vadd.xlane.f32.xlu0 %v2806
        %v2808 = vpop.xlane.xlu0 %2807
        %v2809 = vsub.f32 %v2756, %v2808
        %vm2810 = vcmp.gt.f32.partialorder %v2769, %v2778
        %vm2811 = vcmp.gt.f32.partialorder %v2770, %v2778
        %vm2812 = vcmp.gt.f32.partialorder %v2771, %v2778
        %vm2813 = vcmp.gt.f32.partialorder %v2772, %v2778
        %v2814 = vsel %vm2810, 1, 0
        %v2815 = vsel %vm2811, 1, 0
        %v2816 = vsel %vm2812, 1, 0
        %v2817 = vsel %vm2813, 1, 0
        %v2818 = vcvt.s32.f32 %v2814
        %v2819 = vcvt.s32.f32 %v2815
        %v2820 = vcvt.s32.f32 %v2816
        %v2821 = vcvt.s32.f32 %v2817
        %v2822 = vsub.f32 %v2769, %v2818
        %v2823 = vsub.f32 %v2770, %v2819
        %v2824 = vsub.f32 %v2771, %v2820
        %v2825 = vsub.f32 %v2772, %v2821
        %v2826 = vmul.f32 %v2719, %v2809
        %v2827 = vfloor.f32 %v2826
        %2829 = vset.pattern.permute.xlu0 2
        %2830 = vperm.xlu0 %2829, %v2827
        %v2831 = vpop.permute.xlu0 %2830
        %vm2833 = vcmp.eq.f32.partialorder %v2822, %v2831
        %vm2834 = vcmp.eq.f32.partialorder %v2823, %v2831
        %vm2835 = vcmp.eq.f32.partialorder %v2824, %v2831
        %vm2836 = vcmp.eq.f32.partialorder %v2825, %v2831
        %v2837 = vsel %vm2833, 1, 0
        %v2838 = vsel %vm2834, 1, 0
        %v2839 = vsel %vm2835, 1, 0
        %v2840 = vsel %vm2836, 1, 0
        %v2841 = vcvt.s32.f32 %v2837
        %v2842 = vcvt.s32.f32 %v2838
        %v2843 = vcvt.s32.f32 %v2839
        %v2844 = vcvt.s32.f32 %v2840
        %v2845 = vmul.f32 %v2800, %v2841
        %v2846 = vmul.f32 %v2801, %v2842
        %v2847 = vmul.f32 %v2802, %v2843
        %v2848 = vmul.f32 %v2803, %v2844
        %v2849 = vadd.f32 %v2796, %v2845
        %v2850 = vadd.f32 %v2797, %v2846
        %v2851 = vadd.f32 %v2798, %v2847
        %v2852 = vadd.f32 %v2799, %v2848
        %v2853 = vsub.f32 %v2800, %v2845
        %v2854 = vsub.f32 %v2801, %v2846
        %v2855 = vsub.f32 %v2802, %v2847
        %v2856 = vsub.f32 %v2803, %v2848
        %v2857 = vadd.f32 %v2845, %v2846
        %v2858 = vadd.f32 %v2857, %v2847
        %v2859 = vadd.f32 %v2858, %v2848
        %2860 = vadd.xlane.f32.xlu0 %v2859
        %v2861 = vpop.xlane.xlu0 %2860
        %v2862 = vsub.f32 %v2809, %v2861
        %vm2863 = vcmp.gt.f32.partialorder %v2822, %v2831
        %vm2864 = vcmp.gt.f32.partialorder %v2823, %v2831
        %vm2865 = vcmp.gt.f32.partialorder %v2824, %v2831
        %vm2866 = vcmp.gt.f32.partialorder %v2825, %v2831
        %v2867 = vsel %vm2863, 1, 0
        %v2868 = vsel %vm2864, 1, 0
        %v2869 = vsel %vm2865, 1, 0
        %v2870 = vsel %vm2866, 1, 0
        %v2871 = vcvt.s32.f32 %v2867
        %v2872 = vcvt.s32.f32 %v2868
        %v2873 = vcvt.s32.f32 %v2869
        %v2874 = vcvt.s32.f32 %v2870
        %v2875 = vsub.f32 %v2822, %v2871
        %v2876 = vsub.f32 %v2823, %v2872
        %v2877 = vsub.f32 %v2824, %v2873
        %v2878 = vsub.f32 %v2825, %v2874
        %v2879 = vmul.f32 %v2719, %v2862
        %v2880 = vfloor.f32 %v2879
        %2882 = vset.pattern.permute.xlu0 3
        %2883 = vperm.xlu0 %2882, %v2880
        %v2884 = vpop.permute.xlu0 %2883
        %vm2886 = vcmp.eq.f32.partialorder %v2875, %v2884
        %vm2887 = vcmp.eq.f32.partialorder %v2876, %v2884
        %vm2888 = vcmp.eq.f32.partialorder %v2877, %v2884
        %vm2889 = vcmp.eq.f32.partialorder %v2878, %v2884
        %v2890 = vsel %vm2886, 1, 0
        %v2891 = vsel %vm2887, 1, 0
        %v2892 = vsel %vm2888, 1, 0
        %v2893 = vsel %vm2889, 1, 0
        %v2894 = vcvt.s32.f32 %v2890
        %v2895 = vcvt.s32.f32 %v2891
        %v2896 = vcvt.s32.f32 %v2892
        %v2897 = vcvt.s32.f32 %v2893
        %v2898 = vmul.f32 %v2853, %v2894
        %v2899 = vmul.f32 %v2854, %v2895
        %v2900 = vmul.f32 %v2855, %v2896
        %v2901 = vmul.f32 %v2856, %v2897
        %v2902 = vadd.f32 %v2849, %v2898
        %v2903 = vadd.f32 %v2850, %v2899
        %v2904 = vadd.f32 %v2851, %v2900
        %v2905 = vadd.f32 %v2852, %v2901
        %v2906 = vsub.f32 %v2853, %v2898
        %v2907 = vsub.f32 %v2854, %v2899
        %v2908 = vsub.f32 %v2855, %v2900
        %v2909 = vsub.f32 %v2856, %v2901
        %v2910 = vadd.f32 %v2898, %v2899
        %v2911 = vadd.f32 %v2910, %v2900
        %v2912 = vadd.f32 %v2911, %v2901
        %2913 = vadd.xlane.f32.xlu0 %v2912
        %v2914 = vpop.xlane.xlu0 %2913
        %v2915 = vsub.f32 %v2862, %v2914
        %vm2916 = vcmp.gt.f32.partialorder %v2875, %v2884
        %vm2917 = vcmp.gt.f32.partialorder %v2876, %v2884
        %vm2918 = vcmp.gt.f32.partialorder %v2877, %v2884
        %vm2919 = vcmp.gt.f32.partialorder %v2878, %v2884
        %v2920 = vsel %vm2916, 1, 0
        %v2921 = vsel %vm2917, 1, 0
        %v2922 = vsel %vm2918, 1, 0
        %v2923 = vsel %vm2919, 1, 0
        %v2924 = vcvt.s32.f32 %v2920
        %v2925 = vcvt.s32.f32 %v2921
        %v2926 = vcvt.s32.f32 %v2922
        %v2927 = vcvt.s32.f32 %v2923
        %v2928 = vsub.f32 %v2875, %v2924
        %v2929 = vsub.f32 %v2876, %v2925
        %v2930 = vsub.f32 %v2877, %v2926
        %v2931 = vsub.f32 %v2878, %v2927
        %v2932 = vmul.f32 %v2719, %v2915
        %v2933 = vfloor.f32 %v2932
        %2935 = vset.pattern.permute.xlu0 4
        %2936 = vperm.xlu0 %2935, %v2933
        %v2937 = vpop.permute.xlu0 %2936
        %vm2939 = vcmp.eq.f32.partialorder %v2928, %v2937
        %vm2940 = vcmp.eq.f32.partialorder %v2929, %v2937
        %vm2941 = vcmp.eq.f32.partialorder %v2930, %v2937
        %vm2942 = vcmp.eq.f32.partialorder %v2931, %v2937
        %v2943 = vsel %vm2939, 1, 0
        %v2944 = vsel %vm2940, 1, 0
        %v2945 = vsel %vm2941, 1, 0
        %v2946 = vsel %vm2942, 1, 0
        %v2947 = vcvt.s32.f32 %v2943
        %v2948 = vcvt.s32.f32 %v2944
        %v2949 = vcvt.s32.f32 %v2945
        %v2950 = vcvt.s32.f32 %v2946
        %v2951 = vmul.f32 %v2906, %v2947
        %v2952 = vmul.f32 %v2907, %v2948
        %v2953 = vmul.f32 %v2908, %v2949
        %v2954 = vmul.f32 %v2909, %v2950
        %v2955 = vadd.f32 %v2902, %v2951
        %v2956 = vadd.f32 %v2903, %v2952
        %v2957 = vadd.f32 %v2904, %v2953
        %v2958 = vadd.f32 %v2905, %v2954
        %v2959 = vsub.f32 %v2906, %v2951
        %v2960 = vsub.f32 %v2907, %v2952
        %v2961 = vsub.f32 %v2908, %v2953
        %v2962 = vsub.f32 %v2909, %v2954
        %v2963 = vadd.f32 %v2951, %v2952
        %v2964 = vadd.f32 %v2963, %v2953
        %v2965 = vadd.f32 %v2964, %v2954
        %2966 = vadd.xlane.f32.xlu0 %v2965
        %v2967 = vpop.xlane.xlu0 %2966
        %v2968 = vsub.f32 %v2915, %v2967
        %vm2969 = vcmp.gt.f32.partialorder %v2928, %v2937
        %vm2970 = vcmp.gt.f32.partialorder %v2929, %v2937
        %vm2971 = vcmp.gt.f32.partialorder %v2930, %v2937
        %vm2972 = vcmp.gt.f32.partialorder %v2931, %v2937
        %v2973 = vsel %vm2969, 1, 0
        %v2974 = vsel %vm2970, 1, 0
        %v2975 = vsel %vm2971, 1, 0
        %v2976 = vsel %vm2972, 1, 0
        %v2977 = vcvt.s32.f32 %v2973
        %v2978 = vcvt.s32.f32 %v2974
        %v2979 = vcvt.s32.f32 %v2975
        %v2980 = vcvt.s32.f32 %v2976
        %v2981 = vsub.f32 %v2928, %v2977
        %v2982 = vsub.f32 %v2929, %v2978
        %v2983 = vsub.f32 %v2930, %v2979
        %v2984 = vsub.f32 %v2931, %v2980
        %v2985 = vmul.f32 %v2719, %v2968
        %v2986 = vfloor.f32 %v2985
        %2988 = vset.pattern.permute.xlu0 5
        %2989 = vperm.xlu0 %2988, %v2986
        %v2990 = vpop.permute.xlu0 %2989
        %vm2992 = vcmp.eq.f32.partialorder %v2981, %v2990
        %vm2993 = vcmp.eq.f32.partialorder %v2982, %v2990
        %vm2994 = vcmp.eq.f32.partialorder %v2983, %v2990
        %vm2995 = vcmp.eq.f32.partialorder %v2984, %v2990
        %v2996 = vsel %vm2992, 1, 0
        %v2997 = vsel %vm2993, 1, 0
        %v2998 = vsel %vm2994, 1, 0
        %v2999 = vsel %vm2995, 1, 0
        %v3000 = vcvt.s32.f32 %v2996
        %v3001 = vcvt.s32.f32 %v2997
        %v3002 = vcvt.s32.f32 %v2998
        %v3003 = vcvt.s32.f32 %v2999
        %v3004 = vmul.f32 %v2959, %v3000
        %v3005 = vmul.f32 %v2960, %v3001
        %v3006 = vmul.f32 %v2961, %v3002
        %v3007 = vmul.f32 %v2962, %v3003
        %v3008 = vadd.f32 %v2955, %v3004
        %v3009 = vadd.f32 %v2956, %v3005
        %v3010 = vadd.f32 %v2957, %v3006
        %v3011 = vadd.f32 %v2958, %v3007
        %v3012 = vmax.f32 %v2133, %v2134
        %v3013 = vmax.f32 %v2135, %v2136
        %v3014 = vmax.f32 %v3012, %v3013
        %3015 = vmax.xlane.f32.xlu0 %v3014
        %v3016 = vpop.xlane.xlu0 %3015
        %v3017 = vmax.f32 %v1926, %v3016
        %v3018 = vsub.f32 %v1926, %v3017
        %v3019 = vmul.f32 %v3018, 1.442695
        %v3020 = vpow.pop %v3019
        %v3021 = vsub.f32 %v2133, %v3017
        %v3022 = vsub.f32 %v2134, %v3017
        %v3023 = vsub.f32 %v2135, %v3017
        %v3024 = vsub.f32 %v2136, %v3017
        %v3025 = vmul.f32 %v3021, 1.442695
        %v3026 = vpow.pop %v3025
        %v3027 = vmul.f32 %v3022, 1.442695
        %v3028 = vpow.pop %v3027
        %v3029 = vmul.f32 %v3023, 1.442695
        %v3030 = vpow.pop %v3029
        %v3031 = vmul.f32 %v3024, 1.442695
        %v3032 = vpow.pop %v3031
        %v3033 = vadd.f32 %v3026, %v3028
        %v3034 = vadd.f32 %v3033, %v3030
        %v3035 = vadd.f32 %v3034, %v3032
        %3036 = vadd.xlane.f32.xlu0 %v3035
        %v3037 = vpop.xlane.xlu0 %3036
        %v3038 = vadd.f32 %v3020, %v3037
        %v3039 = vlog2.pop %v3038
        %v3040 = vmul.f32 %v3039, 0.6931472
        %v3041 = vadd.f32 %v3017, %v3040
        %v3042 = vsub.f32 %v1926, %v3041
        %v3043 = vsub.f32 %v2133, %v3041
        %v3044 = vsub.f32 %v2134, %v3041
        %v3045 = vsub.f32 %v2135, %v3041
        %v3046 = vsub.f32 %v2136, %v3041
        %v3047 = vmul.f32 %v3008, %v3043
        %v3048 = vmul.f32 %v3009, %v3044
        %v3049 = vmul.f32 %v3010, %v3045
        %v3050 = vmul.f32 %v3011, %v3046
        %v3051 = vadd.f32 %v3047, %v3048
        %v3052 = vadd.f32 %v3051, %v3049
        %v3053 = vadd.f32 %v3052, %v3050
        %3054 = vadd.xlane.f32.xlu0 %v3053
        %v3055 = vpop.xlane.xlu0 %3054
        %v3056 = vadd.f32 %v3042, %v3055
        %v3057 = vadd.f32 %v3008, %v3009
        %v3058 = vadd.f32 %v3057, %v3010
        %v3059 = vadd.f32 %v3058, %v3011
        %3060 = vadd.xlane.f32.xlu0 %v3059
        %v3061 = vpop.xlane.xlu0 %3060
        %v3062 = vadd.f32 %v3061, 1.0
        %v3063 = vrcp.pop %v3062
        %v3064 = vmul.f32 %v3056, %v3063
        %v3065 = vrot.slane %v3064, 4
        %v3066 = vadd.f32 %v3064, %v3065
        %v3067 = vrot.slane %v3066, 2
        %v3068 = vadd.f32 %v3066, %v3067
        %v3069 = vrot.slane %v3068, 1
        %v3070 = vadd.f32 %v3068, %v3069
        %v3071 = vsub.f32 0.0, %v3070
        %v3072 = vld [vmem:[#allocation3] sm:$0x1]
        %v3073 = vmul.f32 %v3071, 0.0625
        %v3074 = vadd.f32 %v3072, %v3073
        %vm3075 = vcmask 0
        %3076 = vst.msk [vmem:[#allocation3] sm:$0x1] %vm3075, %v3074
        %s3077 = sld [smem:[#allocation2]]
        %s3078 = smul.u32 %s34, 8
        %s3079 = sadd.s32 %s3077, %s3078
        %p3080 = scmp.lt.s32.totalorder %s3079, 0
        %s3081 = ssub.s32 0, %s3079
        %s3082 = scalar_select %p3080, %s3081, %s3079
        %s3083 = sand.u32 %s3082, 511
        %s3084 = ssub.s32 0, %s3083
        %s3085 = scalar_select %p3080, %s3084, %s3083
        %p3086 = scmp.ne.s32.totalorder %s3085, 0
        %p3087 = scmp.lt.s32.totalorder %s3085, 0
        %p3088 = pnand %p3087, %p3086
        %p3089 = pneg %p3088
        %s3090 = sadd.s32 %s3085, 512
        %s3091 = scalar_select %p3089, %s3090, %s3085
        %s3092 = scalar_lea.vmem %s19, %s3091
        %3093 = vst [vmem:[%s3092] sm:$0xff] %v1918
        %v3094 = vlaneseq
        %v3095 = vand.u32 %v3094, 127
        %v3096 = vadd.s32 %v3095, 128
        %v3097 = vadd.s32 %v3095, 256
        %v3098 = vadd.s32 %v3095, 384
        %v3099 = vstv %s3091
        %vm3100 = vcmp.ge.s32.totalorder %v3095, %v3099
        %vm3101 = vcmp.ge.s32.totalorder %v3096, %v3099
        %vm3102 = vcmp.ge.s32.totalorder %v3097, %v3099
        %vm3103 = vcmp.ge.s32.totalorder %v3098, %v3099
        %s3104 = sadd.s32 %s3091, 8
        %v3105 = vstv %s3104
        %vm3106 = vcmp.lt.s32.totalorder %v3095, %v3105
        %vm3107 = vcmp.lt.s32.totalorder %v3096, %v3105
        %vm3108 = vcmp.lt.s32.totalorder %v3097, %v3105
        %vm3109 = vcmp.lt.s32.totalorder %v3098, %v3105
        %vm3110 = vmand %vm3100, %vm3106
        %vm3111 = vmand %vm3101, %vm3107
        %vm3112 = vmand %vm3102, %vm3108
        %vm3113 = vmand %vm3103, %vm3109
        %v3114 = vld [vmem:[%s13] sm:$0xf]
        %v3115 = vld [vmem:[%s20] sm:$0xf]
        %v3116 = vlaneseq
        %v3117 = vshrl.u32 %v3116, 7
        %v3118 = vsub.s32 0, %v3117
        %v3119 = vrot.slane %v3114, %v3118
        %v3120 = vlaneseq
        %v3121 = vshrl.u32 %v3120, 7
        %v3122 = vsub.s32 1, %v3121
        %v3123 = vrot.slane %v3114, %v3122
        %v3124 = vlaneseq
        %v3125 = vshrl.u32 %v3124, 7
        %v3126 = vsub.s32 2, %v3125
        %v3127 = vrot.slane %v3114, %v3126
        %v3128 = vlaneseq
        %v3129 = vshrl.u32 %v3128, 7
        %v3130 = vsub.s32 3, %v3129
        %v3131 = vrot.slane %v3114, %v3130
        %v3132 = vlaneseq
        %v3133 = vshrl.u32 %v3132, 7
        %v3134 = vsub.s32 0, %v3133
        %v3135 = vrot.slane %v3115, %v3134
        %v3136 = vlaneseq
        %v3137 = vshrl.u32 %v3136, 7
        %v3138 = vsub.s32 1, %v3137
        %v3139 = vrot.slane %v3115, %v3138
        %v3140 = vlaneseq
        %v3141 = vshrl.u32 %v3140, 7
        %v3142 = vsub.s32 2, %v3141
        %v3143 = vrot.slane %v3115, %v3142
        %v3144 = vlaneseq
        %v3145 = vshrl.u32 %v3144, 7
        %v3146 = vsub.s32 3, %v3145
        %v3147 = vrot.slane %v3115, %v3146
        %v3148 = vsel %vm3110, %v3119, %v3135
        %v3149 = vsel %vm3111, %v3123, %v3139
        %v3150 = vsel %vm3112, %v3127, %v3143
        %v3151 = vsel %vm3113, %v3131, %v3147
        %v3152 = vcombine.low %v3148, %v3149
        %v3153 = vcombine.low %v3150, %v3151
        %v3155 = vunpack.c.l.s4 1966171168
        %v3156 = vunpack.c.0.s8 %v3155
        %v3157 = vlaneseq
        %v3158 = vshrl.u32 %v3157, 7
        %v3159 = vsub.s32 %v3156, %v3158
        %v3160 = vrot.slane %v3152, %v3159
        %v3162 = vunpack.c.l.s4 1966171168
        %v3163 = vunpack.c.0.s8 %v3162
        %v3164 = vlaneseq
        %v3165 = vshrl.u32 %v3164, 7
        %v3166 = vsub.s32 %v3163, %v3165
        %v3167 = vrot.slane %v3153, %v3166
        %v3168 = vcombine.low %v3160, %v3167
        %v3170 = vunpack.c.l.s4 1966171168
        %v3171 = vunpack.c.0.s8 %v3170
        %v3172 = vlaneseq
        %v3173 = vshrl.u32 %v3172, 7
        %v3174 = vsub.s32 %v3171, %v3173
        %v3175 = vrot.slane %v3168, %v3174
        %v3176 = vlaneseq
        %vm3177 = vcmp.ge.s32.totalorder %v3176, 0
        %vm3178 = vcmp.lt.s32.totalorder %v3176, 512
        %vm3179 = vmand %vm3177, %vm3178
        %3180 = vst.msk [vmem:[%s20] sm:$0xf] %vm3179, %v3175
        %p3181 = scmp.lt.s32.totalorder %s34, 1
        %s3182 = scalar_select %p3181, %s34, 1
        %s3183 = smul.addr %s3182, 8
        %s3184 = scalar_lea.vmem %s18, %s3183
        // Predicated region
        $region93: #{_moco_forward.3} parent=87 // pred_check
          %p3185 = pneg %p419
        $region94: #{_moco_forward.3} parent=87 // pred_check_branch
          %3187 = sbr.rel (%p3185) target = $region96
        $region95: #{_moco_forward.3} parent=87 // pred_region
          %s3189 = ssub.s32 16, 16
          %3190 = vsyncadd [#allocation4], %s3189
          %s3192 = sshll.u32 [#allocation3], 4
          %s3193 = int_to_ptr.vmem [resolvable:$true] %s3192
          %3195 = dma.vmem_to_hbm [thread:$0]  %s3193, 16, %s17, [#allocation4]
        $region96: #{_moco_forward.3} parent=87 // pred_fallthru
          _
        // Predicated region
        $region97: #{_moco_forward.3} parent=87 // pred_check
          %p3196 = pneg %p445
        $region98: #{_moco_forward.3} parent=87 // pred_check_branch
          %3198 = sbr.rel (%p3196) target = $region100
        $region99: #{_moco_forward.3} parent=87 // pred_region
          _
        $region100: #{_moco_forward.3} parent=87 // pred_fallthru
          _
        // Predicated region
        $region101: #{_moco_forward.3} parent=87 // pred_check
          %p3199 = pneg %p466
        $region102: #{_moco_forward.3} parent=87 // pred_check_branch
          %3201 = sbr.rel (%p3199) target = $region104
        $region103: #{_moco_forward.3} parent=87 // pred_region
          _
        $region104: #{_moco_forward.3} parent=87 // pred_fallthru
          _
        // Predicated region
        $region105: #{_moco_forward.3} parent=87 // pred_check
          %p3202 = pneg %p487
        $region106: #{_moco_forward.3} parent=87 // pred_check_branch
          %3204 = sbr.rel (%p3202) target = $region108
        $region107: #{_moco_forward.3} parent=87 // pred_region
          _
        $region108: #{_moco_forward.3} parent=87 // pred_fallthru
          _
        // Predicated region
        $region109: #{_moco_forward.3} parent=87 // pred_check
          %p3205 = pneg %p419
        $region110: #{_moco_forward.3} parent=87 // pred_check_branch
          %3207 = sbr.rel (%p3205) target = $region112
        $region111: #{_moco_forward.3} parent=87 // pred_region
          %3208 = dma.done [#allocation4], 16
        $region112: #{_moco_forward.3} parent=87 // pred_fallthru
          _
        // Predicated region
        $region113: #{_moco_forward.3} parent=87 // pred_check
          %p3209 = pneg %p466
        $region114: #{_moco_forward.3} parent=87 // pred_check_branch
          %3211 = sbr.rel (%p3209) target = $region116
        $region115: #{_moco_forward.3} parent=87 // pred_region
          _
        $region116: #{_moco_forward.3} parent=87 // pred_fallthru
          _
        // Predicated region
        $region117: #{_moco_forward.3} parent=87 // pred_check
          %p3212 = pneg %p487
        $region118: #{_moco_forward.3} parent=87 // pred_check_branch
          %3214 = sbr.rel (%p3212) target = $region120
        $region119: #{_moco_forward.3} parent=87 // pred_region
          _
        $region120: #{_moco_forward.3} parent=87 // pred_fallthru
          _
      $region88: #{_moco_forward.3} parent=5 // pred_fallthru
        _
      %p3215 = scmp.le.s32.totalorder 2, %s29
      // Predicated region
      $region121: #{_moco_forward.3} parent=5 // pred_check
        %p3216 = pneg %p3215
      $region122: #{_moco_forward.3} parent=5 // pred_check_branch
        %3218 = sbr.rel (%p3216) target = $region124
      $region123: #{_moco_forward.3} parent=5 // pred_region
        %s3219 = ssub.s32 %s29, 2
        // Predicated region
        $region125: #{_moco_forward.3} parent=123 // pred_check
          %p3220 = pneg %p451
        $region126: #{_moco_forward.3} parent=123 // pred_check_branch
          %3222 = sbr.rel (%p3220) target = $region128
        $region127: #{_moco_forward.3} parent=123 // pred_region
          %p3223 = scmp.lt.s32.totalorder %s35, 1
          %s3224 = scalar_select %p3223, %s35, 1
          %s3225 = smul.addr %s3224, 8
          %s3226 = scalar_lea.vmem %s18, %s3225
        $region128: #{_moco_forward.3} parent=123 // pred_fallthru
          _
      $region124: #{_moco_forward.3} parent=5 // pred_fallthru
        _
    $region6: #{_moco_forward.3} parent=1 // loop_footer
      %s33 = sadd.s32 1, %s29
    $region7: #{_moco_forward.3} parent=1 // loop_footer_branch
      %28 = sbr.rel target = $region3
    $region8: #{_moco_forward.3} parent=1 // loop_exit
      _
    %3227 = vsyncpa [#allocation4], 1
    %s3228 = scalar_lea.sflag [#allocation4], 1
    %3229 = vsyncpa %s3228, 1

</llo_original>
